<compile_context>
chip_gen: v5e
topology: v5e:2x2
jax: 0.10.0
libtpu: 0.0.40
codegen_flags: <defaults>
</compile_context>

<pallas_src>
import jax
import jax.numpy as jnp
from jax import lax
from jax.experimental import pallas as pl
from jax.experimental.pallas import tpu as pltpu

TEXT_DIM = 1024
TEXT_EMB = 256
N_STRUCTURED = 16                    # stand-in for len(STRUCTURED_FEATURES)
FC_DIM = TEXT_EMB + N_STRUCTURED     # 272
TILE_B = 1024                        # batch tile (sweepable); f32 texts tile = 4 MiB


def _round_up(x, m):
    return ((x + m - 1) // m) * m


def _model_kernel(texts_ref, struct_ref,
                  wds_ref, bds_ref,
                  w1t_ref, w1b_ref, b1_ref,
                  w2_ref, b2_ref,
                  w3t_ref, b3_ref,
                  out_ref):
    # Cast inputs to bf16 in-kernel (no separate XLA cast/pad pass over HBM).
    texts = texts_ref[...].astype(jnp.bfloat16)
    struct = struct_ref[...].astype(jnp.bfloat16)

    # fc_downsample: (tile_b,1024)bf16 @ (1024,256)bf16 -> f32 acc, + f32 bias
    t = jnp.dot(texts, wds_ref[...],
                preferred_element_type=jnp.float32) + bds_ref[...]

    # fc[0]: Linear(272,272) on concat([t, structured]),
    # folded as t @ W1[:256] + structured @ W1[256:]
    z1 = (jnp.dot(t.astype(jnp.bfloat16), w1t_ref[...],
                  preferred_element_type=jnp.float32)
          + jnp.dot(struct, w1b_ref[...],
                    preferred_element_type=jnp.float32)
          + b1_ref[...])
    h1 = jnp.maximum(z1, 0.0).astype(jnp.bfloat16)                # fc[1]: ReLU (bf16 once)

    # fc[2]: Linear(272,272) + fc[3]: ReLU
    z2 = jnp.dot(h1, w2_ref[...],
                 preferred_element_type=jnp.float32) + b2_ref[...]
    h2 = jnp.maximum(z2, 0.0).astype(jnp.bfloat16)

    # fc[4]: Linear(272,1), computed lane-dense: (1,272) contracted with
    # (tile_b,272) over dim 1 -> (1,tile_b).  Same trans-B pattern the MXU
    # handles in attention (q @ k^T); keeps the output store unmasked.
    y = lax.dot_general(w3t_ref[...], h2,
                        dimension_numbers=(((1,), (1,)), ((), ())),
                        preferred_element_type=jnp.float32) + b3_ref[...]
    out_ref[...] = y.astype(out_ref.dtype)


def prepare_params(params):
    """One-time param prep (hoisted out of the per-call hot path)."""
    w1 = params["w1"]
    return dict(
        w_ds=params["w_ds"].astype(jnp.bfloat16),                       # (1024,256)
        b_ds=params["b_ds"].reshape(1, -1).astype(jnp.float32),         # (1,256)
        w1_top=w1[:TEXT_EMB, :].astype(jnp.bfloat16),                   # (256,272)
        w1_bot=w1[TEXT_EMB:, :].astype(jnp.bfloat16),                   # (16,272)
        b1=params["b1"].reshape(1, -1).astype(jnp.float32),             # (1,272)
        w2=params["w2"].astype(jnp.bfloat16),                           # (272,272)
        b2=params["b2"].reshape(1, -1).astype(jnp.float32),             # (1,272)
        w3_t=params["w3"].T.astype(jnp.bfloat16),                       # (1,272)
        b3=params["b3"].reshape(1, 1).astype(jnp.float32),              # (1,1)
    )


def model_forward(images, texts, structured, prepared, tile_b=TILE_B):
    """Eval-mode forward of Model(texts=True, structured=True, visual=False).

    `images` is accepted for signature parity and ignored (visual=False).
    Returns (B, 1) float32, matching the torch module.
    """
    del images
    B = texts.shape[0]

    # Clamp tile_b for small batches: balances blocks across both v7x
    # TensorCores and avoids padding a tiny batch to a full 1024-row tile.
    tile_b = min(tile_b, max(256, _round_up(pl.cdiv(B, 2), 256)))
    n_blocks = pl.cdiv(B, tile_b)
    b_total = n_blocks * tile_b

    # NOTE: no wrapper-side cast or pad — texts/structured are streamed in
    # their native dtype; the ragged last block (rows >= B) holds unspecified
    # data and those output rows are discarded by the host-side slice below.

    def resident(shape):
        # VMEM-resident across all grid steps (constant block index).
        return pl.BlockSpec(shape, lambda i: (0, 0))

    in_specs = [
        pl.BlockSpec((tile_b, TEXT_DIM), lambda i: (i, 0)),         # texts (hot stream)
        pl.BlockSpec((tile_b, N_STRUCTURED), lambda i: (i, 0)),     # structured
        resident((TEXT_DIM, TEXT_EMB)),                             # w_ds
        resident((1, TEXT_EMB)),                                    # b_ds
        resident((TEXT_EMB, FC_DIM)),                               # w1_top
        resident((N_STRUCTURED, FC_DIM)),                           # w1_bot
        resident((1, FC_DIM)),                                      # b1
        resident((FC_DIM, FC_DIM)),                                 # w2
        resident((1, FC_DIM)),                                      # b2
        resident((1, FC_DIM)),                                      # w3_t
        resident((1, 1)),                                           # b3
    ]
    out_specs = pl.BlockSpec((1, tile_b), lambda i: (0, i))

    flops = 2 * b_total * (TEXT_DIM * TEXT_EMB + TEXT_EMB * FC_DIM
                           + N_STRUCTURED * FC_DIM + FC_DIM * FC_DIM + FC_DIM)
    weight_bytes = ((TEXT_DIM * TEXT_EMB + TEXT_EMB * FC_DIM + N_STRUCTURED * FC_DIM
                     + FC_DIM * FC_DIM + FC_DIM) * 2
                    + (TEXT_EMB + 2 * FC_DIM + 1) * 4)
    bytes_accessed = (b_total * TEXT_DIM * texts.dtype.itemsize
                      + b_total * N_STRUCTURED * structured.dtype.itemsize
                      + b_total * 4 + weight_bytes)

    out = pl.pallas_call(
        _model_kernel,
        out_shape=jax.ShapeDtypeStruct((1, b_total), jnp.float32),
        grid=(n_blocks,),
        in_specs=in_specs,
        out_specs=out_specs,
        compiler_params=pltpu.CompilerParams(
            dimension_semantics=("parallel",)),
        cost_estimate=pl.CostEstimate(flops=flops, transcendentals=0,
                                      bytes_accessed=bytes_accessed),
    )(texts, structured,
      prepared["w_ds"], prepared["b_ds"],
      prepared["w1_top"], prepared["w1_bot"], prepared["b1"],
      prepared["w2"], prepared["b2"],
      prepared["w3_t"], prepared["b3"])

    return out[:, :B].reshape(B, 1)


def init_params(key):
    """Deterministic init mimicking nn.Linear defaults (uniform(-1/sqrt(fan_in), ...))."""
    def linear(key, fan_in, fan_out):
        kw, kb = jax.random.split(key)
        bound = 1.0 / jnp.sqrt(fan_in)
        w = jax.random.uniform(kw, (fan_in, fan_out), jnp.float32, -bound, bound)
        b = jax.random.uniform(kb, (fan_out,), jnp.float32, -bound, bound)
        return w, b

    k0, k1, k2, k3 = jax.random.split(key, 4)
    w_ds, b_ds = linear(k0, TEXT_DIM, TEXT_EMB)
    w1, b1 = linear(k1, FC_DIM, FC_DIM)
    w2, b2 = linear(k2, FC_DIM, FC_DIM)
    w3, b3 = linear(k3, FC_DIM, 1)
    return dict(w_ds=w_ds, b_ds=b_ds, w1=w1, b1=b1,
                w2=w2, b2=b2, w3=w3, b3=b3)


def reference_forward(texts, structured, p):
    """Plain-JAX f32 reference for correctness checking."""
    t = texts @ p["w_ds"] + p["b_ds"]
    h = jnp.concatenate([t, structured], axis=1)
    h = jnp.maximum(h @ p["w1"] + p["b1"], 0.0)
    h = jnp.maximum(h @ p["w2"] + p["b2"], 0.0)
    return h @ p["w3"] + p["b3"]


if __name__ == "__main__":
    key = jax.random.PRNGKey(0)
    k_params, k_img, k_txt, k_str = jax.random.split(key, 4)

    params = init_params(k_params)
    prepared = prepare_params(params)

    B = 2
    images = jax.random.normal(k_img, (B, 3, 16, 16), jnp.float32)   # ignored (visual=False)
    texts = jax.random.normal(k_txt, (B, TEXT_DIM), jnp.float32)
    structured = jax.random.normal(k_str, (B, N_STRUCTURED), jnp.float32)

    fwd = jax.jit(model_forward)
    out = jax.block_until_ready(fwd(images, texts, structured, prepared))

    ref = reference_forward(texts, structured, params)
    assert out.shape == (B, 1), out.shape
    # bf16 matmul operands (f32 accumulation) -> loosened tolerance vs f32 reference.
    assert jnp.allclose(out, ref, atol=3e-2, rtol=3e-2), (out, ref)

    print("KERNEL_OK")
</pallas_src>

<mosaic_0001>
module attributes {stable_mosaic.version = 11 : i64} {
  func.func @_model_kernel(%arg0: i32, %arg1: memref<256x1024xf32, #tpu.memory_space<vmem>>, %arg2: memref<256x16xf32, #tpu.memory_space<vmem>>, %arg3: memref<1024x256xbf16, #tpu.memory_space<vmem>>, %arg4: memref<1x256xf32, #tpu.memory_space<vmem>>, %arg5: memref<256x272xbf16, #tpu.memory_space<vmem>>, %arg6: memref<16x272xbf16, #tpu.memory_space<vmem>>, %arg7: memref<1x272xf32, #tpu.memory_space<vmem>>, %arg8: memref<272x272xbf16, #tpu.memory_space<vmem>>, %arg9: memref<1x272xf32, #tpu.memory_space<vmem>>, %arg10: memref<1x272xbf16, #tpu.memory_space<vmem>>, %arg11: memref<1x1xf32, #tpu.memory_space<vmem>>, %arg12: memref<1x256xf32, #tpu.memory_space<vmem>>) attributes {dimension_semantics = [#tpu.dimension_semantics<parallel>], iteration_bounds = array<i64: 1>, scalar_prefetch = 0 : i64, scratch_operands = 0 : i64, tpu.core_type = #tpu.core_type<tc>, window_params = [{transform_indices = @transform_0, window_bounds = array<i64: 256, 1024>}, {transform_indices = @transform_1, window_bounds = array<i64: 256, 16>}, {pipeline_mode = #tpu.pipeline_mode<synchronous>, transform_indices = @transform_2, window_bounds = array<i64: 1024, 256>}, {pipeline_mode = #tpu.pipeline_mode<synchronous>, transform_indices = @transform_3, window_bounds = array<i64: 1, 256>}, {pipeline_mode = #tpu.pipeline_mode<synchronous>, transform_indices = @transform_4, window_bounds = array<i64: 256, 272>}, {pipeline_mode = #tpu.pipeline_mode<synchronous>, transform_indices = @transform_5, window_bounds = array<i64: 16, 272>}, {pipeline_mode = #tpu.pipeline_mode<synchronous>, transform_indices = @transform_6, window_bounds = array<i64: 1, 272>}, {pipeline_mode = #tpu.pipeline_mode<synchronous>, transform_indices = @transform_7, window_bounds = array<i64: 272, 272>}, {pipeline_mode = #tpu.pipeline_mode<synchronous>, transform_indices = @transform_8, window_bounds = array<i64: 1, 272>}, {pipeline_mode = #tpu.pipeline_mode<synchronous>, transform_indices = @transform_9, window_bounds = array<i64: 1, 272>}, {pipeline_mode = #tpu.pipeline_mode<synchronous>, transform_indices = @transform_10, window_bounds = array<i64: 1, 1>}, {transform_indices = @transform_11, window_bounds = array<i64: 1, 256>}]} {
    %c0 = arith.constant 0 : index
    %c0_0 = arith.constant 0 : index
    %0 = vector.load %arg1[%c0, %c0_0] : memref<256x1024xf32, #tpu.memory_space<vmem>>, vector<256x1024xf32>
    %1 = arith.truncf %0 : vector<256x1024xf32> to vector<256x1024xbf16>
    %c0_1 = arith.constant 0 : index
    %c0_2 = arith.constant 0 : index
    %2 = vector.load %arg2[%c0_1, %c0_2] : memref<256x16xf32, #tpu.memory_space<vmem>>, vector<256x16xf32>
    %3 = arith.truncf %2 : vector<256x16xf32> to vector<256x16xbf16>
    %c0_3 = arith.constant 0 : index
    %c0_4 = arith.constant 0 : index
    %4 = vector.load %arg3[%c0_3, %c0_4] : memref<1024x256xbf16, #tpu.memory_space<vmem>>, vector<1024x256xbf16>
    %cst = arith.constant dense<0.000000e+00> : vector<256x256xf32>
    %5 = tpu.matmul %1, %4, %cst {dimension_numbers = #tpu.dot_dimension_numbers<[1], [0], [0], [1], [0, 0, 1, 1], [], []>} : vector<256x1024xbf16>, vector<1024x256xbf16>, vector<256x256xf32> -> vector<256x256xf32>
    %c0_5 = arith.constant 0 : index
    %c0_6 = arith.constant 0 : index
    %6 = vector.load %arg4[%c0_5, %c0_6] : memref<1x256xf32, #tpu.memory_space<vmem>>, vector<1x256xf32>
    %7 = vector.broadcast %6 : vector<1x256xf32> to vector<256x256xf32>
    %8 = arith.addf %5, %7 : vector<256x256xf32>
    %9 = arith.truncf %8 : vector<256x256xf32> to vector<256x256xbf16>
    %c0_7 = arith.constant 0 : index
    %c0_8 = arith.constant 0 : index
    %10 = vector.load %arg5[%c0_7, %c0_8] : memref<256x272xbf16, #tpu.memory_space<vmem>>, vector<256x272xbf16>
    %cst_9 = arith.constant dense<0.000000e+00> : vector<256x272xf32>
    %11 = tpu.matmul %9, %10, %cst_9 {dimension_numbers = #tpu.dot_dimension_numbers<[1], [0], [0], [1], [0, 0, 1, 1], [], []>} : vector<256x256xbf16>, vector<256x272xbf16>, vector<256x272xf32> -> vector<256x272xf32>
    %c0_10 = arith.constant 0 : index
    %c0_11 = arith.constant 0 : index
    %12 = vector.load %arg6[%c0_10, %c0_11] : memref<16x272xbf16, #tpu.memory_space<vmem>>, vector<16x272xbf16>
    %cst_12 = arith.constant dense<0.000000e+00> : vector<256x272xf32>
    %13 = tpu.matmul %3, %12, %cst_12 {dimension_numbers = #tpu.dot_dimension_numbers<[1], [0], [0], [1], [0, 0, 1, 1], [], []>} : vector<256x16xbf16>, vector<16x272xbf16>, vector<256x272xf32> -> vector<256x272xf32>
    %14 = arith.addf %11, %13 : vector<256x272xf32>
    %c0_13 = arith.constant 0 : index
    %c0_14 = arith.constant 0 : index
    %15 = vector.load %arg7[%c0_13, %c0_14] : memref<1x272xf32, #tpu.memory_space<vmem>>, vector<1x272xf32>
    %16 = vector.broadcast %15 : vector<1x272xf32> to vector<256x272xf32>
    %17 = arith.addf %14, %16 : vector<256x272xf32>
    %cst_15 = arith.constant 0.000000e+00 : f32
    %18 = vector.broadcast %cst_15 : f32 to vector<256x272xf32>
    %19 = arith.maximumf %17, %18 : vector<256x272xf32>
    %20 = arith.truncf %19 : vector<256x272xf32> to vector<256x272xbf16>
    %c0_16 = arith.constant 0 : index
    %c0_17 = arith.constant 0 : index
    %21 = vector.load %arg8[%c0_16, %c0_17] : memref<272x272xbf16, #tpu.memory_space<vmem>>, vector<272x272xbf16>
    %cst_18 = arith.constant dense<0.000000e+00> : vector<256x272xf32>
    %22 = tpu.matmul %20, %21, %cst_18 {dimension_numbers = #tpu.dot_dimension_numbers<[1], [0], [0], [1], [0, 0, 1, 1], [], []>} : vector<256x272xbf16>, vector<272x272xbf16>, vector<256x272xf32> -> vector<256x272xf32>
    %c0_19 = arith.constant 0 : index
    %c0_20 = arith.constant 0 : index
    %23 = vector.load %arg9[%c0_19, %c0_20] : memref<1x272xf32, #tpu.memory_space<vmem>>, vector<1x272xf32>
    %24 = vector.broadcast %23 : vector<1x272xf32> to vector<256x272xf32>
    %25 = arith.addf %22, %24 : vector<256x272xf32>
    %cst_21 = arith.constant 0.000000e+00 : f32
    %26 = vector.broadcast %cst_21 : f32 to vector<256x272xf32>
    %27 = arith.maximumf %25, %26 : vector<256x272xf32>
    %28 = arith.truncf %27 : vector<256x272xf32> to vector<256x272xbf16>
    %c0_22 = arith.constant 0 : index
    %c0_23 = arith.constant 0 : index
    %29 = vector.load %arg10[%c0_22, %c0_23] : memref<1x272xbf16, #tpu.memory_space<vmem>>, vector<1x272xbf16>
    %cst_24 = arith.constant dense<0.000000e+00> : vector<1x256xf32>
    %30 = tpu.matmul %29, %28, %cst_24 {dimension_numbers = #tpu.dot_dimension_numbers<[1], [1], [0], [0], [0, 0, 1, 0], [], []>} : vector<1x272xbf16>, vector<256x272xbf16>, vector<1x256xf32> -> vector<1x256xf32>
    %c0_25 = arith.constant 0 : index
    %c0_26 = arith.constant 0 : index
    %31 = vector.load %arg11[%c0_25, %c0_26] : memref<1x1xf32, #tpu.memory_space<vmem>>, vector<1x1xf32>
    %32 = vector.broadcast %31 : vector<1x1xf32> to vector<1x256xf32>
    %33 = arith.addf %30, %32 : vector<1x256xf32>
    %c0_27 = arith.constant 0 : index
    %c0_28 = arith.constant 0 : index
    %34 = vector.load %arg12[%c0_27, %c0_28] : memref<1x256xf32, #tpu.memory_space<vmem>>, vector<1x256xf32>
    tpu.vector_store %arg12[%c0_27, %c0_28], %33 {strides = array<i32>} : memref<1x256xf32, #tpu.memory_space<vmem>>, vector<1x256xf32>,
    return
  }
  func.func @transform_0(%arg0: i32) -> (i32, i32) {
    %c0_i32 = arith.constant 0 : i32
    %c0_i32_0 = arith.constant 0 : i32
    return %arg0, %c0_i32 : i32, i32
  }
  func.func @transform_1(%arg0: i32) -> (i32, i32) {
    %c0_i32 = arith.constant 0 : i32
    %c0_i32_0 = arith.constant 0 : i32
    return %arg0, %c0_i32 : i32, i32
  }
  func.func @transform_2(%arg0: i32) -> (i32, i32) {
    %c0_i32 = arith.constant 0 : i32
    %c0_i32_0 = arith.constant 0 : i32
    %c0_i32_1 = arith.constant 0 : i32
    return %c0_i32, %c0_i32_0 : i32, i32
  }
  func.func @transform_3(%arg0: i32) -> (i32, i32) {
    %c0_i32 = arith.constant 0 : i32
    %c0_i32_0 = arith.constant 0 : i32
    %c0_i32_1 = arith.constant 0 : i32
    return %c0_i32, %c0_i32_0 : i32, i32
  }
  func.func @transform_4(%arg0: i32) -> (i32, i32) {
    %c0_i32 = arith.constant 0 : i32
    %c0_i32_0 = arith.constant 0 : i32
    %c0_i32_1 = arith.constant 0 : i32
    return %c0_i32, %c0_i32_0 : i32, i32
  }
  func.func @transform_5(%arg0: i32) -> (i32, i32) {
    %c0_i32 = arith.constant 0 : i32
    %c0_i32_0 = arith.constant 0 : i32
    %c0_i32_1 = arith.constant 0 : i32
    return %c0_i32, %c0_i32_0 : i32, i32
  }
  func.func @transform_6(%arg0: i32) -> (i32, i32) {
    %c0_i32 = arith.constant 0 : i32
    %c0_i32_0 = arith.constant 0 : i32
    %c0_i32_1 = arith.constant 0 : i32
    return %c0_i32, %c0_i32_0 : i32, i32
  }
  func.func @transform_7(%arg0: i32) -> (i32, i32) {
    %c0_i32 = arith.constant 0 : i32
    %c0_i32_0 = arith.constant 0 : i32
    %c0_i32_1 = arith.constant 0 : i32
    return %c0_i32, %c0_i32_0 : i32, i32
  }
  func.func @transform_8(%arg0: i32) -> (i32, i32) {
    %c0_i32 = arith.constant 0 : i32
    %c0_i32_0 = arith.constant 0 : i32
    %c0_i32_1 = arith.constant 0 : i32
    return %c0_i32, %c0_i32_0 : i32, i32
  }
  func.func @transform_9(%arg0: i32) -> (i32, i32) {
    %c0_i32 = arith.constant 0 : i32
    %c0_i32_0 = arith.constant 0 : i32
    %c0_i32_1 = arith.constant 0 : i32
    return %c0_i32, %c0_i32_0 : i32, i32
  }
  func.func @transform_10(%arg0: i32) -> (i32, i32) {
    %c0_i32 = arith.constant 0 : i32
    %c0_i32_0 = arith.constant 0 : i32
    %c0_i32_1 = arith.constant 0 : i32
    return %c0_i32, %c0_i32_0 : i32, i32
  }
  func.func @transform_11(%arg0: i32) -> (i32, i32) {
    %c0_i32 = arith.constant 0 : i32
    %c0_i32_0 = arith.constant 0 : i32
    return %c0_i32, %arg0 : i32, i32
  }
}

</mosaic_0001>

<llo_original>
// kernel: model_forward.1
$region0: #{model_forward.1}
  #allocation0 [shape = 'u32[]', space=smem, size = 0x4, offset = 0x4, fixed_abs, tag = 'smem constant byte address 0x4 - core index']
  #allocation1 [shape = 'u32[72,128]{1,0:T(1,128)}', space=vmem, size = 0x9000, scoped, tag = 'internal scratch']
  #allocation2 [shape = 'f32[1,1]{1,0:T(1,128)S(1)}', space=vmem, size = 0x200, scoped, tag = 'scoped memory for model_forward.1']
  %s0 = inlined_call_operand.vmem [shape: f32[2,1024], index: 0, kind: input, shape index: {}]
  %s1 = inlined_call_operand.vmem [shape: f32[2,16], index: 1, kind: input, shape index: {}]
  %s2 = inlined_call_operand.hbm [shape: bf16[1024,256], index: 2, kind: input, shape index: {}]
  %s3 = inlined_call_operand.vmem [shape: f32[1,256], index: 3, kind: input, shape index: {}]
  %s4 = inlined_call_operand.vmem [shape: bf16[256,272], index: 4, kind: input, shape index: {}]
  %s5 = inlined_call_operand.vmem [shape: bf16[16,272], index: 5, kind: input, shape index: {}]
  %s6 = inlined_call_operand.vmem [shape: f32[1,272], index: 6, kind: input, shape index: {}]
  %s7 = inlined_call_operand.vmem [shape: bf16[272,272], index: 7, kind: input, shape index: {}]
  %s8 = inlined_call_operand.vmem [shape: f32[1,272], index: 8, kind: input, shape index: {}]
  %s9 = inlined_call_operand.vmem [shape: bf16[1,272], index: 9, kind: input, shape index: {}]
  %s10 = inlined_call_operand.<no memory space> [shape: f32[1,1], index: 10, kind: input, shape index: {}]
  %s11 = inlined_call_operand.vmem [shape: f32[1,256], index: 11, kind: output, shape index: {}]
  %s12 = sld [smem:[#allocation0]]
  $region58: #{model_forward.1} parent=0
    _
  %s14 = ssub.s32 1, %s12
  %s15 = scalar_select 0, %s14, %s12
  %v16 = vstv %s10
  %17 = vst [vmem:[#allocation2] sm:$0x1] %v16
  $region1: #{model_forward.1} parent=0
    #allocation3 [shape = 'u8[524288]{0}', space=vmem, size = 0x80000, scoped, tag = 'input window, operand 2, single buffered']
    #allocation4 [shape = 's32[1]{0}', space=sflag, size = 0x4, scoped, tag = 'scoped memory for model_forward.1']
    %18 = vsyncpa [#allocation4], 0
    // Predicated region
    $region2: #{model_forward.1} parent=1 // pred_check
      _
    $region3: #{model_forward.1} parent=1 // pred_check_branch
      %20 = sbr.rel (0) target = $region5
    $region4: #{model_forward.1} parent=1 // pred_region
      _
    $region5: #{model_forward.1} parent=1 // pred_fallthru
      _
    // Predicated region
    $region6: #{model_forward.1} parent=1 // pred_check
      _
    $region7: #{model_forward.1} parent=1 // pred_check_branch
      %22 = sbr.rel (0) target = $region9
    $region8: #{model_forward.1} parent=1 // pred_region
      _
    $region9: #{model_forward.1} parent=1 // pred_fallthru
      _
    // Predicated region
    $region10: #{model_forward.1} parent=1 // pred_check
      _
    $region11: #{model_forward.1} parent=1 // pred_check_branch
      %24 = sbr.rel (0) target = $region13
    $region12: #{model_forward.1} parent=1 // pred_region
      %26 = vsyncadd [#allocation4], 0
      %s27 = sshll.u32 %s2, 4
      %s28 = int_to_ptr.hbm [resolvable:$true] %s27
      %s29 = sshll.u32 [#allocation3], 4
      %s30 = int_to_ptr.vmem [resolvable:$true] %s29
      %35 = dma.hbm_to_vmem [thread:$0]  %s28, 16384, %s30, [#allocation4], 128, 128, 8
    $region13: #{model_forward.1} parent=1 // pred_fallthru
      _
    // Predicated region
    $region14: #{model_forward.1} parent=1 // pred_check
      _
    $region15: #{model_forward.1} parent=1 // pred_check_branch
      %37 = sbr.rel (0) target = $region17
    $region16: #{model_forward.1} parent=1 // pred_region
      _
    $region17: #{model_forward.1} parent=1 // pred_fallthru
      _
    // Predicated region
    $region18: #{model_forward.1} parent=1 // pred_check
      _
    $region19: #{model_forward.1} parent=1 // pred_check_branch
      %39 = sbr.rel (0) target = $region21
    $region20: #{model_forward.1} parent=1 // pred_region
      _
    $region21: #{model_forward.1} parent=1 // pred_fallthru
      _
    // Predicated region
    $region22: #{model_forward.1} parent=1 // pred_check
      _
    $region23: #{model_forward.1} parent=1 // pred_check_branch
      %41 = sbr.rel (0) target = $region25
    $region24: #{model_forward.1} parent=1 // pred_region
      _
    $region25: #{model_forward.1} parent=1 // pred_fallthru
      _
    // Predicated region
    $region26: #{model_forward.1} parent=1 // pred_check
      _
    $region27: #{model_forward.1} parent=1 // pred_check_branch
      %43 = sbr.rel (0) target = $region29
    $region28: #{model_forward.1} parent=1 // pred_region
      _
    $region29: #{model_forward.1} parent=1 // pred_fallthru
      _
    // Predicated region
    $region30: #{model_forward.1} parent=1 // pred_check
      _
    $region31: #{model_forward.1} parent=1 // pred_check_branch
      %45 = sbr.rel (0) target = $region33
    $region32: #{model_forward.1} parent=1 // pred_region
      _
    $region33: #{model_forward.1} parent=1 // pred_fallthru
      _
    // Predicated region
    $region34: #{model_forward.1} parent=1 // pred_check
      _
    $region35: #{model_forward.1} parent=1 // pred_check_branch
      %47 = sbr.rel (0) target = $region37
    $region36: #{model_forward.1} parent=1 // pred_region
      _
    $region37: #{model_forward.1} parent=1 // pred_fallthru
      _
    // Predicated region
    $region38: #{model_forward.1} parent=1 // pred_check
      _
    $region39: #{model_forward.1} parent=1 // pred_check_branch
      %49 = sbr.rel (0) target = $region41
    $region40: #{model_forward.1} parent=1 // pred_region
      _
    $region41: #{model_forward.1} parent=1 // pred_fallthru
      _
    // Predicated region
    $region42: #{model_forward.1} parent=1 // pred_check
      _
    $region43: #{model_forward.1} parent=1 // pred_check_branch
      %51 = sbr.rel (0) target = $region45
    $region44: #{model_forward.1} parent=1 // pred_region
      _
    $region45: #{model_forward.1} parent=1 // pred_fallthru
      _
    // Predicated region
    $region46: #{model_forward.1} parent=1 // pred_check
      _
    $region47: #{model_forward.1} parent=1 // pred_check_branch
      %53 = sbr.rel (0) target = $region49
    $region48: #{model_forward.1} parent=1 // pred_region
      %55 = dma.done [#allocation4], 16384
    $region49: #{model_forward.1} parent=1 // pred_fallthru
      _
    %v57 = vld [vmem:[%s0] sm:$0xff]
    %v58 = vld [vmem:[%s0 + $0x8] sm:$0xff]
    %v59 = vld [vmem:[%s0 + $0x10] sm:$0xff]
    %v60 = vld [vmem:[%s0 + $0x18] sm:$0xff]
    %v61 = vld [vmem:[%s0 + $0x20] sm:$0xff]
    %v62 = vld [vmem:[%s0 + $0x28] sm:$0xff]
    %v63 = vld [vmem:[%s0 + $0x30] sm:$0xff]
    %v64 = vld [vmem:[%s0 + $0x38] sm:$0xff]
    %v65 = vld [vmem:[%s0 + $0x40] sm:$0xff]
    %v66 = vld [vmem:[%s0 + $0x48] sm:$0xff]
    %v67 = vld [vmem:[%s0 + $0x50] sm:$0xff]
    %v68 = vld [vmem:[%s0 + $0x58] sm:$0xff]
    %v69 = vld [vmem:[%s0 + $0x60] sm:$0xff]
    %v70 = vld [vmem:[%s0 + $0x68] sm:$0xff]
    %v71 = vld [vmem:[%s0 + $0x70] sm:$0xff]
    %v72 = vld [vmem:[%s0 + $0x78] sm:$0xff]
    %v73 = vld [vmem:[%s0 + $0x80] sm:$0xff]
    %v74 = vld [vmem:[%s0 + $0x88] sm:$0xff]
    %v75 = vld [vmem:[%s0 + $0x90] sm:$0xff]
    %v76 = vld [vmem:[%s0 + $0x98] sm:$0xff]
    %v77 = vld [vmem:[%s0 + $0xa0] sm:$0xff]
    %v78 = vld [vmem:[%s0 + $0xa8] sm:$0xff]
    %v79 = vld [vmem:[%s0 + $0xb0] sm:$0xff]
    %v80 = vld [vmem:[%s0 + $0xb8] sm:$0xff]
    %v81 = vld [vmem:[%s0 + $0xc0] sm:$0xff]
    %v82 = vld [vmem:[%s0 + $0xc8] sm:$0xff]
    %v83 = vld [vmem:[%s0 + $0xd0] sm:$0xff]
    %v84 = vld [vmem:[%s0 + $0xd8] sm:$0xff]
    %v85 = vld [vmem:[%s0 + $0xe0] sm:$0xff]
    %v86 = vld [vmem:[%s0 + $0xe8] sm:$0xff]
    %v87 = vld [vmem:[%s0 + $0xf0] sm:$0xff]
    %v88 = vld [vmem:[%s0 + $0xf8] sm:$0xff]
    %v89 = vld [vmem:[%s0 + $0x100] sm:$0xff]
    %v90 = vld [vmem:[%s0 + $0x108] sm:$0xff]
    %v91 = vld [vmem:[%s0 + $0x110] sm:$0xff]
    %v92 = vld [vmem:[%s0 + $0x118] sm:$0xff]
    %v93 = vld [vmem:[%s0 + $0x120] sm:$0xff]
    %v94 = vld [vmem:[%s0 + $0x128] sm:$0xff]
    %v95 = vld [vmem:[%s0 + $0x130] sm:$0xff]
    %v96 = vld [vmem:[%s0 + $0x138] sm:$0xff]
    %v97 = vld [vmem:[%s0 + $0x140] sm:$0xff]
    %v98 = vld [vmem:[%s0 + $0x148] sm:$0xff]
    %v99 = vld [vmem:[%s0 + $0x150] sm:$0xff]
    %v100 = vld [vmem:[%s0 + $0x158] sm:$0xff]
    %v101 = vld [vmem:[%s0 + $0x160] sm:$0xff]
    %v102 = vld [vmem:[%s0 + $0x168] sm:$0xff]
    %v103 = vld [vmem:[%s0 + $0x170] sm:$0xff]
    %v104 = vld [vmem:[%s0 + $0x178] sm:$0xff]
    %v105 = vld [vmem:[%s0 + $0x180] sm:$0xff]
    %v106 = vld [vmem:[%s0 + $0x188] sm:$0xff]
    %v107 = vld [vmem:[%s0 + $0x190] sm:$0xff]
    %v108 = vld [vmem:[%s0 + $0x198] sm:$0xff]
    %v109 = vld [vmem:[%s0 + $0x1a0] sm:$0xff]
    %v110 = vld [vmem:[%s0 + $0x1a8] sm:$0xff]
    %v111 = vld [vmem:[%s0 + $0x1b0] sm:$0xff]
    %v112 = vld [vmem:[%s0 + $0x1b8] sm:$0xff]
    %v113 = vld [vmem:[%s0 + $0x1c0] sm:$0xff]
    %v114 = vld [vmem:[%s0 + $0x1c8] sm:$0xff]
    %v115 = vld [vmem:[%s0 + $0x1d0] sm:$0xff]
    %v116 = vld [vmem:[%s0 + $0x1d8] sm:$0xff]
    %v117 = vld [vmem:[%s0 + $0x1e0] sm:$0xff]
    %v118 = vld [vmem:[%s0 + $0x1e8] sm:$0xff]
    %v119 = vld [vmem:[%s0 + $0x1f0] sm:$0xff]
    %v120 = vld [vmem:[%s0 + $0x1f8] sm:$0xff]
    %v121 = vld [vmem:[%s0 + $0x200] sm:$0xff]
    %v122 = vld [vmem:[%s0 + $0x208] sm:$0xff]
    %v123 = vld [vmem:[%s0 + $0x210] sm:$0xff]
    %v124 = vld [vmem:[%s0 + $0x218] sm:$0xff]
    %v125 = vld [vmem:[%s0 + $0x220] sm:$0xff]
    %v126 = vld [vmem:[%s0 + $0x228] sm:$0xff]
    %v127 = vld [vmem:[%s0 + $0x230] sm:$0xff]
    %v128 = vld [vmem:[%s0 + $0x238] sm:$0xff]
    %v129 = vld [vmem:[%s0 + $0x240] sm:$0xff]
    %v130 = vld [vmem:[%s0 + $0x248] sm:$0xff]
    %v131 = vld [vmem:[%s0 + $0x250] sm:$0xff]
    %v132 = vld [vmem:[%s0 + $0x258] sm:$0xff]
    %v133 = vld [vmem:[%s0 + $0x260] sm:$0xff]
    %v134 = vld [vmem:[%s0 + $0x268] sm:$0xff]
    %v135 = vld [vmem:[%s0 + $0x270] sm:$0xff]
    %v136 = vld [vmem:[%s0 + $0x278] sm:$0xff]
    %v137 = vld [vmem:[%s0 + $0x280] sm:$0xff]
    %v138 = vld [vmem:[%s0 + $0x288] sm:$0xff]
    %v139 = vld [vmem:[%s0 + $0x290] sm:$0xff]
    %v140 = vld [vmem:[%s0 + $0x298] sm:$0xff]
    %v141 = vld [vmem:[%s0 + $0x2a0] sm:$0xff]
    %v142 = vld [vmem:[%s0 + $0x2a8] sm:$0xff]
    %v143 = vld [vmem:[%s0 + $0x2b0] sm:$0xff]
    %v144 = vld [vmem:[%s0 + $0x2b8] sm:$0xff]
    %v145 = vld [vmem:[%s0 + $0x2c0] sm:$0xff]
    %v146 = vld [vmem:[%s0 + $0x2c8] sm:$0xff]
    %v147 = vld [vmem:[%s0 + $0x2d0] sm:$0xff]
    %v148 = vld [vmem:[%s0 + $0x2d8] sm:$0xff]
    %v149 = vld [vmem:[%s0 + $0x2e0] sm:$0xff]
    %v150 = vld [vmem:[%s0 + $0x2e8] sm:$0xff]
    %v151 = vld [vmem:[%s0 + $0x2f0] sm:$0xff]
    %v152 = vld [vmem:[%s0 + $0x2f8] sm:$0xff]
    %v153 = vld [vmem:[%s0 + $0x300] sm:$0xff]
    %v154 = vld [vmem:[%s0 + $0x308] sm:$0xff]
    %v155 = vld [vmem:[%s0 + $0x310] sm:$0xff]
    %v156 = vld [vmem:[%s0 + $0x318] sm:$0xff]
    %v157 = vld [vmem:[%s0 + $0x320] sm:$0xff]
    %v158 = vld [vmem:[%s0 + $0x328] sm:$0xff]
    %v159 = vld [vmem:[%s0 + $0x330] sm:$0xff]
    %v160 = vld [vmem:[%s0 + $0x338] sm:$0xff]
    %v161 = vld [vmem:[%s0 + $0x340] sm:$0xff]
    %v162 = vld [vmem:[%s0 + $0x348] sm:$0xff]
    %v163 = vld [vmem:[%s0 + $0x350] sm:$0xff]
    %v164 = vld [vmem:[%s0 + $0x358] sm:$0xff]
    %v165 = vld [vmem:[%s0 + $0x360] sm:$0xff]
    %v166 = vld [vmem:[%s0 + $0x368] sm:$0xff]
    %v167 = vld [vmem:[%s0 + $0x370] sm:$0xff]
    %v168 = vld [vmem:[%s0 + $0x378] sm:$0xff]
    %v169 = vld [vmem:[%s0 + $0x380] sm:$0xff]
    %v170 = vld [vmem:[%s0 + $0x388] sm:$0xff]
    %v171 = vld [vmem:[%s0 + $0x390] sm:$0xff]
    %v172 = vld [vmem:[%s0 + $0x398] sm:$0xff]
    %v173 = vld [vmem:[%s0 + $0x3a0] sm:$0xff]
    %v174 = vld [vmem:[%s0 + $0x3a8] sm:$0xff]
    %v175 = vld [vmem:[%s0 + $0x3b0] sm:$0xff]
    %v176 = vld [vmem:[%s0 + $0x3b8] sm:$0xff]
    %v177 = vld [vmem:[%s0 + $0x3c0] sm:$0xff]
    %v178 = vld [vmem:[%s0 + $0x3c8] sm:$0xff]
    %v179 = vld [vmem:[%s0 + $0x3d0] sm:$0xff]
    %v180 = vld [vmem:[%s0 + $0x3d8] sm:$0xff]
    %v181 = vld [vmem:[%s0 + $0x3e0] sm:$0xff]
    %v182 = vld [vmem:[%s0 + $0x3e8] sm:$0xff]
    %v183 = vld [vmem:[%s0 + $0x3f0] sm:$0xff]
    %v184 = vld [vmem:[%s0 + $0x3f8] sm:$0xff]
    %v185 = vld [vmem:[%s0 + $0x400] sm:$0xff]
    %v186 = vld [vmem:[%s0 + $0x408] sm:$0xff]
    %v187 = vld [vmem:[%s0 + $0x410] sm:$0xff]
    %v188 = vld [vmem:[%s0 + $0x418] sm:$0xff]
    %v189 = vld [vmem:[%s0 + $0x420] sm:$0xff]
    %v190 = vld [vmem:[%s0 + $0x428] sm:$0xff]
    %v191 = vld [vmem:[%s0 + $0x430] sm:$0xff]
    %v192 = vld [vmem:[%s0 + $0x438] sm:$0xff]
    %v193 = vld [vmem:[%s0 + $0x440] sm:$0xff]
    %v194 = vld [vmem:[%s0 + $0x448] sm:$0xff]
    %v195 = vld [vmem:[%s0 + $0x450] sm:$0xff]
    %v196 = vld [vmem:[%s0 + $0x458] sm:$0xff]
    %v197 = vld [vmem:[%s0 + $0x460] sm:$0xff]
    %v198 = vld [vmem:[%s0 + $0x468] sm:$0xff]
    %v199 = vld [vmem:[%s0 + $0x470] sm:$0xff]
    %v200 = vld [vmem:[%s0 + $0x478] sm:$0xff]
    %v201 = vld [vmem:[%s0 + $0x480] sm:$0xff]
    %v202 = vld [vmem:[%s0 + $0x488] sm:$0xff]
    %v203 = vld [vmem:[%s0 + $0x490] sm:$0xff]
    %v204 = vld [vmem:[%s0 + $0x498] sm:$0xff]
    %v205 = vld [vmem:[%s0 + $0x4a0] sm:$0xff]
    %v206 = vld [vmem:[%s0 + $0x4a8] sm:$0xff]
    %v207 = vld [vmem:[%s0 + $0x4b0] sm:$0xff]
    %v208 = vld [vmem:[%s0 + $0x4b8] sm:$0xff]
    %v209 = vld [vmem:[%s0 + $0x4c0] sm:$0xff]
    %v210 = vld [vmem:[%s0 + $0x4c8] sm:$0xff]
    %v211 = vld [vmem:[%s0 + $0x4d0] sm:$0xff]
    %v212 = vld [vmem:[%s0 + $0x4d8] sm:$0xff]
    %v213 = vld [vmem:[%s0 + $0x4e0] sm:$0xff]
    %v214 = vld [vmem:[%s0 + $0x4e8] sm:$0xff]
    %v215 = vld [vmem:[%s0 + $0x4f0] sm:$0xff]
    %v216 = vld [vmem:[%s0 + $0x4f8] sm:$0xff]
    %v217 = vld [vmem:[%s0 + $0x500] sm:$0xff]
    %v218 = vld [vmem:[%s0 + $0x508] sm:$0xff]
    %v219 = vld [vmem:[%s0 + $0x510] sm:$0xff]
    %v220 = vld [vmem:[%s0 + $0x518] sm:$0xff]
    %v221 = vld [vmem:[%s0 + $0x520] sm:$0xff]
    %v222 = vld [vmem:[%s0 + $0x528] sm:$0xff]
    %v223 = vld [vmem:[%s0 + $0x530] sm:$0xff]
    %v224 = vld [vmem:[%s0 + $0x538] sm:$0xff]
    %v225 = vld [vmem:[%s0 + $0x540] sm:$0xff]
    %v226 = vld [vmem:[%s0 + $0x548] sm:$0xff]
    %v227 = vld [vmem:[%s0 + $0x550] sm:$0xff]
    %v228 = vld [vmem:[%s0 + $0x558] sm:$0xff]
    %v229 = vld [vmem:[%s0 + $0x560] sm:$0xff]
    %v230 = vld [vmem:[%s0 + $0x568] sm:$0xff]
    %v231 = vld [vmem:[%s0 + $0x570] sm:$0xff]
    %v232 = vld [vmem:[%s0 + $0x578] sm:$0xff]
    %v233 = vld [vmem:[%s0 + $0x580] sm:$0xff]
    %v234 = vld [vmem:[%s0 + $0x588] sm:$0xff]
    %v235 = vld [vmem:[%s0 + $0x590] sm:$0xff]
    %v236 = vld [vmem:[%s0 + $0x598] sm:$0xff]
    %v237 = vld [vmem:[%s0 + $0x5a0] sm:$0xff]
    %v238 = vld [vmem:[%s0 + $0x5a8] sm:$0xff]
    %v239 = vld [vmem:[%s0 + $0x5b0] sm:$0xff]
    %v240 = vld [vmem:[%s0 + $0x5b8] sm:$0xff]
    %v241 = vld [vmem:[%s0 + $0x5c0] sm:$0xff]
    %v242 = vld [vmem:[%s0 + $0x5c8] sm:$0xff]
    %v243 = vld [vmem:[%s0 + $0x5d0] sm:$0xff]
    %v244 = vld [vmem:[%s0 + $0x5d8] sm:$0xff]
    %v245 = vld [vmem:[%s0 + $0x5e0] sm:$0xff]
    %v246 = vld [vmem:[%s0 + $0x5e8] sm:$0xff]
    %v247 = vld [vmem:[%s0 + $0x5f0] sm:$0xff]
    %v248 = vld [vmem:[%s0 + $0x5f8] sm:$0xff]
    %v249 = vld [vmem:[%s0 + $0x600] sm:$0xff]
    %v250 = vld [vmem:[%s0 + $0x608] sm:$0xff]
    %v251 = vld [vmem:[%s0 + $0x610] sm:$0xff]
    %v252 = vld [vmem:[%s0 + $0x618] sm:$0xff]
    %v253 = vld [vmem:[%s0 + $0x620] sm:$0xff]
    %v254 = vld [vmem:[%s0 + $0x628] sm:$0xff]
    %v255 = vld [vmem:[%s0 + $0x630] sm:$0xff]
    %v256 = vld [vmem:[%s0 + $0x638] sm:$0xff]
    %v257 = vld [vmem:[%s0 + $0x640] sm:$0xff]
    %v258 = vld [vmem:[%s0 + $0x648] sm:$0xff]
    %v259 = vld [vmem:[%s0 + $0x650] sm:$0xff]
    %v260 = vld [vmem:[%s0 + $0x658] sm:$0xff]
    %v261 = vld [vmem:[%s0 + $0x660] sm:$0xff]
    %v262 = vld [vmem:[%s0 + $0x668] sm:$0xff]
    %v263 = vld [vmem:[%s0 + $0x670] sm:$0xff]
    %v264 = vld [vmem:[%s0 + $0x678] sm:$0xff]
    %v265 = vld [vmem:[%s0 + $0x680] sm:$0xff]
    %v266 = vld [vmem:[%s0 + $0x688] sm:$0xff]
    %v267 = vld [vmem:[%s0 + $0x690] sm:$0xff]
    %v268 = vld [vmem:[%s0 + $0x698] sm:$0xff]
    %v269 = vld [vmem:[%s0 + $0x6a0] sm:$0xff]
    %v270 = vld [vmem:[%s0 + $0x6a8] sm:$0xff]
    %v271 = vld [vmem:[%s0 + $0x6b0] sm:$0xff]
    %v272 = vld [vmem:[%s0 + $0x6b8] sm:$0xff]
    %v273 = vld [vmem:[%s0 + $0x6c0] sm:$0xff]
    %v274 = vld [vmem:[%s0 + $0x6c8] sm:$0xff]
    %v275 = vld [vmem:[%s0 + $0x6d0] sm:$0xff]
    %v276 = vld [vmem:[%s0 + $0x6d8] sm:$0xff]
    %v277 = vld [vmem:[%s0 + $0x6e0] sm:$0xff]
    %v278 = vld [vmem:[%s0 + $0x6e8] sm:$0xff]
    %v279 = vld [vmem:[%s0 + $0x6f0] sm:$0xff]
    %v280 = vld [vmem:[%s0 + $0x6f8] sm:$0xff]
    %v281 = vld [vmem:[%s0 + $0x700] sm:$0xff]
    %v282 = vld [vmem:[%s0 + $0x708] sm:$0xff]
    %v283 = vld [vmem:[%s0 + $0x710] sm:$0xff]
    %v284 = vld [vmem:[%s0 + $0x718] sm:$0xff]
    %v285 = vld [vmem:[%s0 + $0x720] sm:$0xff]
    %v286 = vld [vmem:[%s0 + $0x728] sm:$0xff]
    %v287 = vld [vmem:[%s0 + $0x730] sm:$0xff]
    %v288 = vld [vmem:[%s0 + $0x738] sm:$0xff]
    %v289 = vld [vmem:[%s0 + $0x740] sm:$0xff]
    %v290 = vld [vmem:[%s0 + $0x748] sm:$0xff]
    %v291 = vld [vmem:[%s0 + $0x750] sm:$0xff]
    %v292 = vld [vmem:[%s0 + $0x758] sm:$0xff]
    %v293 = vld [vmem:[%s0 + $0x760] sm:$0xff]
    %v294 = vld [vmem:[%s0 + $0x768] sm:$0xff]
    %v295 = vld [vmem:[%s0 + $0x770] sm:$0xff]
    %v296 = vld [vmem:[%s0 + $0x778] sm:$0xff]
    %v297 = vld [vmem:[%s0 + $0x780] sm:$0xff]
    %v298 = vld [vmem:[%s0 + $0x788] sm:$0xff]
    %v299 = vld [vmem:[%s0 + $0x790] sm:$0xff]
    %v300 = vld [vmem:[%s0 + $0x798] sm:$0xff]
    %v301 = vld [vmem:[%s0 + $0x7a0] sm:$0xff]
    %v302 = vld [vmem:[%s0 + $0x7a8] sm:$0xff]
    %v303 = vld [vmem:[%s0 + $0x7b0] sm:$0xff]
    %v304 = vld [vmem:[%s0 + $0x7b8] sm:$0xff]
    %v305 = vld [vmem:[%s0 + $0x7c0] sm:$0xff]
    %v306 = vld [vmem:[%s0 + $0x7c8] sm:$0xff]
    %v307 = vld [vmem:[%s0 + $0x7d0] sm:$0xff]
    %v308 = vld [vmem:[%s0 + $0x7d8] sm:$0xff]
    %v309 = vld [vmem:[%s0 + $0x7e0] sm:$0xff]
    %v310 = vld [vmem:[%s0 + $0x7e8] sm:$0xff]
    %v311 = vld [vmem:[%s0 + $0x7f0] sm:$0xff]
    %v312 = vld [vmem:[%s0 + $0x7f8] sm:$0xff]
    %569 = vst [vmem:[#allocation1] ss:$4 sm:$0xff] %v57
    %s570 = scalar_lea.vmem [#allocation1], 1
    %571 = vst [vmem:[%s570] ss:$4 sm:$0xff] %v59
    %s572 = scalar_lea.vmem [#allocation1], 2
    %573 = vst [vmem:[%s572] ss:$4 sm:$0xff] %v61
    %s574 = scalar_lea.vmem [#allocation1], 3
    %575 = vst [vmem:[%s574] ss:$4 sm:$0xff] %v63
    %s576 = scalar_lea.vmem [#allocation1], 32
    %577 = vst [vmem:[%s576] ss:$4 sm:$0xff] %v58
    %s578 = scalar_lea.vmem [#allocation1], 33
    %579 = vst [vmem:[%s578] ss:$4 sm:$0xff] %v60
    %s580 = scalar_lea.vmem [#allocation1], 34
    %581 = vst [vmem:[%s580] ss:$4 sm:$0xff] %v62
    %s582 = scalar_lea.vmem [#allocation1], 35
    %583 = vst [vmem:[%s582] ss:$4 sm:$0xff] %v64
    %v584 = vld.sshfl [vmem:[#allocation1] sm:$0xff pattern:$0x73625140]
    %v585 = vld.sshfl [vmem:[#allocation1 + $0x8] sm:$0xff pattern:$0x73625140]
    %v586 = vld.sshfl [vmem:[#allocation1 + $0x10] sm:$0xff pattern:$0x73625140]
    %v587 = vld.sshfl [vmem:[#allocation1 + $0x18] sm:$0xff pattern:$0x73625140]
    %v588 = vld.sshfl [vmem:[#allocation1 + $0x20] sm:$0xff pattern:$0x73625140]
    %v589 = vld.sshfl [vmem:[#allocation1 + $0x28] sm:$0xff pattern:$0x73625140]
    %v590 = vld.sshfl [vmem:[#allocation1 + $0x30] sm:$0xff pattern:$0x73625140]
    %v591 = vld.sshfl [vmem:[#allocation1 + $0x38] sm:$0xff pattern:$0x73625140]
    %592 = vst [vmem:[#allocation1] ss:$4 sm:$0xff] %v65
    %593 = vst [vmem:[%s570] ss:$4 sm:$0xff] %v67
    %594 = vst [vmem:[%s572] ss:$4 sm:$0xff] %v69
    %595 = vst [vmem:[%s574] ss:$4 sm:$0xff] %v71
    %596 = vst [vmem:[%s576] ss:$4 sm:$0xff] %v66
    %597 = vst [vmem:[%s578] ss:$4 sm:$0xff] %v68
    %598 = vst [vmem:[%s580] ss:$4 sm:$0xff] %v70
    %599 = vst [vmem:[%s582] ss:$4 sm:$0xff] %v72
    %v600 = vld.sshfl [vmem:[#allocation1] sm:$0xff pattern:$0x73625140]
    %v601 = vld.sshfl [vmem:[#allocation1 + $0x8] sm:$0xff pattern:$0x73625140]
    %v602 = vld.sshfl [vmem:[#allocation1 + $0x10] sm:$0xff pattern:$0x73625140]
    %v603 = vld.sshfl [vmem:[#allocation1 + $0x18] sm:$0xff pattern:$0x73625140]
    %v604 = vld.sshfl [vmem:[#allocation1 + $0x20] sm:$0xff pattern:$0x73625140]
    %v605 = vld.sshfl [vmem:[#allocation1 + $0x28] sm:$0xff pattern:$0x73625140]
    %v606 = vld.sshfl [vmem:[#allocation1 + $0x30] sm:$0xff pattern:$0x73625140]
    %v607 = vld.sshfl [vmem:[#allocation1 + $0x38] sm:$0xff pattern:$0x73625140]
    %608 = vst [vmem:[#allocation1] ss:$4 sm:$0xff] %v73
    %609 = vst [vmem:[%s570] ss:$4 sm:$0xff] %v75
    %610 = vst [vmem:[%s572] ss:$4 sm:$0xff] %v77
    %611 = vst [vmem:[%s574] ss:$4 sm:$0xff] %v79
    %612 = vst [vmem:[%s576] ss:$4 sm:$0xff] %v74
    %613 = vst [vmem:[%s578] ss:$4 sm:$0xff] %v76
    %614 = vst [vmem:[%s580] ss:$4 sm:$0xff] %v78
    %615 = vst [vmem:[%s582] ss:$4 sm:$0xff] %v80
    %v616 = vld.sshfl [vmem:[#allocation1] sm:$0xff pattern:$0x73625140]
    %v617 = vld.sshfl [vmem:[#allocation1 + $0x8] sm:$0xff pattern:$0x73625140]
    %v618 = vld.sshfl [vmem:[#allocation1 + $0x10] sm:$0xff pattern:$0x73625140]
    %v619 = vld.sshfl [vmem:[#allocation1 + $0x18] sm:$0xff pattern:$0x73625140]
    %v620 = vld.sshfl [vmem:[#allocation1 + $0x20] sm:$0xff pattern:$0x73625140]
    %v621 = vld.sshfl [vmem:[#allocation1 + $0x28] sm:$0xff pattern:$0x73625140]
    %v622 = vld.sshfl [vmem:[#allocation1 + $0x30] sm:$0xff pattern:$0x73625140]
    %v623 = vld.sshfl [vmem:[#allocation1 + $0x38] sm:$0xff pattern:$0x73625140]
    %624 = vst [vmem:[#allocation1] ss:$4 sm:$0xff] %v81
    %625 = vst [vmem:[%s570] ss:$4 sm:$0xff] %v83
    %626 = vst [vmem:[%s572] ss:$4 sm:$0xff] %v85
    %627 = vst [vmem:[%s574] ss:$4 sm:$0xff] %v87
    %628 = vst [vmem:[%s576] ss:$4 sm:$0xff] %v82
    %629 = vst [vmem:[%s578] ss:$4 sm:$0xff] %v84
    %630 = vst [vmem:[%s580] ss:$4 sm:$0xff] %v86
    %631 = vst [vmem:[%s582] ss:$4 sm:$0xff] %v88
    %v632 = vld.sshfl [vmem:[#allocation1] sm:$0xff pattern:$0x73625140]
    %v633 = vld.sshfl [vmem:[#allocation1 + $0x8] sm:$0xff pattern:$0x73625140]
    %v634 = vld.sshfl [vmem:[#allocation1 + $0x10] sm:$0xff pattern:$0x73625140]
    %v635 = vld.sshfl [vmem:[#allocation1 + $0x18] sm:$0xff pattern:$0x73625140]
    %v636 = vld.sshfl [vmem:[#allocation1 + $0x20] sm:$0xff pattern:$0x73625140]
    %v637 = vld.sshfl [vmem:[#allocation1 + $0x28] sm:$0xff pattern:$0x73625140]
    %v638 = vld.sshfl [vmem:[#allocation1 + $0x30] sm:$0xff pattern:$0x73625140]
    %v639 = vld.sshfl [vmem:[#allocation1 + $0x38] sm:$0xff pattern:$0x73625140]
    %640 = vst [vmem:[#allocation1] ss:$4 sm:$0xff] %v89
    %641 = vst [vmem:[%s570] ss:$4 sm:$0xff] %v91
    %642 = vst [vmem:[%s572] ss:$4 sm:$0xff] %v93
    %643 = vst [vmem:[%s574] ss:$4 sm:$0xff] %v95
    %644 = vst [vmem:[%s576] ss:$4 sm:$0xff] %v90
    %645 = vst [vmem:[%s578] ss:$4 sm:$0xff] %v92
    %646 = vst [vmem:[%s580] ss:$4 sm:$0xff] %v94
    %647 = vst [vmem:[%s582] ss:$4 sm:$0xff] %v96
    %v648 = vld.sshfl [vmem:[#allocation1] sm:$0xff pattern:$0x73625140]
    %v649 = vld.sshfl [vmem:[#allocation1 + $0x8] sm:$0xff pattern:$0x73625140]
    %v650 = vld.sshfl [vmem:[#allocation1 + $0x10] sm:$0xff pattern:$0x73625140]
    %v651 = vld.sshfl [vmem:[#allocation1 + $0x18] sm:$0xff pattern:$0x73625140]
    %v652 = vld.sshfl [vmem:[#allocation1 + $0x20] sm:$0xff pattern:$0x73625140]
    %v653 = vld.sshfl [vmem:[#allocation1 + $0x28] sm:$0xff pattern:$0x73625140]
    %v654 = vld.sshfl [vmem:[#allocation1 + $0x30] sm:$0xff pattern:$0x73625140]
    %v655 = vld.sshfl [vmem:[#allocation1 + $0x38] sm:$0xff pattern:$0x73625140]
    %656 = vst [vmem:[#allocation1] ss:$4 sm:$0xff] %v97
    %657 = vst [vmem:[%s570] ss:$4 sm:$0xff] %v99
    %658 = vst [vmem:[%s572] ss:$4 sm:$0xff] %v101
    %659 = vst [vmem:[%s574] ss:$4 sm:$0xff] %v103
    %660 = vst [vmem:[%s576] ss:$4 sm:$0xff] %v98
    %661 = vst [vmem:[%s578] ss:$4 sm:$0xff] %v100
    %662 = vst [vmem:[%s580] ss:$4 sm:$0xff] %v102
    %663 = vst [vmem:[%s582] ss:$4 sm:$0xff] %v104
    %v664 = vld.sshfl [vmem:[#allocation1] sm:$0xff pattern:$0x73625140]
    %v665 = vld.sshfl [vmem:[#allocation1 + $0x8] sm:$0xff pattern:$0x73625140]
    %v666 = vld.sshfl [vmem:[#allocation1 + $0x10] sm:$0xff pattern:$0x73625140]
    %v667 = vld.sshfl [vmem:[#allocation1 + $0x18] sm:$0xff pattern:$0x73625140]
    %v668 = vld.sshfl [vmem:[#allocation1 + $0x20] sm:$0xff pattern:$0x73625140]
    %v669 = vld.sshfl [vmem:[#allocation1 + $0x28] sm:$0xff pattern:$0x73625140]
    %v670 = vld.sshfl [vmem:[#allocation1 + $0x30] sm:$0xff pattern:$0x73625140]
    %v671 = vld.sshfl [vmem:[#allocation1 + $0x38] sm:$0xff pattern:$0x73625140]
    %672 = vst [vmem:[#allocation1] ss:$4 sm:$0xff] %v105
    %673 = vst [vmem:[%s570] ss:$4 sm:$0xff] %v107
    %674 = vst [vmem:[%s572] ss:$4 sm:$0xff] %v109
    %675 = vst [vmem:[%s574] ss:$4 sm:$0xff] %v111
    %676 = vst [vmem:[%s576] ss:$4 sm:$0xff] %v106
    %677 = vst [vmem:[%s578] ss:$4 sm:$0xff] %v108
    %678 = vst [vmem:[%s580] ss:$4 sm:$0xff] %v110
    %679 = vst [vmem:[%s582] ss:$4 sm:$0xff] %v112
    %v680 = vld.sshfl [vmem:[#allocation1] sm:$0xff pattern:$0x73625140]
    %v681 = vld.sshfl [vmem:[#allocation1 + $0x8] sm:$0xff pattern:$0x73625140]
    %v682 = vld.sshfl [vmem:[#allocation1 + $0x10] sm:$0xff pattern:$0x73625140]
    %v683 = vld.sshfl [vmem:[#allocation1 + $0x18] sm:$0xff pattern:$0x73625140]
    %v684 = vld.sshfl [vmem:[#allocation1 + $0x20] sm:$0xff pattern:$0x73625140]
    %v685 = vld.sshfl [vmem:[#allocation1 + $0x28] sm:$0xff pattern:$0x73625140]
    %v686 = vld.sshfl [vmem:[#allocation1 + $0x30] sm:$0xff pattern:$0x73625140]
    %v687 = vld.sshfl [vmem:[#allocation1 + $0x38] sm:$0xff pattern:$0x73625140]
    %688 = vst [vmem:[#allocation1] ss:$4 sm:$0xff] %v113
    %689 = vst [vmem:[%s570] ss:$4 sm:$0xff] %v115
    %690 = vst [vmem:[%s572] ss:$4 sm:$0xff] %v117
    %691 = vst [vmem:[%s574] ss:$4 sm:$0xff] %v119
    %692 = vst [vmem:[%s576] ss:$4 sm:$0xff] %v114
    %693 = vst [vmem:[%s578] ss:$4 sm:$0xff] %v116
    %694 = vst [vmem:[%s580] ss:$4 sm:$0xff] %v118
    %695 = vst [vmem:[%s582] ss:$4 sm:$0xff] %v120
    %v696 = vld.sshfl [vmem:[#allocation1] sm:$0xff pattern:$0x73625140]
    %v697 = vld.sshfl [vmem:[#allocation1 + $0x8] sm:$0xff pattern:$0x73625140]
    %v698 = vld.sshfl [vmem:[#allocation1 + $0x10] sm:$0xff pattern:$0x73625140]
    %v699 = vld.sshfl [vmem:[#allocation1 + $0x18] sm:$0xff pattern:$0x73625140]
    %v700 = vld.sshfl [vmem:[#allocation1 + $0x20] sm:$0xff pattern:$0x73625140]
    %v701 = vld.sshfl [vmem:[#allocation1 + $0x28] sm:$0xff pattern:$0x73625140]
    %v702 = vld.sshfl [vmem:[#allocation1 + $0x30] sm:$0xff pattern:$0x73625140]
    %v703 = vld.sshfl [vmem:[#allocation1 + $0x38] sm:$0xff pattern:$0x73625140]
    %704 = vst [vmem:[#allocation1] ss:$4 sm:$0xff] %v121
    %705 = vst [vmem:[%s570] ss:$4 sm:$0xff] %v123
    %706 = vst [vmem:[%s572] ss:$4 sm:$0xff] %v125
    %707 = vst [vmem:[%s574] ss:$4 sm:$0xff] %v127
    %708 = vst [vmem:[%s576] ss:$4 sm:$0xff] %v122
    %709 = vst [vmem:[%s578] ss:$4 sm:$0xff] %v124
    %710 = vst [vmem:[%s580] ss:$4 sm:$0xff] %v126
    %711 = vst [vmem:[%s582] ss:$4 sm:$0xff] %v128
    %v712 = vld.sshfl [vmem:[#allocation1] sm:$0xff pattern:$0x73625140]
    %v713 = vld.sshfl [vmem:[#allocation1 + $0x8] sm:$0xff pattern:$0x73625140]
    %v714 = vld.sshfl [vmem:[#allocation1 + $0x10] sm:$0xff pattern:$0x73625140]
    %v715 = vld.sshfl [vmem:[#allocation1 + $0x18] sm:$0xff pattern:$0x73625140]
    %v716 = vld.sshfl [vmem:[#allocation1 + $0x20] sm:$0xff pattern:$0x73625140]
    %v717 = vld.sshfl [vmem:[#allocation1 + $0x28] sm:$0xff pattern:$0x73625140]
    %v718 = vld.sshfl [vmem:[#allocation1 + $0x30] sm:$0xff pattern:$0x73625140]
    %v719 = vld.sshfl [vmem:[#allocation1 + $0x38] sm:$0xff pattern:$0x73625140]
    %720 = vst [vmem:[#allocation1] ss:$4 sm:$0xff] %v129
    %721 = vst [vmem:[%s570] ss:$4 sm:$0xff] %v131
    %722 = vst [vmem:[%s572] ss:$4 sm:$0xff] %v133
    %723 = vst [vmem:[%s574] ss:$4 sm:$0xff] %v135
    %724 = vst [vmem:[%s576] ss:$4 sm:$0xff] %v130
    %725 = vst [vmem:[%s578] ss:$4 sm:$0xff] %v132
    %726 = vst [vmem:[%s580] ss:$4 sm:$0xff] %v134
    %727 = vst [vmem:[%s582] ss:$4 sm:$0xff] %v136
    %v728 = vld.sshfl [vmem:[#allocation1] sm:$0xff pattern:$0x73625140]
    %v729 = vld.sshfl [vmem:[#allocation1 + $0x8] sm:$0xff pattern:$0x73625140]
    %v730 = vld.sshfl [vmem:[#allocation1 + $0x10] sm:$0xff pattern:$0x73625140]
    %v731 = vld.sshfl [vmem:[#allocation1 + $0x18] sm:$0xff pattern:$0x73625140]
    %v732 = vld.sshfl [vmem:[#allocation1 + $0x20] sm:$0xff pattern:$0x73625140]
    %v733 = vld.sshfl [vmem:[#allocation1 + $0x28] sm:$0xff pattern:$0x73625140]
    %v734 = vld.sshfl [vmem:[#allocation1 + $0x30] sm:$0xff pattern:$0x73625140]
    %v735 = vld.sshfl [vmem:[#allocation1 + $0x38] sm:$0xff pattern:$0x73625140]
    %736 = vst [vmem:[#allocation1] ss:$4 sm:$0xff] %v137
    %737 = vst [vmem:[%s570] ss:$4 sm:$0xff] %v139
    %738 = vst [vmem:[%s572] ss:$4 sm:$0xff] %v141
    %739 = vst [vmem:[%s574] ss:$4 sm:$0xff] %v143
    %740 = vst [vmem:[%s576] ss:$4 sm:$0xff] %v138
    %741 = vst [vmem:[%s578] ss:$4 sm:$0xff] %v140
    %742 = vst [vmem:[%s580] ss:$4 sm:$0xff] %v142
    %743 = vst [vmem:[%s582] ss:$4 sm:$0xff] %v144
    %v744 = vld.sshfl [vmem:[#allocation1] sm:$0xff pattern:$0x73625140]
    %v745 = vld.sshfl [vmem:[#allocation1 + $0x8] sm:$0xff pattern:$0x73625140]
    %v746 = vld.sshfl [vmem:[#allocation1 + $0x10] sm:$0xff pattern:$0x73625140]
    %v747 = vld.sshfl [vmem:[#allocation1 + $0x18] sm:$0xff pattern:$0x73625140]
    %v748 = vld.sshfl [vmem:[#allocation1 + $0x20] sm:$0xff pattern:$0x73625140]
    %v749 = vld.sshfl [vmem:[#allocation1 + $0x28] sm:$0xff pattern:$0x73625140]
    %v750 = vld.sshfl [vmem:[#allocation1 + $0x30] sm:$0xff pattern:$0x73625140]
    %v751 = vld.sshfl [vmem:[#allocation1 + $0x38] sm:$0xff pattern:$0x73625140]
    %752 = vst [vmem:[#allocation1] ss:$4 sm:$0xff] %v145
    %753 = vst [vmem:[%s570] ss:$4 sm:$0xff] %v147
    %754 = vst [vmem:[%s572] ss:$4 sm:$0xff] %v149
    %755 = vst [vmem:[%s574] ss:$4 sm:$0xff] %v151
    %756 = vst [vmem:[%s576] ss:$4 sm:$0xff] %v146
    %757 = vst [vmem:[%s578] ss:$4 sm:$0xff] %v148
    %758 = vst [vmem:[%s580] ss:$4 sm:$0xff] %v150
    %759 = vst [vmem:[%s582] ss:$4 sm:$0xff] %v152
    %v760 = vld.sshfl [vmem:[#allocation1] sm:$0xff pattern:$0x73625140]
    %v761 = vld.sshfl [vmem:[#allocation1 + $0x8] sm:$0xff pattern:$0x73625140]
    %v762 = vld.sshfl [vmem:[#allocation1 + $0x10] sm:$0xff pattern:$0x73625140]
    %v763 = vld.sshfl [vmem:[#allocation1 + $0x18] sm:$0xff pattern:$0x73625140]
    %v764 = vld.sshfl [vmem:[#allocation1 + $0x20] sm:$0xff pattern:$0x73625140]
    %v765 = vld.sshfl [vmem:[#allocation1 + $0x28] sm:$0xff pattern:$0x73625140]
    %v766 = vld.sshfl [vmem:[#allocation1 + $0x30] sm:$0xff pattern:$0x73625140]
    %v767 = vld.sshfl [vmem:[#allocation1 + $0x38] sm:$0xff pattern:$0x73625140]
    %768 = vst [vmem:[#allocation1] ss:$4 sm:$0xff] %v153
    %769 = vst [vmem:[%s570] ss:$4 sm:$0xff] %v155
    %770 = vst [vmem:[%s572] ss:$4 sm:$0xff] %v157
    %771 = vst [vmem:[%s574] ss:$4 sm:$0xff] %v159
    %772 = vst [vmem:[%s576] ss:$4 sm:$0xff] %v154
    %773 = vst [vmem:[%s578] ss:$4 sm:$0xff] %v156
    %774 = vst [vmem:[%s580] ss:$4 sm:$0xff] %v158
    %775 = vst [vmem:[%s582] ss:$4 sm:$0xff] %v160
    %v776 = vld.sshfl [vmem:[#allocation1] sm:$0xff pattern:$0x73625140]
    %v777 = vld.sshfl [vmem:[#allocation1 + $0x8] sm:$0xff pattern:$0x73625140]
    %v778 = vld.sshfl [vmem:[#allocation1 + $0x10] sm:$0xff pattern:$0x73625140]
    %v779 = vld.sshfl [vmem:[#allocation1 + $0x18] sm:$0xff pattern:$0x73625140]
    %v780 = vld.sshfl [vmem:[#allocation1 + $0x20] sm:$0xff pattern:$0x73625140]
    %v781 = vld.sshfl [vmem:[#allocation1 + $0x28] sm:$0xff pattern:$0x73625140]
    %v782 = vld.sshfl [vmem:[#allocation1 + $0x30] sm:$0xff pattern:$0x73625140]
    %v783 = vld.sshfl [vmem:[#allocation1 + $0x38] sm:$0xff pattern:$0x73625140]
    %784 = vst [vmem:[#allocation1] ss:$4 sm:$0xff] %v161
    %785 = vst [vmem:[%s570] ss:$4 sm:$0xff] %v163
    %786 = vst [vmem:[%s572] ss:$4 sm:$0xff] %v165
    %787 = vst [vmem:[%s574] ss:$4 sm:$0xff] %v167
    %788 = vst [vmem:[%s576] ss:$4 sm:$0xff] %v162
    %789 = vst [vmem:[%s578] ss:$4 sm:$0xff] %v164
    %790 = vst [vmem:[%s580] ss:$4 sm:$0xff] %v166
    %791 = vst [vmem:[%s582] ss:$4 sm:$0xff] %v168
    %v792 = vld.sshfl [vmem:[#allocation1] sm:$0xff pattern:$0x73625140]
    %v793 = vld.sshfl [vmem:[#allocation1 + $0x8] sm:$0xff pattern:$0x73625140]
    %v794 = vld.sshfl [vmem:[#allocation1 + $0x10] sm:$0xff pattern:$0x73625140]
    %v795 = vld.sshfl [vmem:[#allocation1 + $0x18] sm:$0xff pattern:$0x73625140]
    %v796 = vld.sshfl [vmem:[#allocation1 + $0x20] sm:$0xff pattern:$0x73625140]
    %v797 = vld.sshfl [vmem:[#allocation1 + $0x28] sm:$0xff pattern:$0x73625140]
    %v798 = vld.sshfl [vmem:[#allocation1 + $0x30] sm:$0xff pattern:$0x73625140]
    %v799 = vld.sshfl [vmem:[#allocation1 + $0x38] sm:$0xff pattern:$0x73625140]
    %800 = vst [vmem:[#allocation1] ss:$4 sm:$0xff] %v169
    %801 = vst [vmem:[%s570] ss:$4 sm:$0xff] %v171
    %802 = vst [vmem:[%s572] ss:$4 sm:$0xff] %v173
    %803 = vst [vmem:[%s574] ss:$4 sm:$0xff] %v175
    %804 = vst [vmem:[%s576] ss:$4 sm:$0xff] %v170
    %805 = vst [vmem:[%s578] ss:$4 sm:$0xff] %v172
    %806 = vst [vmem:[%s580] ss:$4 sm:$0xff] %v174
    %807 = vst [vmem:[%s582] ss:$4 sm:$0xff] %v176
    %v808 = vld.sshfl [vmem:[#allocation1] sm:$0xff pattern:$0x73625140]
    %v809 = vld.sshfl [vmem:[#allocation1 + $0x8] sm:$0xff pattern:$0x73625140]
    %v810 = vld.sshfl [vmem:[#allocation1 + $0x10] sm:$0xff pattern:$0x73625140]
    %v811 = vld.sshfl [vmem:[#allocation1 + $0x18] sm:$0xff pattern:$0x73625140]
    %v812 = vld.sshfl [vmem:[#allocation1 + $0x20] sm:$0xff pattern:$0x73625140]
    %v813 = vld.sshfl [vmem:[#allocation1 + $0x28] sm:$0xff pattern:$0x73625140]
    %v814 = vld.sshfl [vmem:[#allocation1 + $0x30] sm:$0xff pattern:$0x73625140]
    %v815 = vld.sshfl [vmem:[#allocation1 + $0x38] sm:$0xff pattern:$0x73625140]
    %816 = vst [vmem:[#allocation1] ss:$4 sm:$0xff] %v177
    %817 = vst [vmem:[%s570] ss:$4 sm:$0xff] %v179
    %818 = vst [vmem:[%s572] ss:$4 sm:$0xff] %v181
    %819 = vst [vmem:[%s574] ss:$4 sm:$0xff] %v183
    %820 = vst [vmem:[%s576] ss:$4 sm:$0xff] %v178
    %821 = vst [vmem:[%s578] ss:$4 sm:$0xff] %v180
    %822 = vst [vmem:[%s580] ss:$4 sm:$0xff] %v182
    %823 = vst [vmem:[%s582] ss:$4 sm:$0xff] %v184
    %v824 = vld.sshfl [vmem:[#allocation1] sm:$0xff pattern:$0x73625140]
    %v825 = vld.sshfl [vmem:[#allocation1 + $0x8] sm:$0xff pattern:$0x73625140]
    %v826 = vld.sshfl [vmem:[#allocation1 + $0x10] sm:$0xff pattern:$0x73625140]
    %v827 = vld.sshfl [vmem:[#allocation1 + $0x18] sm:$0xff pattern:$0x73625140]
    %v828 = vld.sshfl [vmem:[#allocation1 + $0x20] sm:$0xff pattern:$0x73625140]
    %v829 = vld.sshfl [vmem:[#allocation1 + $0x28] sm:$0xff pattern:$0x73625140]
    %v830 = vld.sshfl [vmem:[#allocation1 + $0x30] sm:$0xff pattern:$0x73625140]
    %v831 = vld.sshfl [vmem:[#allocation1 + $0x38] sm:$0xff pattern:$0x73625140]
    %832 = vst [vmem:[#allocation1] ss:$4 sm:$0xff] %v185
    %833 = vst [vmem:[%s570] ss:$4 sm:$0xff] %v187
    %834 = vst [vmem:[%s572] ss:$4 sm:$0xff] %v189
    %835 = vst [vmem:[%s574] ss:$4 sm:$0xff] %v191
    %836 = vst [vmem:[%s576] ss:$4 sm:$0xff] %v186
    %837 = vst [vmem:[%s578] ss:$4 sm:$0xff] %v188
    %838 = vst [vmem:[%s580] ss:$4 sm:$0xff] %v190
    %839 = vst [vmem:[%s582] ss:$4 sm:$0xff] %v192
    %v840 = vld.sshfl [vmem:[#allocation1] sm:$0xff pattern:$0x73625140]
    %v841 = vld.sshfl [vmem:[#allocation1 + $0x8] sm:$0xff pattern:$0x73625140]
    %v842 = vld.sshfl [vmem:[#allocation1 + $0x10] sm:$0xff pattern:$0x73625140]
    %v843 = vld.sshfl [vmem:[#allocation1 + $0x18] sm:$0xff pattern:$0x73625140]
    %v844 = vld.sshfl [vmem:[#allocation1 + $0x20] sm:$0xff pattern:$0x73625140]
    %v845 = vld.sshfl [vmem:[#allocation1 + $0x28] sm:$0xff pattern:$0x73625140]
    %v846 = vld.sshfl [vmem:[#allocation1 + $0x30] sm:$0xff pattern:$0x73625140]
    %v847 = vld.sshfl [vmem:[#allocation1 + $0x38] sm:$0xff pattern:$0x73625140]
    %848 = vst [vmem:[#allocation1] ss:$4 sm:$0xff] %v193
    %849 = vst [vmem:[%s570] ss:$4 sm:$0xff] %v195
    %850 = vst [vmem:[%s572] ss:$4 sm:$0xff] %v197
    %851 = vst [vmem:[%s574] ss:$4 sm:$0xff] %v199
    %852 = vst [vmem:[%s576] ss:$4 sm:$0xff] %v194
    %853 = vst [vmem:[%s578] ss:$4 sm:$0xff] %v196
    %854 = vst [vmem:[%s580] ss:$4 sm:$0xff] %v198
    %855 = vst [vmem:[%s582] ss:$4 sm:$0xff] %v200
    %v856 = vld.sshfl [vmem:[#allocation1] sm:$0xff pattern:$0x73625140]
    %v857 = vld.sshfl [vmem:[#allocation1 + $0x8] sm:$0xff pattern:$0x73625140]
    %v858 = vld.sshfl [vmem:[#allocation1 + $0x10] sm:$0xff pattern:$0x73625140]
    %v859 = vld.sshfl [vmem:[#allocation1 + $0x18] sm:$0xff pattern:$0x73625140]
    %v860 = vld.sshfl [vmem:[#allocation1 + $0x20] sm:$0xff pattern:$0x73625140]
    %v861 = vld.sshfl [vmem:[#allocation1 + $0x28] sm:$0xff pattern:$0x73625140]
    %v862 = vld.sshfl [vmem:[#allocation1 + $0x30] sm:$0xff pattern:$0x73625140]
    %v863 = vld.sshfl [vmem:[#allocation1 + $0x38] sm:$0xff pattern:$0x73625140]
    %864 = vst [vmem:[#allocation1] ss:$4 sm:$0xff] %v201
    %865 = vst [vmem:[%s570] ss:$4 sm:$0xff] %v203
    %866 = vst [vmem:[%s572] ss:$4 sm:$0xff] %v205
    %867 = vst [vmem:[%s574] ss:$4 sm:$0xff] %v207
    %868 = vst [vmem:[%s576] ss:$4 sm:$0xff] %v202
    %869 = vst [vmem:[%s578] ss:$4 sm:$0xff] %v204
    %870 = vst [vmem:[%s580] ss:$4 sm:$0xff] %v206
    %871 = vst [vmem:[%s582] ss:$4 sm:$0xff] %v208
    %v872 = vld.sshfl [vmem:[#allocation1] sm:$0xff pattern:$0x73625140]
    %v873 = vld.sshfl [vmem:[#allocation1 + $0x8] sm:$0xff pattern:$0x73625140]
    %v874 = vld.sshfl [vmem:[#allocation1 + $0x10] sm:$0xff pattern:$0x73625140]
    %v875 = vld.sshfl [vmem:[#allocation1 + $0x18] sm:$0xff pattern:$0x73625140]
    %v876 = vld.sshfl [vmem:[#allocation1 + $0x20] sm:$0xff pattern:$0x73625140]
    %v877 = vld.sshfl [vmem:[#allocation1 + $0x28] sm:$0xff pattern:$0x73625140]
    %v878 = vld.sshfl [vmem:[#allocation1 + $0x30] sm:$0xff pattern:$0x73625140]
    %v879 = vld.sshfl [vmem:[#allocation1 + $0x38] sm:$0xff pattern:$0x73625140]
    %880 = vst [vmem:[#allocation1] ss:$4 sm:$0xff] %v209
    %881 = vst [vmem:[%s570] ss:$4 sm:$0xff] %v211
    %882 = vst [vmem:[%s572] ss:$4 sm:$0xff] %v213
    %883 = vst [vmem:[%s574] ss:$4 sm:$0xff] %v215
    %884 = vst [vmem:[%s576] ss:$4 sm:$0xff] %v210
    %885 = vst [vmem:[%s578] ss:$4 sm:$0xff] %v212
    %886 = vst [vmem:[%s580] ss:$4 sm:$0xff] %v214
    %887 = vst [vmem:[%s582] ss:$4 sm:$0xff] %v216
    %v888 = vld.sshfl [vmem:[#allocation1] sm:$0xff pattern:$0x73625140]
    %v889 = vld.sshfl [vmem:[#allocation1 + $0x8] sm:$0xff pattern:$0x73625140]
    %v890 = vld.sshfl [vmem:[#allocation1 + $0x10] sm:$0xff pattern:$0x73625140]
    %v891 = vld.sshfl [vmem:[#allocation1 + $0x18] sm:$0xff pattern:$0x73625140]
    %v892 = vld.sshfl [vmem:[#allocation1 + $0x20] sm:$0xff pattern:$0x73625140]
    %v893 = vld.sshfl [vmem:[#allocation1 + $0x28] sm:$0xff pattern:$0x73625140]
    %v894 = vld.sshfl [vmem:[#allocation1 + $0x30] sm:$0xff pattern:$0x73625140]
    %v895 = vld.sshfl [vmem:[#allocation1 + $0x38] sm:$0xff pattern:$0x73625140]
    %896 = vst [vmem:[#allocation1] ss:$4 sm:$0xff] %v217
    %897 = vst [vmem:[%s570] ss:$4 sm:$0xff] %v219
    %898 = vst [vmem:[%s572] ss:$4 sm:$0xff] %v221
    %899 = vst [vmem:[%s574] ss:$4 sm:$0xff] %v223
    %900 = vst [vmem:[%s576] ss:$4 sm:$0xff] %v218
    %901 = vst [vmem:[%s578] ss:$4 sm:$0xff] %v220
    %902 = vst [vmem:[%s580] ss:$4 sm:$0xff] %v222
    %903 = vst [vmem:[%s582] ss:$4 sm:$0xff] %v224
    %v904 = vld.sshfl [vmem:[#allocation1] sm:$0xff pattern:$0x73625140]
    %v905 = vld.sshfl [vmem:[#allocation1 + $0x8] sm:$0xff pattern:$0x73625140]
    %v906 = vld.sshfl [vmem:[#allocation1 + $0x10] sm:$0xff pattern:$0x73625140]
    %v907 = vld.sshfl [vmem:[#allocation1 + $0x18] sm:$0xff pattern:$0x73625140]
    %v908 = vld.sshfl [vmem:[#allocation1 + $0x20] sm:$0xff pattern:$0x73625140]
    %v909 = vld.sshfl [vmem:[#allocation1 + $0x28] sm:$0xff pattern:$0x73625140]
    %v910 = vld.sshfl [vmem:[#allocation1 + $0x30] sm:$0xff pattern:$0x73625140]
    %v911 = vld.sshfl [vmem:[#allocation1 + $0x38] sm:$0xff pattern:$0x73625140]
    %912 = vst [vmem:[#allocation1] ss:$4 sm:$0xff] %v225
    %913 = vst [vmem:[%s570] ss:$4 sm:$0xff] %v227
    %914 = vst [vmem:[%s572] ss:$4 sm:$0xff] %v229
    %915 = vst [vmem:[%s574] ss:$4 sm:$0xff] %v231
    %916 = vst [vmem:[%s576] ss:$4 sm:$0xff] %v226
    %917 = vst [vmem:[%s578] ss:$4 sm:$0xff] %v228
    %918 = vst [vmem:[%s580] ss:$4 sm:$0xff] %v230
    %919 = vst [vmem:[%s582] ss:$4 sm:$0xff] %v232
    %v920 = vld.sshfl [vmem:[#allocation1] sm:$0xff pattern:$0x73625140]
    %v921 = vld.sshfl [vmem:[#allocation1 + $0x8] sm:$0xff pattern:$0x73625140]
    %v922 = vld.sshfl [vmem:[#allocation1 + $0x10] sm:$0xff pattern:$0x73625140]
    %v923 = vld.sshfl [vmem:[#allocation1 + $0x18] sm:$0xff pattern:$0x73625140]
    %v924 = vld.sshfl [vmem:[#allocation1 + $0x20] sm:$0xff pattern:$0x73625140]
    %v925 = vld.sshfl [vmem:[#allocation1 + $0x28] sm:$0xff pattern:$0x73625140]
    %v926 = vld.sshfl [vmem:[#allocation1 + $0x30] sm:$0xff pattern:$0x73625140]
    %v927 = vld.sshfl [vmem:[#allocation1 + $0x38] sm:$0xff pattern:$0x73625140]
    %928 = vst [vmem:[#allocation1] ss:$4 sm:$0xff] %v233
    %929 = vst [vmem:[%s570] ss:$4 sm:$0xff] %v235
    %930 = vst [vmem:[%s572] ss:$4 sm:$0xff] %v237
    %931 = vst [vmem:[%s574] ss:$4 sm:$0xff] %v239
    %932 = vst [vmem:[%s576] ss:$4 sm:$0xff] %v234
    %933 = vst [vmem:[%s578] ss:$4 sm:$0xff] %v236
    %934 = vst [vmem:[%s580] ss:$4 sm:$0xff] %v238
    %935 = vst [vmem:[%s582] ss:$4 sm:$0xff] %v240
    %v936 = vld.sshfl [vmem:[#allocation1] sm:$0xff pattern:$0x73625140]
    %v937 = vld.sshfl [vmem:[#allocation1 + $0x8] sm:$0xff pattern:$0x73625140]
    %v938 = vld.sshfl [vmem:[#allocation1 + $0x10] sm:$0xff pattern:$0x73625140]
    %v939 = vld.sshfl [vmem:[#allocation1 + $0x18] sm:$0xff pattern:$0x73625140]
    %v940 = vld.sshfl [vmem:[#allocation1 + $0x20] sm:$0xff pattern:$0x73625140]
    %v941 = vld.sshfl [vmem:[#allocation1 + $0x28] sm:$0xff pattern:$0x73625140]
    %v942 = vld.sshfl [vmem:[#allocation1 + $0x30] sm:$0xff pattern:$0x73625140]
    %v943 = vld.sshfl [vmem:[#allocation1 + $0x38] sm:$0xff pattern:$0x73625140]
    %944 = vst [vmem:[#allocation1] ss:$4 sm:$0xff] %v241
    %945 = vst [vmem:[%s570] ss:$4 sm:$0xff] %v243
    %946 = vst [vmem:[%s572] ss:$4 sm:$0xff] %v245
    %947 = vst [vmem:[%s574] ss:$4 sm:$0xff] %v247
    %948 = vst [vmem:[%s576] ss:$4 sm:$0xff] %v242
    %949 = vst [vmem:[%s578] ss:$4 sm:$0xff] %v244
    %950 = vst [vmem:[%s580] ss:$4 sm:$0xff] %v246
    %951 = vst [vmem:[%s582] ss:$4 sm:$0xff] %v248
    %v952 = vld.sshfl [vmem:[#allocation1] sm:$0xff pattern:$0x73625140]
    %v953 = vld.sshfl [vmem:[#allocation1 + $0x8] sm:$0xff pattern:$0x73625140]
    %v954 = vld.sshfl [vmem:[#allocation1 + $0x10] sm:$0xff pattern:$0x73625140]
    %v955 = vld.sshfl [vmem:[#allocation1 + $0x18] sm:$0xff pattern:$0x73625140]
    %v956 = vld.sshfl [vmem:[#allocation1 + $0x20] sm:$0xff pattern:$0x73625140]
    %v957 = vld.sshfl [vmem:[#allocation1 + $0x28] sm:$0xff pattern:$0x73625140]
    %v958 = vld.sshfl [vmem:[#allocation1 + $0x30] sm:$0xff pattern:$0x73625140]
    %v959 = vld.sshfl [vmem:[#allocation1 + $0x38] sm:$0xff pattern:$0x73625140]
    %960 = vst [vmem:[#allocation1] ss:$4 sm:$0xff] %v249
    %961 = vst [vmem:[%s570] ss:$4 sm:$0xff] %v251
    %962 = vst [vmem:[%s572] ss:$4 sm:$0xff] %v253
    %963 = vst [vmem:[%s574] ss:$4 sm:$0xff] %v255
    %964 = vst [vmem:[%s576] ss:$4 sm:$0xff] %v250
    %965 = vst [vmem:[%s578] ss:$4 sm:$0xff] %v252
    %966 = vst [vmem:[%s580] ss:$4 sm:$0xff] %v254
    %967 = vst [vmem:[%s582] ss:$4 sm:$0xff] %v256
    %v968 = vld.sshfl [vmem:[#allocation1] sm:$0xff pattern:$0x73625140]
    %v969 = vld.sshfl [vmem:[#allocation1 + $0x8] sm:$0xff pattern:$0x73625140]
    %v970 = vld.sshfl [vmem:[#allocation1 + $0x10] sm:$0xff pattern:$0x73625140]
    %v971 = vld.sshfl [vmem:[#allocation1 + $0x18] sm:$0xff pattern:$0x73625140]
    %v972 = vld.sshfl [vmem:[#allocation1 + $0x20] sm:$0xff pattern:$0x73625140]
    %v973 = vld.sshfl [vmem:[#allocation1 + $0x28] sm:$0xff pattern:$0x73625140]
    %v974 = vld.sshfl [vmem:[#allocation1 + $0x30] sm:$0xff pattern:$0x73625140]
    %v975 = vld.sshfl [vmem:[#allocation1 + $0x38] sm:$0xff pattern:$0x73625140]
    %976 = vst [vmem:[#allocation1] ss:$4 sm:$0xff] %v257
    %977 = vst [vmem:[%s570] ss:$4 sm:$0xff] %v259
    %978 = vst [vmem:[%s572] ss:$4 sm:$0xff] %v261
    %979 = vst [vmem:[%s574] ss:$4 sm:$0xff] %v263
    %980 = vst [vmem:[%s576] ss:$4 sm:$0xff] %v258
    %981 = vst [vmem:[%s578] ss:$4 sm:$0xff] %v260
    %982 = vst [vmem:[%s580] ss:$4 sm:$0xff] %v262
    %983 = vst [vmem:[%s582] ss:$4 sm:$0xff] %v264
    %v984 = vld.sshfl [vmem:[#allocation1] sm:$0xff pattern:$0x73625140]
    %v985 = vld.sshfl [vmem:[#allocation1 + $0x8] sm:$0xff pattern:$0x73625140]
    %v986 = vld.sshfl [vmem:[#allocation1 + $0x10] sm:$0xff pattern:$0x73625140]
    %v987 = vld.sshfl [vmem:[#allocation1 + $0x18] sm:$0xff pattern:$0x73625140]
    %v988 = vld.sshfl [vmem:[#allocation1 + $0x20] sm:$0xff pattern:$0x73625140]
    %v989 = vld.sshfl [vmem:[#allocation1 + $0x28] sm:$0xff pattern:$0x73625140]
    %v990 = vld.sshfl [vmem:[#allocation1 + $0x30] sm:$0xff pattern:$0x73625140]
    %v991 = vld.sshfl [vmem:[#allocation1 + $0x38] sm:$0xff pattern:$0x73625140]
    %992 = vst [vmem:[#allocation1] ss:$4 sm:$0xff] %v265
    %993 = vst [vmem:[%s570] ss:$4 sm:$0xff] %v267
    %994 = vst [vmem:[%s572] ss:$4 sm:$0xff] %v269
    %995 = vst [vmem:[%s574] ss:$4 sm:$0xff] %v271
    %996 = vst [vmem:[%s576] ss:$4 sm:$0xff] %v266
    %997 = vst [vmem:[%s578] ss:$4 sm:$0xff] %v268
    %998 = vst [vmem:[%s580] ss:$4 sm:$0xff] %v270
    %999 = vst [vmem:[%s582] ss:$4 sm:$0xff] %v272
    %v1000 = vld.sshfl [vmem:[#allocation1] sm:$0xff pattern:$0x73625140]
    %v1001 = vld.sshfl [vmem:[#allocation1 + $0x8] sm:$0xff pattern:$0x73625140]
    %v1002 = vld.sshfl [vmem:[#allocation1 + $0x10] sm:$0xff pattern:$0x73625140]
    %v1003 = vld.sshfl [vmem:[#allocation1 + $0x18] sm:$0xff pattern:$0x73625140]
    %v1004 = vld.sshfl [vmem:[#allocation1 + $0x20] sm:$0xff pattern:$0x73625140]
    %v1005 = vld.sshfl [vmem:[#allocation1 + $0x28] sm:$0xff pattern:$0x73625140]
    %v1006 = vld.sshfl [vmem:[#allocation1 + $0x30] sm:$0xff pattern:$0x73625140]
    %v1007 = vld.sshfl [vmem:[#allocation1 + $0x38] sm:$0xff pattern:$0x73625140]
    %1008 = vst [vmem:[#allocation1] ss:$4 sm:$0xff] %v273
    %1009 = vst [vmem:[%s570] ss:$4 sm:$0xff] %v275
    %1010 = vst [vmem:[%s572] ss:$4 sm:$0xff] %v277
    %1011 = vst [vmem:[%s574] ss:$4 sm:$0xff] %v279
    %1012 = vst [vmem:[%s576] ss:$4 sm:$0xff] %v274
    %1013 = vst [vmem:[%s578] ss:$4 sm:$0xff] %v276
    %1014 = vst [vmem:[%s580] ss:$4 sm:$0xff] %v278
    %1015 = vst [vmem:[%s582] ss:$4 sm:$0xff] %v280
    %v1016 = vld.sshfl [vmem:[#allocation1] sm:$0xff pattern:$0x73625140]
    %v1017 = vld.sshfl [vmem:[#allocation1 + $0x8] sm:$0xff pattern:$0x73625140]
    %v1018 = vld.sshfl [vmem:[#allocation1 + $0x10] sm:$0xff pattern:$0x73625140]
    %v1019 = vld.sshfl [vmem:[#allocation1 + $0x18] sm:$0xff pattern:$0x73625140]
    %v1020 = vld.sshfl [vmem:[#allocation1 + $0x20] sm:$0xff pattern:$0x73625140]
    %v1021 = vld.sshfl [vmem:[#allocation1 + $0x28] sm:$0xff pattern:$0x73625140]
    %v1022 = vld.sshfl [vmem:[#allocation1 + $0x30] sm:$0xff pattern:$0x73625140]
    %v1023 = vld.sshfl [vmem:[#allocation1 + $0x38] sm:$0xff pattern:$0x73625140]
    %1024 = vst [vmem:[#allocation1] ss:$4 sm:$0xff] %v281
    %1025 = vst [vmem:[%s570] ss:$4 sm:$0xff] %v283
    %1026 = vst [vmem:[%s572] ss:$4 sm:$0xff] %v285
    %1027 = vst [vmem:[%s574] ss:$4 sm:$0xff] %v287
    %1028 = vst [vmem:[%s576] ss:$4 sm:$0xff] %v282
    %1029 = vst [vmem:[%s578] ss:$4 sm:$0xff] %v284
    %1030 = vst [vmem:[%s580] ss:$4 sm:$0xff] %v286
    %1031 = vst [vmem:[%s582] ss:$4 sm:$0xff] %v288
    %v1032 = vld.sshfl [vmem:[#allocation1] sm:$0xff pattern:$0x73625140]
    %v1033 = vld.sshfl [vmem:[#allocation1 + $0x8] sm:$0xff pattern:$0x73625140]
    %v1034 = vld.sshfl [vmem:[#allocation1 + $0x10] sm:$0xff pattern:$0x73625140]
    %v1035 = vld.sshfl [vmem:[#allocation1 + $0x18] sm:$0xff pattern:$0x73625140]
    %v1036 = vld.sshfl [vmem:[#allocation1 + $0x20] sm:$0xff pattern:$0x73625140]
    %v1037 = vld.sshfl [vmem:[#allocation1 + $0x28] sm:$0xff pattern:$0x73625140]
    %v1038 = vld.sshfl [vmem:[#allocation1 + $0x30] sm:$0xff pattern:$0x73625140]
    %v1039 = vld.sshfl [vmem:[#allocation1 + $0x38] sm:$0xff pattern:$0x73625140]
    %1040 = vst [vmem:[#allocation1] ss:$4 sm:$0xff] %v289
    %1041 = vst [vmem:[%s570] ss:$4 sm:$0xff] %v291
    %1042 = vst [vmem:[%s572] ss:$4 sm:$0xff] %v293
    %1043 = vst [vmem:[%s574] ss:$4 sm:$0xff] %v295
    %1044 = vst [vmem:[%s576] ss:$4 sm:$0xff] %v290
    %1045 = vst [vmem:[%s578] ss:$4 sm:$0xff] %v292
    %1046 = vst [vmem:[%s580] ss:$4 sm:$0xff] %v294
    %1047 = vst [vmem:[%s582] ss:$4 sm:$0xff] %v296
    %v1048 = vld.sshfl [vmem:[#allocation1] sm:$0xff pattern:$0x73625140]
    %v1049 = vld.sshfl [vmem:[#allocation1 + $0x8] sm:$0xff pattern:$0x73625140]
    %v1050 = vld.sshfl [vmem:[#allocation1 + $0x10] sm:$0xff pattern:$0x73625140]
    %v1051 = vld.sshfl [vmem:[#allocation1 + $0x18] sm:$0xff pattern:$0x73625140]
    %v1052 = vld.sshfl [vmem:[#allocation1 + $0x20] sm:$0xff pattern:$0x73625140]
    %v1053 = vld.sshfl [vmem:[#allocation1 + $0x28] sm:$0xff pattern:$0x73625140]
    %v1054 = vld.sshfl [vmem:[#allocation1 + $0x30] sm:$0xff pattern:$0x73625140]
    %v1055 = vld.sshfl [vmem:[#allocation1 + $0x38] sm:$0xff pattern:$0x73625140]
    %1056 = vst [vmem:[#allocation1] ss:$4 sm:$0xff] %v297
    %1057 = vst [vmem:[%s570] ss:$4 sm:$0xff] %v299
    %1058 = vst [vmem:[%s572] ss:$4 sm:$0xff] %v301
    %1059 = vst [vmem:[%s574] ss:$4 sm:$0xff] %v303
    %1060 = vst [vmem:[%s576] ss:$4 sm:$0xff] %v298
    %1061 = vst [vmem:[%s578] ss:$4 sm:$0xff] %v300
    %1062 = vst [vmem:[%s580] ss:$4 sm:$0xff] %v302
    %1063 = vst [vmem:[%s582] ss:$4 sm:$0xff] %v304
    %v1064 = vld.sshfl [vmem:[#allocation1] sm:$0xff pattern:$0x73625140]
    %v1065 = vld.sshfl [vmem:[#allocation1 + $0x8] sm:$0xff pattern:$0x73625140]
    %v1066 = vld.sshfl [vmem:[#allocation1 + $0x10] sm:$0xff pattern:$0x73625140]
    %v1067 = vld.sshfl [vmem:[#allocation1 + $0x18] sm:$0xff pattern:$0x73625140]
    %v1068 = vld.sshfl [vmem:[#allocation1 + $0x20] sm:$0xff pattern:$0x73625140]
    %v1069 = vld.sshfl [vmem:[#allocation1 + $0x28] sm:$0xff pattern:$0x73625140]
    %v1070 = vld.sshfl [vmem:[#allocation1 + $0x30] sm:$0xff pattern:$0x73625140]
    %v1071 = vld.sshfl [vmem:[#allocation1 + $0x38] sm:$0xff pattern:$0x73625140]
    %1072 = vst [vmem:[#allocation1] ss:$4 sm:$0xff] %v305
    %1073 = vst [vmem:[%s570] ss:$4 sm:$0xff] %v307
    %1074 = vst [vmem:[%s572] ss:$4 sm:$0xff] %v309
    %1075 = vst [vmem:[%s574] ss:$4 sm:$0xff] %v311
    %1076 = vst [vmem:[%s576] ss:$4 sm:$0xff] %v306
    %1077 = vst [vmem:[%s578] ss:$4 sm:$0xff] %v308
    %1078 = vst [vmem:[%s580] ss:$4 sm:$0xff] %v310
    %1079 = vst [vmem:[%s582] ss:$4 sm:$0xff] %v312
    %v1080 = vld.sshfl [vmem:[#allocation1] sm:$0xff pattern:$0x73625140]
    %v1081 = vld.sshfl [vmem:[#allocation1 + $0x8] sm:$0xff pattern:$0x73625140]
    %v1082 = vld.sshfl [vmem:[#allocation1 + $0x10] sm:$0xff pattern:$0x73625140]
    %v1083 = vld.sshfl [vmem:[#allocation1 + $0x18] sm:$0xff pattern:$0x73625140]
    %v1084 = vld.sshfl [vmem:[#allocation1 + $0x20] sm:$0xff pattern:$0x73625140]
    %v1085 = vld.sshfl [vmem:[#allocation1 + $0x28] sm:$0xff pattern:$0x73625140]
    %v1086 = vld.sshfl [vmem:[#allocation1 + $0x30] sm:$0xff pattern:$0x73625140]
    %v1087 = vld.sshfl [vmem:[#allocation1 + $0x38] sm:$0xff pattern:$0x73625140]
    %v1344 = vpack.c.bf16 %v600, %v584
    %v1345 = vpack.c.bf16 %v601, %v585
    %v1346 = vpack.c.bf16 %v602, %v586
    %v1347 = vpack.c.bf16 %v603, %v587
    %v1348 = vpack.c.bf16 %v604, %v588
    %v1349 = vpack.c.bf16 %v605, %v589
    %v1350 = vpack.c.bf16 %v606, %v590
    %v1351 = vpack.c.bf16 %v607, %v591
    %v1352 = vpack.c.bf16 %v632, %v616
    %v1353 = vpack.c.bf16 %v633, %v617
    %v1354 = vpack.c.bf16 %v634, %v618
    %v1355 = vpack.c.bf16 %v635, %v619
    %v1356 = vpack.c.bf16 %v636, %v620
    %v1357 = vpack.c.bf16 %v637, %v621
    %v1358 = vpack.c.bf16 %v638, %v622
    %v1359 = vpack.c.bf16 %v639, %v623
    %v1360 = vpack.c.bf16 %v664, %v648
    %v1361 = vpack.c.bf16 %v665, %v649
    %v1362 = vpack.c.bf16 %v666, %v650
    %v1363 = vpack.c.bf16 %v667, %v651
    %v1364 = vpack.c.bf16 %v668, %v652
    %v1365 = vpack.c.bf16 %v669, %v653
    %v1366 = vpack.c.bf16 %v670, %v654
    %v1367 = vpack.c.bf16 %v671, %v655
    %v1368 = vpack.c.bf16 %v696, %v680
    %v1369 = vpack.c.bf16 %v697, %v681
    %v1370 = vpack.c.bf16 %v698, %v682
    %v1371 = vpack.c.bf16 %v699, %v683
    %v1372 = vpack.c.bf16 %v700, %v684
    %v1373 = vpack.c.bf16 %v701, %v685
    %v1374 = vpack.c.bf16 %v702, %v686
    %v1375 = vpack.c.bf16 %v703, %v687
    %v1376 = vpack.c.bf16 %v728, %v712
    %v1377 = vpack.c.bf16 %v729, %v713
    %v1378 = vpack.c.bf16 %v730, %v714
    %v1379 = vpack.c.bf16 %v731, %v715
    %v1380 = vpack.c.bf16 %v732, %v716
    %v1381 = vpack.c.bf16 %v733, %v717
    %v1382 = vpack.c.bf16 %v734, %v718
    %v1383 = vpack.c.bf16 %v735, %v719
    %v1384 = vpack.c.bf16 %v760, %v744
    %v1385 = vpack.c.bf16 %v761, %v745
    %v1386 = vpack.c.bf16 %v762, %v746
    %v1387 = vpack.c.bf16 %v763, %v747
    %v1388 = vpack.c.bf16 %v764, %v748
    %v1389 = vpack.c.bf16 %v765, %v749
    %v1390 = vpack.c.bf16 %v766, %v750
    %v1391 = vpack.c.bf16 %v767, %v751
    %v1392 = vpack.c.bf16 %v792, %v776
    %v1393 = vpack.c.bf16 %v793, %v777
    %v1394 = vpack.c.bf16 %v794, %v778
    %v1395 = vpack.c.bf16 %v795, %v779
    %v1396 = vpack.c.bf16 %v796, %v780
    %v1397 = vpack.c.bf16 %v797, %v781
    %v1398 = vpack.c.bf16 %v798, %v782
    %v1399 = vpack.c.bf16 %v799, %v783
    %v1400 = vpack.c.bf16 %v824, %v808
    %v1401 = vpack.c.bf16 %v825, %v809
    %v1402 = vpack.c.bf16 %v826, %v810
    %v1403 = vpack.c.bf16 %v827, %v811
    %v1404 = vpack.c.bf16 %v828, %v812
    %v1405 = vpack.c.bf16 %v829, %v813
    %v1406 = vpack.c.bf16 %v830, %v814
    %v1407 = vpack.c.bf16 %v831, %v815
    %v1408 = vpack.c.bf16 %v856, %v840
    %v1409 = vpack.c.bf16 %v857, %v841
    %v1410 = vpack.c.bf16 %v858, %v842
    %v1411 = vpack.c.bf16 %v859, %v843
    %v1412 = vpack.c.bf16 %v860, %v844
    %v1413 = vpack.c.bf16 %v861, %v845
    %v1414 = vpack.c.bf16 %v862, %v846
    %v1415 = vpack.c.bf16 %v863, %v847
    %v1416 = vpack.c.bf16 %v888, %v872
    %v1417 = vpack.c.bf16 %v889, %v873
    %v1418 = vpack.c.bf16 %v890, %v874
    %v1419 = vpack.c.bf16 %v891, %v875
    %v1420 = vpack.c.bf16 %v892, %v876
    %v1421 = vpack.c.bf16 %v893, %v877
    %v1422 = vpack.c.bf16 %v894, %v878
    %v1423 = vpack.c.bf16 %v895, %v879
    %v1424 = vpack.c.bf16 %v920, %v904
    %v1425 = vpack.c.bf16 %v921, %v905
    %v1426 = vpack.c.bf16 %v922, %v906
    %v1427 = vpack.c.bf16 %v923, %v907
    %v1428 = vpack.c.bf16 %v924, %v908
    %v1429 = vpack.c.bf16 %v925, %v909
    %v1430 = vpack.c.bf16 %v926, %v910
    %v1431 = vpack.c.bf16 %v927, %v911
    %v1432 = vpack.c.bf16 %v952, %v936
    %v1433 = vpack.c.bf16 %v953, %v937
    %v1434 = vpack.c.bf16 %v954, %v938
    %v1435 = vpack.c.bf16 %v955, %v939
    %v1436 = vpack.c.bf16 %v956, %v940
    %v1437 = vpack.c.bf16 %v957, %v941
    %v1438 = vpack.c.bf16 %v958, %v942
    %v1439 = vpack.c.bf16 %v959, %v943
    %v1440 = vpack.c.bf16 %v984, %v968
    %v1441 = vpack.c.bf16 %v985, %v969
    %v1442 = vpack.c.bf16 %v986, %v970
    %v1443 = vpack.c.bf16 %v987, %v971
    %v1444 = vpack.c.bf16 %v988, %v972
    %v1445 = vpack.c.bf16 %v989, %v973
    %v1446 = vpack.c.bf16 %v990, %v974
    %v1447 = vpack.c.bf16 %v991, %v975
    %v1448 = vpack.c.bf16 %v1016, %v1000
    %v1449 = vpack.c.bf16 %v1017, %v1001
    %v1450 = vpack.c.bf16 %v1018, %v1002
    %v1451 = vpack.c.bf16 %v1019, %v1003
    %v1452 = vpack.c.bf16 %v1020, %v1004
    %v1453 = vpack.c.bf16 %v1021, %v1005
    %v1454 = vpack.c.bf16 %v1022, %v1006
    %v1455 = vpack.c.bf16 %v1023, %v1007
    %v1456 = vpack.c.bf16 %v1048, %v1032
    %v1457 = vpack.c.bf16 %v1049, %v1033
    %v1458 = vpack.c.bf16 %v1050, %v1034
    %v1459 = vpack.c.bf16 %v1051, %v1035
    %v1460 = vpack.c.bf16 %v1052, %v1036
    %v1461 = vpack.c.bf16 %v1053, %v1037
    %v1462 = vpack.c.bf16 %v1054, %v1038
    %v1463 = vpack.c.bf16 %v1055, %v1039
    %v1464 = vpack.c.bf16 %v1080, %v1064
    %v1465 = vpack.c.bf16 %v1081, %v1065
    %v1466 = vpack.c.bf16 %v1082, %v1066
    %v1467 = vpack.c.bf16 %v1083, %v1067
    %v1468 = vpack.c.bf16 %v1084, %v1068
    %v1469 = vpack.c.bf16 %v1085, %v1069
    %v1470 = vpack.c.bf16 %v1086, %v1070
    %v1471 = vpack.c.bf16 %v1087, %v1071
    %v1472 = vld [vmem:[%s1] sm:$0xff]
    %v1473 = vld [vmem:[%s1 + $0x8] sm:$0xff]
    %v1474 = vld [vmem:[%s1 + $0x10] sm:$0xff]
    %v1475 = vld [vmem:[%s1 + $0x18] sm:$0xff]
    %v1476 = vld [vmem:[%s1 + $0x20] sm:$0xff]
    %v1477 = vld [vmem:[%s1 + $0x28] sm:$0xff]
    %v1478 = vld [vmem:[%s1 + $0x30] sm:$0xff]
    %v1479 = vld [vmem:[%s1 + $0x38] sm:$0xff]
    %v1480 = vld [vmem:[%s1 + $0x40] sm:$0xff]
    %v1481 = vld [vmem:[%s1 + $0x48] sm:$0xff]
    %v1482 = vld [vmem:[%s1 + $0x50] sm:$0xff]
    %v1483 = vld [vmem:[%s1 + $0x58] sm:$0xff]
    %v1484 = vld [vmem:[%s1 + $0x60] sm:$0xff]
    %v1485 = vld [vmem:[%s1 + $0x68] sm:$0xff]
    %v1486 = vld [vmem:[%s1 + $0x70] sm:$0xff]
    %v1487 = vld [vmem:[%s1 + $0x78] sm:$0xff]
    %v1488 = vld [vmem:[%s1 + $0x80] sm:$0xff]
    %v1489 = vld [vmem:[%s1 + $0x88] sm:$0xff]
    %v1490 = vld [vmem:[%s1 + $0x90] sm:$0xff]
    %v1491 = vld [vmem:[%s1 + $0x98] sm:$0xff]
    %v1492 = vld [vmem:[%s1 + $0xa0] sm:$0xff]
    %v1493 = vld [vmem:[%s1 + $0xa8] sm:$0xff]
    %v1494 = vld [vmem:[%s1 + $0xb0] sm:$0xff]
    %v1495 = vld [vmem:[%s1 + $0xb8] sm:$0xff]
    %v1496 = vld [vmem:[%s1 + $0xc0] sm:$0xff]
    %v1497 = vld [vmem:[%s1 + $0xc8] sm:$0xff]
    %v1498 = vld [vmem:[%s1 + $0xd0] sm:$0xff]
    %v1499 = vld [vmem:[%s1 + $0xd8] sm:$0xff]
    %v1500 = vld [vmem:[%s1 + $0xe0] sm:$0xff]
    %v1501 = vld [vmem:[%s1 + $0xe8] sm:$0xff]
    %v1502 = vld [vmem:[%s1 + $0xf0] sm:$0xff]
    %v1503 = vld [vmem:[%s1 + $0xf8] sm:$0xff]
    %v1504 = vpack.c.bf16 %v1473, %v1472
    %v1505 = vpack.c.bf16 %v1475, %v1474
    %v1506 = vpack.c.bf16 %v1477, %v1476
    %v1507 = vpack.c.bf16 %v1479, %v1478
    %v1508 = vpack.c.bf16 %v1481, %v1480
    %v1509 = vpack.c.bf16 %v1483, %v1482
    %v1510 = vpack.c.bf16 %v1485, %v1484
    %v1511 = vpack.c.bf16 %v1487, %v1486
    %v1512 = vpack.c.bf16 %v1489, %v1488
    %v1513 = vpack.c.bf16 %v1491, %v1490
    %v1514 = vpack.c.bf16 %v1493, %v1492
    %v1515 = vpack.c.bf16 %v1495, %v1494
    %v1516 = vpack.c.bf16 %v1497, %v1496
    %v1517 = vpack.c.bf16 %v1499, %v1498
    %v1518 = vpack.c.bf16 %v1501, %v1500
    %v1519 = vpack.c.bf16 %v1503, %v1502
    %v1520 = vld [vmem:[#allocation3] sm:$0xff]
    %v1521 = vld [vmem:[#allocation3 + $0x8] sm:$0xff]
    %v1522 = vld [vmem:[#allocation3 + $0x10] sm:$0xff]
    %v1523 = vld [vmem:[#allocation3 + $0x18] sm:$0xff]
    %v1524 = vld [vmem:[#allocation3 + $0x20] sm:$0xff]
    %v1525 = vld [vmem:[#allocation3 + $0x28] sm:$0xff]
    %v1526 = vld [vmem:[#allocation3 + $0x30] sm:$0xff]
    %v1527 = vld [vmem:[#allocation3 + $0x38] sm:$0xff]
    %v1528 = vld [vmem:[#allocation3 + $0x40] sm:$0xff]
    %v1529 = vld [vmem:[#allocation3 + $0x48] sm:$0xff]
    %v1530 = vld [vmem:[#allocation3 + $0x50] sm:$0xff]
    %v1531 = vld [vmem:[#allocation3 + $0x58] sm:$0xff]
    %v1532 = vld [vmem:[#allocation3 + $0x60] sm:$0xff]
    %v1533 = vld [vmem:[#allocation3 + $0x68] sm:$0xff]
    %v1534 = vld [vmem:[#allocation3 + $0x70] sm:$0xff]
    %v1535 = vld [vmem:[#allocation3 + $0x78] sm:$0xff]
    %v1536 = vld [vmem:[#allocation3 + $0x80] sm:$0xff]
    %v1537 = vld [vmem:[#allocation3 + $0x88] sm:$0xff]
    %v1538 = vld [vmem:[#allocation3 + $0x90] sm:$0xff]
    %v1539 = vld [vmem:[#allocation3 + $0x98] sm:$0xff]
    %v1540 = vld [vmem:[#allocation3 + $0xa0] sm:$0xff]
    %v1541 = vld [vmem:[#allocation3 + $0xa8] sm:$0xff]
    %v1542 = vld [vmem:[#allocation3 + $0xb0] sm:$0xff]
    %v1543 = vld [vmem:[#allocation3 + $0xb8] sm:$0xff]
    %v1544 = vld [vmem:[#allocation3 + $0xc0] sm:$0xff]
    %v1545 = vld [vmem:[#allocation3 + $0xc8] sm:$0xff]
    %v1546 = vld [vmem:[#allocation3 + $0xd0] sm:$0xff]
    %v1547 = vld [vmem:[#allocation3 + $0xd8] sm:$0xff]
    %v1548 = vld [vmem:[#allocation3 + $0xe0] sm:$0xff]
    %v1549 = vld [vmem:[#allocation3 + $0xe8] sm:$0xff]
    %v1550 = vld [vmem:[#allocation3 + $0xf0] sm:$0xff]
    %v1551 = vld [vmem:[#allocation3 + $0xf8] sm:$0xff]
    %v1552 = vld [vmem:[#allocation3 + $0x100] sm:$0xff]
    %v1553 = vld [vmem:[#allocation3 + $0x108] sm:$0xff]
    %v1554 = vld [vmem:[#allocation3 + $0x110] sm:$0xff]
    %v1555 = vld [vmem:[#allocation3 + $0x118] sm:$0xff]
    %v1556 = vld [vmem:[#allocation3 + $0x120] sm:$0xff]
    %v1557 = vld [vmem:[#allocation3 + $0x128] sm:$0xff]
    %v1558 = vld [vmem:[#allocation3 + $0x130] sm:$0xff]
    %v1559 = vld [vmem:[#allocation3 + $0x138] sm:$0xff]
    %v1560 = vld [vmem:[#allocation3 + $0x140] sm:$0xff]
    %v1561 = vld [vmem:[#allocation3 + $0x148] sm:$0xff]
    %v1562 = vld [vmem:[#allocation3 + $0x150] sm:$0xff]
    %v1563 = vld [vmem:[#allocation3 + $0x158] sm:$0xff]
    %v1564 = vld [vmem:[#allocation3 + $0x160] sm:$0xff]
    %v1565 = vld [vmem:[#allocation3 + $0x168] sm:$0xff]
    %v1566 = vld [vmem:[#allocation3 + $0x170] sm:$0xff]
    %v1567 = vld [vmem:[#allocation3 + $0x178] sm:$0xff]
    %v1568 = vld [vmem:[#allocation3 + $0x180] sm:$0xff]
    %v1569 = vld [vmem:[#allocation3 + $0x188] sm:$0xff]
    %v1570 = vld [vmem:[#allocation3 + $0x190] sm:$0xff]
    %v1571 = vld [vmem:[#allocation3 + $0x198] sm:$0xff]
    %v1572 = vld [vmem:[#allocation3 + $0x1a0] sm:$0xff]
    %v1573 = vld [vmem:[#allocation3 + $0x1a8] sm:$0xff]
    %v1574 = vld [vmem:[#allocation3 + $0x1b0] sm:$0xff]
    %v1575 = vld [vmem:[#allocation3 + $0x1b8] sm:$0xff]
    %v1576 = vld [vmem:[#allocation3 + $0x1c0] sm:$0xff]
    %v1577 = vld [vmem:[#allocation3 + $0x1c8] sm:$0xff]
    %v1578 = vld [vmem:[#allocation3 + $0x1d0] sm:$0xff]
    %v1579 = vld [vmem:[#allocation3 + $0x1d8] sm:$0xff]
    %v1580 = vld [vmem:[#allocation3 + $0x1e0] sm:$0xff]
    %v1581 = vld [vmem:[#allocation3 + $0x1e8] sm:$0xff]
    %v1582 = vld [vmem:[#allocation3 + $0x1f0] sm:$0xff]
    %v1583 = vld [vmem:[#allocation3 + $0x1f8] sm:$0xff]
    %v1584 = vld [vmem:[#allocation3 + $0x200] sm:$0xff]
    %v1585 = vld [vmem:[#allocation3 + $0x208] sm:$0xff]
    %v1586 = vld [vmem:[#allocation3 + $0x210] sm:$0xff]
    %v1587 = vld [vmem:[#allocation3 + $0x218] sm:$0xff]
    %v1588 = vld [vmem:[#allocation3 + $0x220] sm:$0xff]
    %v1589 = vld [vmem:[#allocation3 + $0x228] sm:$0xff]
    %v1590 = vld [vmem:[#allocation3 + $0x230] sm:$0xff]
    %v1591 = vld [vmem:[#allocation3 + $0x238] sm:$0xff]
    %v1592 = vld [vmem:[#allocation3 + $0x240] sm:$0xff]
    %v1593 = vld [vmem:[#allocation3 + $0x248] sm:$0xff]
    %v1594 = vld [vmem:[#allocation3 + $0x250] sm:$0xff]
    %v1595 = vld [vmem:[#allocation3 + $0x258] sm:$0xff]
    %v1596 = vld [vmem:[#allocation3 + $0x260] sm:$0xff]
    %v1597 = vld [vmem:[#allocation3 + $0x268] sm:$0xff]
    %v1598 = vld [vmem:[#allocation3 + $0x270] sm:$0xff]
    %v1599 = vld [vmem:[#allocation3 + $0x278] sm:$0xff]
    %v1600 = vld [vmem:[#allocation3 + $0x280] sm:$0xff]
    %v1601 = vld [vmem:[#allocation3 + $0x288] sm:$0xff]
    %v1602 = vld [vmem:[#allocation3 + $0x290] sm:$0xff]
    %v1603 = vld [vmem:[#allocation3 + $0x298] sm:$0xff]
    %v1604 = vld [vmem:[#allocation3 + $0x2a0] sm:$0xff]
    %v1605 = vld [vmem:[#allocation3 + $0x2a8] sm:$0xff]
    %v1606 = vld [vmem:[#allocation3 + $0x2b0] sm:$0xff]
    %v1607 = vld [vmem:[#allocation3 + $0x2b8] sm:$0xff]
    %v1608 = vld [vmem:[#allocation3 + $0x2c0] sm:$0xff]
    %v1609 = vld [vmem:[#allocation3 + $0x2c8] sm:$0xff]
    %v1610 = vld [vmem:[#allocation3 + $0x2d0] sm:$0xff]
    %v1611 = vld [vmem:[#allocation3 + $0x2d8] sm:$0xff]
    %v1612 = vld [vmem:[#allocation3 + $0x2e0] sm:$0xff]
    %v1613 = vld [vmem:[#allocation3 + $0x2e8] sm:$0xff]
    %v1614 = vld [vmem:[#allocation3 + $0x2f0] sm:$0xff]
    %v1615 = vld [vmem:[#allocation3 + $0x2f8] sm:$0xff]
    %v1616 = vld [vmem:[#allocation3 + $0x300] sm:$0xff]
    %v1617 = vld [vmem:[#allocation3 + $0x308] sm:$0xff]
    %v1618 = vld [vmem:[#allocation3 + $0x310] sm:$0xff]
    %v1619 = vld [vmem:[#allocation3 + $0x318] sm:$0xff]
    %v1620 = vld [vmem:[#allocation3 + $0x320] sm:$0xff]
    %v1621 = vld [vmem:[#allocation3 + $0x328] sm:$0xff]
    %v1622 = vld [vmem:[#allocation3 + $0x330] sm:$0xff]
    %v1623 = vld [vmem:[#allocation3 + $0x338] sm:$0xff]
    %v1624 = vld [vmem:[#allocation3 + $0x340] sm:$0xff]
    %v1625 = vld [vmem:[#allocation3 + $0x348] sm:$0xff]
    %v1626 = vld [vmem:[#allocation3 + $0x350] sm:$0xff]
    %v1627 = vld [vmem:[#allocation3 + $0x358] sm:$0xff]
    %v1628 = vld [vmem:[#allocation3 + $0x360] sm:$0xff]
    %v1629 = vld [vmem:[#allocation3 + $0x368] sm:$0xff]
    %v1630 = vld [vmem:[#allocation3 + $0x370] sm:$0xff]
    %v1631 = vld [vmem:[#allocation3 + $0x378] sm:$0xff]
    %v1632 = vld [vmem:[#allocation3 + $0x380] sm:$0xff]
    %v1633 = vld [vmem:[#allocation3 + $0x388] sm:$0xff]
    %v1634 = vld [vmem:[#allocation3 + $0x390] sm:$0xff]
    %v1635 = vld [vmem:[#allocation3 + $0x398] sm:$0xff]
    %v1636 = vld [vmem:[#allocation3 + $0x3a0] sm:$0xff]
    %v1637 = vld [vmem:[#allocation3 + $0x3a8] sm:$0xff]
    %v1638 = vld [vmem:[#allocation3 + $0x3b0] sm:$0xff]
    %v1639 = vld [vmem:[#allocation3 + $0x3b8] sm:$0xff]
    %v1640 = vld [vmem:[#allocation3 + $0x3c0] sm:$0xff]
    %v1641 = vld [vmem:[#allocation3 + $0x3c8] sm:$0xff]
    %v1642 = vld [vmem:[#allocation3 + $0x3d0] sm:$0xff]
    %v1643 = vld [vmem:[#allocation3 + $0x3d8] sm:$0xff]
    %v1644 = vld [vmem:[#allocation3 + $0x3e0] sm:$0xff]
    %v1645 = vld [vmem:[#allocation3 + $0x3e8] sm:$0xff]
    %v1646 = vld [vmem:[#allocation3 + $0x3f0] sm:$0xff]
    %v1647 = vld [vmem:[#allocation3 + $0x3f8] sm:$0xff]
    %v1648 = vld [vmem:[%s3] sm:$0x3]
    %v1650 = vperm.slane %v1648, 0
    %v1651 = vperm.slane %v1648, 1
    %v1782 = vunpack.c.l.b16 %v1520
    %v1783 = vunpack.c.h.b16 %v1520
    %v1784 = vunpack.c.l.b16 %v1521
    %v1785 = vunpack.c.h.b16 %v1521
    %v1786 = vunpack.c.l.b16 %v1522
    %v1787 = vunpack.c.h.b16 %v1522
    %v1788 = vunpack.c.l.b16 %v1523
    %v1789 = vunpack.c.h.b16 %v1523
    %v1790 = vunpack.c.l.b16 %v1524
    %v1791 = vunpack.c.h.b16 %v1524
    %v1792 = vunpack.c.l.b16 %v1525
    %v1793 = vunpack.c.h.b16 %v1525
    %v1794 = vunpack.c.l.b16 %v1526
    %v1795 = vunpack.c.h.b16 %v1526
    %v1796 = vunpack.c.l.b16 %v1527
    %v1797 = vunpack.c.h.b16 %v1527
    %v1798 = vunpack.c.l.b16 %v1528
    %v1799 = vunpack.c.h.b16 %v1528
    %v1800 = vunpack.c.l.b16 %v1529
    %v1801 = vunpack.c.h.b16 %v1529
    %v1802 = vunpack.c.l.b16 %v1530
    %v1803 = vunpack.c.h.b16 %v1530
    %v1804 = vunpack.c.l.b16 %v1531
    %v1805 = vunpack.c.h.b16 %v1531
    %v1806 = vunpack.c.l.b16 %v1532
    %v1807 = vunpack.c.h.b16 %v1532
    %v1808 = vunpack.c.l.b16 %v1533
    %v1809 = vunpack.c.h.b16 %v1533
    %v1810 = vunpack.c.l.b16 %v1534
    %v1811 = vunpack.c.h.b16 %v1534
    %v1812 = vunpack.c.l.b16 %v1535
    %v1813 = vunpack.c.h.b16 %v1535
    %v1814 = vunpack.c.l.b16 %v1536
    %v1815 = vunpack.c.h.b16 %v1536
    %v1816 = vunpack.c.l.b16 %v1537
    %v1817 = vunpack.c.h.b16 %v1537
    %v1818 = vunpack.c.l.b16 %v1538
    %v1819 = vunpack.c.h.b16 %v1538
    %v1820 = vunpack.c.l.b16 %v1539
    %v1821 = vunpack.c.h.b16 %v1539
    %v1822 = vunpack.c.l.b16 %v1540
    %v1823 = vunpack.c.h.b16 %v1540
    %v1824 = vunpack.c.l.b16 %v1541
    %v1825 = vunpack.c.h.b16 %v1541
    %v1826 = vunpack.c.l.b16 %v1542
    %v1827 = vunpack.c.h.b16 %v1542
    %v1828 = vunpack.c.l.b16 %v1543
    %v1829 = vunpack.c.h.b16 %v1543
    %v1830 = vunpack.c.l.b16 %v1544
    %v1831 = vunpack.c.h.b16 %v1544
    %v1832 = vunpack.c.l.b16 %v1545
    %v1833 = vunpack.c.h.b16 %v1545
    %v1834 = vunpack.c.l.b16 %v1546
    %v1835 = vunpack.c.h.b16 %v1546
    %v1836 = vunpack.c.l.b16 %v1547
    %v1837 = vunpack.c.h.b16 %v1547
    %v1838 = vunpack.c.l.b16 %v1548
    %v1839 = vunpack.c.h.b16 %v1548
    %v1840 = vunpack.c.l.b16 %v1549
    %v1841 = vunpack.c.h.b16 %v1549
    %v1842 = vunpack.c.l.b16 %v1550
    %v1843 = vunpack.c.h.b16 %v1550
    %v1844 = vunpack.c.l.b16 %v1551
    %v1845 = vunpack.c.h.b16 %v1551
    %v1846 = vunpack.c.l.b16 %v1552
    %v1847 = vunpack.c.h.b16 %v1552
    %v1848 = vunpack.c.l.b16 %v1553
    %v1849 = vunpack.c.h.b16 %v1553
    %v1850 = vunpack.c.l.b16 %v1554
    %v1851 = vunpack.c.h.b16 %v1554
    %v1852 = vunpack.c.l.b16 %v1555
    %v1853 = vunpack.c.h.b16 %v1555
    %v1854 = vunpack.c.l.b16 %v1556
    %v1855 = vunpack.c.h.b16 %v1556
    %v1856 = vunpack.c.l.b16 %v1557
    %v1857 = vunpack.c.h.b16 %v1557
    %v1858 = vunpack.c.l.b16 %v1558
    %v1859 = vunpack.c.h.b16 %v1558
    %v1860 = vunpack.c.l.b16 %v1559
    %v1861 = vunpack.c.h.b16 %v1559
    %v1862 = vunpack.c.l.b16 %v1560
    %v1863 = vunpack.c.h.b16 %v1560
    %v1864 = vunpack.c.l.b16 %v1561
    %v1865 = vunpack.c.h.b16 %v1561
    %v1866 = vunpack.c.l.b16 %v1562
    %v1867 = vunpack.c.h.b16 %v1562
    %v1868 = vunpack.c.l.b16 %v1563
    %v1869 = vunpack.c.h.b16 %v1563
    %v1870 = vunpack.c.l.b16 %v1564
    %v1871 = vunpack.c.h.b16 %v1564
    %v1872 = vunpack.c.l.b16 %v1565
    %v1873 = vunpack.c.h.b16 %v1565
    %v1874 = vunpack.c.l.b16 %v1566
    %v1875 = vunpack.c.h.b16 %v1566
    %v1876 = vunpack.c.l.b16 %v1567
    %v1877 = vunpack.c.h.b16 %v1567
    %v1878 = vunpack.c.l.b16 %v1568
    %v1879 = vunpack.c.h.b16 %v1568
    %v1880 = vunpack.c.l.b16 %v1569
    %v1881 = vunpack.c.h.b16 %v1569
    %v1882 = vunpack.c.l.b16 %v1570
    %v1883 = vunpack.c.h.b16 %v1570
    %v1884 = vunpack.c.l.b16 %v1571
    %v1885 = vunpack.c.h.b16 %v1571
    %v1886 = vunpack.c.l.b16 %v1572
    %v1887 = vunpack.c.h.b16 %v1572
    %v1888 = vunpack.c.l.b16 %v1573
    %v1889 = vunpack.c.h.b16 %v1573
    %v1890 = vunpack.c.l.b16 %v1574
    %v1891 = vunpack.c.h.b16 %v1574
    %v1892 = vunpack.c.l.b16 %v1575
    %v1893 = vunpack.c.h.b16 %v1575
    %v1894 = vunpack.c.l.b16 %v1576
    %v1895 = vunpack.c.h.b16 %v1576
    %v1896 = vunpack.c.l.b16 %v1577
    %v1897 = vunpack.c.h.b16 %v1577
    %v1898 = vunpack.c.l.b16 %v1578
    %v1899 = vunpack.c.h.b16 %v1578
    %v1900 = vunpack.c.l.b16 %v1579
    %v1901 = vunpack.c.h.b16 %v1579
    %v1902 = vunpack.c.l.b16 %v1580
    %v1903 = vunpack.c.h.b16 %v1580
    %v1904 = vunpack.c.l.b16 %v1581
    %v1905 = vunpack.c.h.b16 %v1581
    %v1906 = vunpack.c.l.b16 %v1582
    %v1907 = vunpack.c.h.b16 %v1582
    %v1908 = vunpack.c.l.b16 %v1583
    %v1909 = vunpack.c.h.b16 %v1583
    %v1910 = vunpack.c.l.b16 %v1584
    %v1911 = vunpack.c.h.b16 %v1584
    %v1912 = vunpack.c.l.b16 %v1585
    %v1913 = vunpack.c.h.b16 %v1585
    %v1914 = vunpack.c.l.b16 %v1586
    %v1915 = vunpack.c.h.b16 %v1586
    %v1916 = vunpack.c.l.b16 %v1587
    %v1917 = vunpack.c.h.b16 %v1587
    %v1918 = vunpack.c.l.b16 %v1588
    %v1919 = vunpack.c.h.b16 %v1588
    %v1920 = vunpack.c.l.b16 %v1589
    %v1921 = vunpack.c.h.b16 %v1589
    %v1922 = vunpack.c.l.b16 %v1590
    %v1923 = vunpack.c.h.b16 %v1590
    %v1924 = vunpack.c.l.b16 %v1591
    %v1925 = vunpack.c.h.b16 %v1591
    %v1926 = vunpack.c.l.b16 %v1592
    %v1927 = vunpack.c.h.b16 %v1592
    %v1928 = vunpack.c.l.b16 %v1593
    %v1929 = vunpack.c.h.b16 %v1593
    %v1930 = vunpack.c.l.b16 %v1594
    %v1931 = vunpack.c.h.b16 %v1594
    %v1932 = vunpack.c.l.b16 %v1595
    %v1933 = vunpack.c.h.b16 %v1595
    %v1934 = vunpack.c.l.b16 %v1596
    %v1935 = vunpack.c.h.b16 %v1596
    %v1936 = vunpack.c.l.b16 %v1597
    %v1937 = vunpack.c.h.b16 %v1597
    %v1938 = vunpack.c.l.b16 %v1598
    %v1939 = vunpack.c.h.b16 %v1598
    %v1940 = vunpack.c.l.b16 %v1599
    %v1941 = vunpack.c.h.b16 %v1599
    %v1942 = vunpack.c.l.b16 %v1600
    %v1943 = vunpack.c.h.b16 %v1600
    %v1944 = vunpack.c.l.b16 %v1601
    %v1945 = vunpack.c.h.b16 %v1601
    %v1946 = vunpack.c.l.b16 %v1602
    %v1947 = vunpack.c.h.b16 %v1602
    %v1948 = vunpack.c.l.b16 %v1603
    %v1949 = vunpack.c.h.b16 %v1603
    %v1950 = vunpack.c.l.b16 %v1604
    %v1951 = vunpack.c.h.b16 %v1604
    %v1952 = vunpack.c.l.b16 %v1605
    %v1953 = vunpack.c.h.b16 %v1605
    %v1954 = vunpack.c.l.b16 %v1606
    %v1955 = vunpack.c.h.b16 %v1606
    %v1956 = vunpack.c.l.b16 %v1607
    %v1957 = vunpack.c.h.b16 %v1607
    %v1958 = vunpack.c.l.b16 %v1608
    %v1959 = vunpack.c.h.b16 %v1608
    %v1960 = vunpack.c.l.b16 %v1609
    %v1961 = vunpack.c.h.b16 %v1609
    %v1962 = vunpack.c.l.b16 %v1610
    %v1963 = vunpack.c.h.b16 %v1610
    %v1964 = vunpack.c.l.b16 %v1611
    %v1965 = vunpack.c.h.b16 %v1611
    %v1966 = vunpack.c.l.b16 %v1612
    %v1967 = vunpack.c.h.b16 %v1612
    %v1968 = vunpack.c.l.b16 %v1613
    %v1969 = vunpack.c.h.b16 %v1613
    %v1970 = vunpack.c.l.b16 %v1614
    %v1971 = vunpack.c.h.b16 %v1614
    %v1972 = vunpack.c.l.b16 %v1615
    %v1973 = vunpack.c.h.b16 %v1615
    %v1974 = vunpack.c.l.b16 %v1616
    %v1975 = vunpack.c.h.b16 %v1616
    %v1976 = vunpack.c.l.b16 %v1617
    %v1977 = vunpack.c.h.b16 %v1617
    %v1978 = vunpack.c.l.b16 %v1618
    %v1979 = vunpack.c.h.b16 %v1618
    %v1980 = vunpack.c.l.b16 %v1619
    %v1981 = vunpack.c.h.b16 %v1619
    %v1982 = vunpack.c.l.b16 %v1620
    %v1983 = vunpack.c.h.b16 %v1620
    %v1984 = vunpack.c.l.b16 %v1621
    %v1985 = vunpack.c.h.b16 %v1621
    %v1986 = vunpack.c.l.b16 %v1622
    %v1987 = vunpack.c.h.b16 %v1622
    %v1988 = vunpack.c.l.b16 %v1623
    %v1989 = vunpack.c.h.b16 %v1623
    %v1990 = vunpack.c.l.b16 %v1624
    %v1991 = vunpack.c.h.b16 %v1624
    %v1992 = vunpack.c.l.b16 %v1625
    %v1993 = vunpack.c.h.b16 %v1625
    %v1994 = vunpack.c.l.b16 %v1626
    %v1995 = vunpack.c.h.b16 %v1626
    %v1996 = vunpack.c.l.b16 %v1627
    %v1997 = vunpack.c.h.b16 %v1627
    %v1998 = vunpack.c.l.b16 %v1628
    %v1999 = vunpack.c.h.b16 %v1628
    %v2000 = vunpack.c.l.b16 %v1629
    %v2001 = vunpack.c.h.b16 %v1629
    %v2002 = vunpack.c.l.b16 %v1630
    %v2003 = vunpack.c.h.b16 %v1630
    %v2004 = vunpack.c.l.b16 %v1631
    %v2005 = vunpack.c.h.b16 %v1631
    %v2006 = vunpack.c.l.b16 %v1632
    %v2007 = vunpack.c.h.b16 %v1632
    %v2008 = vunpack.c.l.b16 %v1633
    %v2009 = vunpack.c.h.b16 %v1633
    %v2010 = vunpack.c.l.b16 %v1634
    %v2011 = vunpack.c.h.b16 %v1634
    %v2012 = vunpack.c.l.b16 %v1635
    %v2013 = vunpack.c.h.b16 %v1635
    %v2014 = vunpack.c.l.b16 %v1636
    %v2015 = vunpack.c.h.b16 %v1636
    %v2016 = vunpack.c.l.b16 %v1637
    %v2017 = vunpack.c.h.b16 %v1637
    %v2018 = vunpack.c.l.b16 %v1638
    %v2019 = vunpack.c.h.b16 %v1638
    %v2020 = vunpack.c.l.b16 %v1639
    %v2021 = vunpack.c.h.b16 %v1639
    %v2022 = vunpack.c.l.b16 %v1640
    %v2023 = vunpack.c.h.b16 %v1640
    %v2024 = vunpack.c.l.b16 %v1641
    %v2025 = vunpack.c.h.b16 %v1641
    %v2026 = vunpack.c.l.b16 %v1642
    %v2027 = vunpack.c.h.b16 %v1642
    %v2028 = vunpack.c.l.b16 %v1643
    %v2029 = vunpack.c.h.b16 %v1643
    %v2030 = vunpack.c.l.b16 %v1644
    %v2031 = vunpack.c.h.b16 %v1644
    %v2032 = vunpack.c.l.b16 %v1645
    %v2033 = vunpack.c.h.b16 %v1645
    %v2034 = vunpack.c.l.b16 %v1646
    %v2035 = vunpack.c.h.b16 %v1646
    %v2036 = vunpack.c.l.b16 %v1647
    %v2037 = vunpack.c.h.b16 %v1647
    %v2038 = vpack.c.b16 %v1784, %v1782
    %v2039 = vpack.c.b16 %v1785, %v1783
    %v2040 = vpack.c.b16 %v1788, %v1786
    %v2041 = vpack.c.b16 %v1789, %v1787
    %v2042 = vpack.c.b16 %v1792, %v1790
    %v2043 = vpack.c.b16 %v1793, %v1791
    %v2044 = vpack.c.b16 %v1796, %v1794
    %v2045 = vpack.c.b16 %v1797, %v1795
    %v2046 = vpack.c.b16 %v1800, %v1798
    %v2047 = vpack.c.b16 %v1801, %v1799
    %v2048 = vpack.c.b16 %v1804, %v1802
    %v2049 = vpack.c.b16 %v1805, %v1803
    %v2050 = vpack.c.b16 %v1808, %v1806
    %v2051 = vpack.c.b16 %v1809, %v1807
    %v2052 = vpack.c.b16 %v1812, %v1810
    %v2053 = vpack.c.b16 %v1813, %v1811
    %v2054 = vpack.c.b16 %v1816, %v1814
    %v2055 = vpack.c.b16 %v1817, %v1815
    %v2056 = vpack.c.b16 %v1820, %v1818
    %v2057 = vpack.c.b16 %v1821, %v1819
    %v2058 = vpack.c.b16 %v1824, %v1822
    %v2059 = vpack.c.b16 %v1825, %v1823
    %v2060 = vpack.c.b16 %v1828, %v1826
    %v2061 = vpack.c.b16 %v1829, %v1827
    %v2062 = vpack.c.b16 %v1832, %v1830
    %v2063 = vpack.c.b16 %v1833, %v1831
    %v2064 = vpack.c.b16 %v1836, %v1834
    %v2065 = vpack.c.b16 %v1837, %v1835
    %v2066 = vpack.c.b16 %v1840, %v1838
    %v2067 = vpack.c.b16 %v1841, %v1839
    %v2068 = vpack.c.b16 %v1844, %v1842
    %v2069 = vpack.c.b16 %v1845, %v1843
    %v2070 = vpack.c.b16 %v1848, %v1846
    %v2071 = vpack.c.b16 %v1849, %v1847
    %v2072 = vpack.c.b16 %v1852, %v1850
    %v2073 = vpack.c.b16 %v1853, %v1851
    %v2074 = vpack.c.b16 %v1856, %v1854
    %v2075 = vpack.c.b16 %v1857, %v1855
    %v2076 = vpack.c.b16 %v1860, %v1858
    %v2077 = vpack.c.b16 %v1861, %v1859
    %v2078 = vpack.c.b16 %v1864, %v1862
    %v2079 = vpack.c.b16 %v1865, %v1863
    %v2080 = vpack.c.b16 %v1868, %v1866
    %v2081 = vpack.c.b16 %v1869, %v1867
    %v2082 = vpack.c.b16 %v1872, %v1870
    %v2083 = vpack.c.b16 %v1873, %v1871
    %v2084 = vpack.c.b16 %v1876, %v1874
    %v2085 = vpack.c.b16 %v1877, %v1875
    %v2086 = vpack.c.b16 %v1880, %v1878
    %v2087 = vpack.c.b16 %v1881, %v1879
    %v2088 = vpack.c.b16 %v1884, %v1882
    %v2089 = vpack.c.b16 %v1885, %v1883
    %v2090 = vpack.c.b16 %v1888, %v1886
    %v2091 = vpack.c.b16 %v1889, %v1887
    %v2092 = vpack.c.b16 %v1892, %v1890
    %v2093 = vpack.c.b16 %v1893, %v1891
    %v2094 = vpack.c.b16 %v1896, %v1894
    %v2095 = vpack.c.b16 %v1897, %v1895
    %v2096 = vpack.c.b16 %v1900, %v1898
    %v2097 = vpack.c.b16 %v1901, %v1899
    %v2098 = vpack.c.b16 %v1904, %v1902
    %v2099 = vpack.c.b16 %v1905, %v1903
    %v2100 = vpack.c.b16 %v1908, %v1906
    %v2101 = vpack.c.b16 %v1909, %v1907
    %v2102 = vpack.c.b16 %v1912, %v1910
    %v2103 = vpack.c.b16 %v1913, %v1911
    %v2104 = vpack.c.b16 %v1916, %v1914
    %v2105 = vpack.c.b16 %v1917, %v1915
    %v2106 = vpack.c.b16 %v1920, %v1918
    %v2107 = vpack.c.b16 %v1921, %v1919
    %v2108 = vpack.c.b16 %v1924, %v1922
    %v2109 = vpack.c.b16 %v1925, %v1923
    %v2110 = vpack.c.b16 %v1928, %v1926
    %v2111 = vpack.c.b16 %v1929, %v1927
    %v2112 = vpack.c.b16 %v1932, %v1930
    %v2113 = vpack.c.b16 %v1933, %v1931
    %v2114 = vpack.c.b16 %v1936, %v1934
    %v2115 = vpack.c.b16 %v1937, %v1935
    %v2116 = vpack.c.b16 %v1940, %v1938
    %v2117 = vpack.c.b16 %v1941, %v1939
    %v2118 = vpack.c.b16 %v1944, %v1942
    %v2119 = vpack.c.b16 %v1945, %v1943
    %v2120 = vpack.c.b16 %v1948, %v1946
    %v2121 = vpack.c.b16 %v1949, %v1947
    %v2122 = vpack.c.b16 %v1952, %v1950
    %v2123 = vpack.c.b16 %v1953, %v1951
    %v2124 = vpack.c.b16 %v1956, %v1954
    %v2125 = vpack.c.b16 %v1957, %v1955
    %v2126 = vpack.c.b16 %v1960, %v1958
    %v2127 = vpack.c.b16 %v1961, %v1959
    %v2128 = vpack.c.b16 %v1964, %v1962
    %v2129 = vpack.c.b16 %v1965, %v1963
    %v2130 = vpack.c.b16 %v1968, %v1966
    %v2131 = vpack.c.b16 %v1969, %v1967
    %v2132 = vpack.c.b16 %v1972, %v1970
    %v2133 = vpack.c.b16 %v1973, %v1971
    %v2134 = vpack.c.b16 %v1976, %v1974
    %v2135 = vpack.c.b16 %v1977, %v1975
    %v2136 = vpack.c.b16 %v1980, %v1978
    %v2137 = vpack.c.b16 %v1981, %v1979
    %v2138 = vpack.c.b16 %v1984, %v1982
    %v2139 = vpack.c.b16 %v1985, %v1983
    %v2140 = vpack.c.b16 %v1988, %v1986
    %v2141 = vpack.c.b16 %v1989, %v1987
    %v2142 = vpack.c.b16 %v1992, %v1990
    %v2143 = vpack.c.b16 %v1993, %v1991
    %v2144 = vpack.c.b16 %v1996, %v1994
    %v2145 = vpack.c.b16 %v1997, %v1995
    %v2146 = vpack.c.b16 %v2000, %v1998
    %v2147 = vpack.c.b16 %v2001, %v1999
    %v2148 = vpack.c.b16 %v2004, %v2002
    %v2149 = vpack.c.b16 %v2005, %v2003
    %v2150 = vpack.c.b16 %v2008, %v2006
    %v2151 = vpack.c.b16 %v2009, %v2007
    %v2152 = vpack.c.b16 %v2012, %v2010
    %v2153 = vpack.c.b16 %v2013, %v2011
    %v2154 = vpack.c.b16 %v2016, %v2014
    %v2155 = vpack.c.b16 %v2017, %v2015
    %v2156 = vpack.c.b16 %v2020, %v2018
    %v2157 = vpack.c.b16 %v2021, %v2019
    %v2158 = vpack.c.b16 %v2024, %v2022
    %v2159 = vpack.c.b16 %v2025, %v2023
    %v2160 = vpack.c.b16 %v2028, %v2026
    %v2161 = vpack.c.b16 %v2029, %v2027
    %v2162 = vpack.c.b16 %v2032, %v2030
    %v2163 = vpack.c.b16 %v2033, %v2031
    %v2164 = vpack.c.b16 %v2036, %v2034
    %v2165 = vpack.c.b16 %v2037, %v2035
    %2294 = vmatpush.bf16.msra.mxu0 %v2052
    %2295 = vmatpush.bf16.msra.mxu0 %v2050
    %2296 = vmatpush.bf16.msra.mxu0 %v2048
    %2297 = vmatpush.bf16.msra.mxu0 %v2046
    %2298 = vmatpush.bf16.msra.mxu0 %v2044
    %2299 = vmatpush.bf16.msra.mxu0 %v2042
    %2300 = vmatpush.bf16.msra.mxu0 %v2040
    %2301 = vmatpush.bf16.msra.mxu0 %v2038
    %2302 = vmatmul.bf16.gmra.mxu0 %v1344
    %v2303 = vpop.f32.mrf.mxu0
    %v2304 = vadd.f32 %v1650, %v2303
    %v2305 = vpop.f32.mrf.mxu0
    %v2306 = vadd.f32 %v1650, %v2305
    %2307 = vmatmul.bf16.gmra.mxu0 %v1352
    %v2308 = vpop.f32.mrf.mxu0
    %v2309 = vadd.f32 %v1650, %v2308
    %v2310 = vpop.f32.mrf.mxu0
    %v2311 = vadd.f32 %v1650, %v2310
    %2312 = vmatmul.bf16.gmra.mxu0 %v1360
    %v2313 = vpop.f32.mrf.mxu0
    %v2314 = vadd.f32 %v1650, %v2313
    %v2315 = vpop.f32.mrf.mxu0
    %v2316 = vadd.f32 %v1650, %v2315
    %2317 = vmatmul.bf16.gmra.mxu0 %v1368
    %v2318 = vpop.f32.mrf.mxu0
    %v2319 = vadd.f32 %v1650, %v2318
    %v2320 = vpop.f32.mrf.mxu0
    %v2321 = vadd.f32 %v1650, %v2320
    %2322 = vmatmul.bf16.gmra.mxu0 %v1376
    %v2323 = vpop.f32.mrf.mxu0
    %v2324 = vadd.f32 %v1650, %v2323
    %v2325 = vpop.f32.mrf.mxu0
    %v2326 = vadd.f32 %v1650, %v2325
    %2327 = vmatmul.bf16.gmra.mxu0 %v1384
    %v2328 = vpop.f32.mrf.mxu0
    %v2329 = vadd.f32 %v1650, %v2328
    %v2330 = vpop.f32.mrf.mxu0
    %v2331 = vadd.f32 %v1650, %v2330
    %2332 = vmatmul.bf16.gmra.mxu0 %v1392
    %v2333 = vpop.f32.mrf.mxu0
    %v2334 = vadd.f32 %v1650, %v2333
    %v2335 = vpop.f32.mrf.mxu0
    %v2336 = vadd.f32 %v1650, %v2335
    %2337 = vmatmul.bf16.gmra.mxu0 %v1400
    %v2338 = vpop.f32.mrf.mxu0
    %v2339 = vadd.f32 %v1650, %v2338
    %v2340 = vpop.f32.mrf.mxu0
    %v2341 = vadd.f32 %v1650, %v2340
    %2342 = vmatmul.bf16.gmra.mxu0 %v1408
    %v2343 = vpop.f32.mrf.mxu0
    %v2344 = vadd.f32 %v1650, %v2343
    %v2345 = vpop.f32.mrf.mxu0
    %v2346 = vadd.f32 %v1650, %v2345
    %2347 = vmatmul.bf16.gmra.mxu0 %v1416
    %v2348 = vpop.f32.mrf.mxu0
    %v2349 = vadd.f32 %v1650, %v2348
    %v2350 = vpop.f32.mrf.mxu0
    %v2351 = vadd.f32 %v1650, %v2350
    %2352 = vmatmul.bf16.gmra.mxu0 %v1424
    %v2353 = vpop.f32.mrf.mxu0
    %v2354 = vadd.f32 %v1650, %v2353
    %v2355 = vpop.f32.mrf.mxu0
    %v2356 = vadd.f32 %v1650, %v2355
    %2357 = vmatmul.bf16.gmra.mxu0 %v1432
    %v2358 = vpop.f32.mrf.mxu0
    %v2359 = vadd.f32 %v1650, %v2358
    %v2360 = vpop.f32.mrf.mxu0
    %v2361 = vadd.f32 %v1650, %v2360
    %2362 = vmatmul.bf16.gmra.mxu0 %v1440
    %v2363 = vpop.f32.mrf.mxu0
    %v2364 = vadd.f32 %v1650, %v2363
    %v2365 = vpop.f32.mrf.mxu0
    %v2366 = vadd.f32 %v1650, %v2365
    %2367 = vmatmul.bf16.gmra.mxu0 %v1448
    %v2368 = vpop.f32.mrf.mxu0
    %v2369 = vadd.f32 %v1650, %v2368
    %v2370 = vpop.f32.mrf.mxu0
    %v2371 = vadd.f32 %v1650, %v2370
    %2372 = vmatmul.bf16.gmra.mxu0 %v1456
    %v2373 = vpop.f32.mrf.mxu0
    %v2374 = vadd.f32 %v1650, %v2373
    %v2375 = vpop.f32.mrf.mxu0
    %v2376 = vadd.f32 %v1650, %v2375
    %2377 = vmatmul.bf16.gmra.mxu0 %v1464
    %v2378 = vpop.f32.mrf.mxu0
    %v2379 = vadd.f32 %v1650, %v2378
    %v2380 = vpop.f32.mrf.mxu0
    %v2381 = vadd.f32 %v1650, %v2380
    %2382 = vdwg.mxu0
    %2383 = vmatpush.bf16.msra.mxu0 %v2068
    %2384 = vmatpush.bf16.msra.mxu0 %v2066
    %2385 = vmatpush.bf16.msra.mxu0 %v2064
    %2386 = vmatpush.bf16.msra.mxu0 %v2062
    %2387 = vmatpush.bf16.msra.mxu0 %v2060
    %2388 = vmatpush.bf16.msra.mxu0 %v2058
    %2389 = vmatpush.bf16.msra.mxu0 %v2056
    %2390 = vmatpush.bf16.msra.mxu0 %v2054
    %2391 = vmatmul.bf16.gmra.mxu0 %v1345
    %v2392 = vpop.f32.mrf.mxu0
    %v2393 = vadd.f32 %v2304, %v2392
    %v2394 = vpop.f32.mrf.mxu0
    %v2395 = vadd.f32 %v2306, %v2394
    %2396 = vmatmul.bf16.gmra.mxu0 %v1353
    %v2397 = vpop.f32.mrf.mxu0
    %v2398 = vadd.f32 %v2309, %v2397
    %v2399 = vpop.f32.mrf.mxu0
    %v2400 = vadd.f32 %v2311, %v2399
    %2401 = vmatmul.bf16.gmra.mxu0 %v1361
    %v2402 = vpop.f32.mrf.mxu0
    %v2403 = vadd.f32 %v2314, %v2402
    %v2404 = vpop.f32.mrf.mxu0
    %v2405 = vadd.f32 %v2316, %v2404
    %2406 = vmatmul.bf16.gmra.mxu0 %v1369
    %v2407 = vpop.f32.mrf.mxu0
    %v2408 = vadd.f32 %v2319, %v2407
    %v2409 = vpop.f32.mrf.mxu0
    %v2410 = vadd.f32 %v2321, %v2409
    %2411 = vmatmul.bf16.gmra.mxu0 %v1377
    %v2412 = vpop.f32.mrf.mxu0
    %v2413 = vadd.f32 %v2324, %v2412
    %v2414 = vpop.f32.mrf.mxu0
    %v2415 = vadd.f32 %v2326, %v2414
    %2416 = vmatmul.bf16.gmra.mxu0 %v1385
    %v2417 = vpop.f32.mrf.mxu0
    %v2418 = vadd.f32 %v2329, %v2417
    %v2419 = vpop.f32.mrf.mxu0
    %v2420 = vadd.f32 %v2331, %v2419
    %2421 = vmatmul.bf16.gmra.mxu0 %v1393
    %v2422 = vpop.f32.mrf.mxu0
    %v2423 = vadd.f32 %v2334, %v2422
    %v2424 = vpop.f32.mrf.mxu0
    %v2425 = vadd.f32 %v2336, %v2424
    %2426 = vmatmul.bf16.gmra.mxu0 %v1401
    %v2427 = vpop.f32.mrf.mxu0
    %v2428 = vadd.f32 %v2339, %v2427
    %v2429 = vpop.f32.mrf.mxu0
    %v2430 = vadd.f32 %v2341, %v2429
    %2431 = vmatmul.bf16.gmra.mxu0 %v1409
    %v2432 = vpop.f32.mrf.mxu0
    %v2433 = vadd.f32 %v2344, %v2432
    %v2434 = vpop.f32.mrf.mxu0
    %v2435 = vadd.f32 %v2346, %v2434
    %2436 = vmatmul.bf16.gmra.mxu0 %v1417
    %v2437 = vpop.f32.mrf.mxu0
    %v2438 = vadd.f32 %v2349, %v2437
    %v2439 = vpop.f32.mrf.mxu0
    %v2440 = vadd.f32 %v2351, %v2439
    %2441 = vmatmul.bf16.gmra.mxu0 %v1425
    %v2442 = vpop.f32.mrf.mxu0
    %v2443 = vadd.f32 %v2354, %v2442
    %v2444 = vpop.f32.mrf.mxu0
    %v2445 = vadd.f32 %v2356, %v2444
    %2446 = vmatmul.bf16.gmra.mxu0 %v1433
    %v2447 = vpop.f32.mrf.mxu0
    %v2448 = vadd.f32 %v2359, %v2447
    %v2449 = vpop.f32.mrf.mxu0
    %v2450 = vadd.f32 %v2361, %v2449
    %2451 = vmatmul.bf16.gmra.mxu0 %v1441
    %v2452 = vpop.f32.mrf.mxu0
    %v2453 = vadd.f32 %v2364, %v2452
    %v2454 = vpop.f32.mrf.mxu0
    %v2455 = vadd.f32 %v2366, %v2454
    %2456 = vmatmul.bf16.gmra.mxu0 %v1449
    %v2457 = vpop.f32.mrf.mxu0
    %v2458 = vadd.f32 %v2369, %v2457
    %v2459 = vpop.f32.mrf.mxu0
    %v2460 = vadd.f32 %v2371, %v2459
    %2461 = vmatmul.bf16.gmra.mxu0 %v1457
    %v2462 = vpop.f32.mrf.mxu0
    %v2463 = vadd.f32 %v2374, %v2462
    %v2464 = vpop.f32.mrf.mxu0
    %v2465 = vadd.f32 %v2376, %v2464
    %2466 = vmatmul.bf16.gmra.mxu0 %v1465
    %v2467 = vpop.f32.mrf.mxu0
    %v2468 = vadd.f32 %v2379, %v2467
    %v2469 = vpop.f32.mrf.mxu0
    %v2470 = vadd.f32 %v2381, %v2469
    %2471 = vdwg.mxu0
    %2472 = vmatpush.bf16.msra.mxu0 %v2084
    %2473 = vmatpush.bf16.msra.mxu0 %v2082
    %2474 = vmatpush.bf16.msra.mxu0 %v2080
    %2475 = vmatpush.bf16.msra.mxu0 %v2078
    %2476 = vmatpush.bf16.msra.mxu0 %v2076
    %2477 = vmatpush.bf16.msra.mxu0 %v2074
    %2478 = vmatpush.bf16.msra.mxu0 %v2072
    %2479 = vmatpush.bf16.msra.mxu0 %v2070
    %2480 = vmatmul.bf16.gmra.mxu0 %v1346
    %v2481 = vpop.f32.mrf.mxu0
    %v2482 = vadd.f32 %v2393, %v2481
    %v2483 = vpop.f32.mrf.mxu0
    %v2484 = vadd.f32 %v2395, %v2483
    %2485 = vmatmul.bf16.gmra.mxu0 %v1354
    %v2486 = vpop.f32.mrf.mxu0
    %v2487 = vadd.f32 %v2398, %v2486
    %v2488 = vpop.f32.mrf.mxu0
    %v2489 = vadd.f32 %v2400, %v2488
    %2490 = vmatmul.bf16.gmra.mxu0 %v1362
    %v2491 = vpop.f32.mrf.mxu0
    %v2492 = vadd.f32 %v2403, %v2491
    %v2493 = vpop.f32.mrf.mxu0
    %v2494 = vadd.f32 %v2405, %v2493
    %2495 = vmatmul.bf16.gmra.mxu0 %v1370
    %v2496 = vpop.f32.mrf.mxu0
    %v2497 = vadd.f32 %v2408, %v2496
    %v2498 = vpop.f32.mrf.mxu0
    %v2499 = vadd.f32 %v2410, %v2498
    %2500 = vmatmul.bf16.gmra.mxu0 %v1378
    %v2501 = vpop.f32.mrf.mxu0
    %v2502 = vadd.f32 %v2413, %v2501
    %v2503 = vpop.f32.mrf.mxu0
    %v2504 = vadd.f32 %v2415, %v2503
    %2505 = vmatmul.bf16.gmra.mxu0 %v1386
    %v2506 = vpop.f32.mrf.mxu0
    %v2507 = vadd.f32 %v2418, %v2506
    %v2508 = vpop.f32.mrf.mxu0
    %v2509 = vadd.f32 %v2420, %v2508
    %2510 = vmatmul.bf16.gmra.mxu0 %v1394
    %v2511 = vpop.f32.mrf.mxu0
    %v2512 = vadd.f32 %v2423, %v2511
    %v2513 = vpop.f32.mrf.mxu0
    %v2514 = vadd.f32 %v2425, %v2513
    %2515 = vmatmul.bf16.gmra.mxu0 %v1402
    %v2516 = vpop.f32.mrf.mxu0
    %v2517 = vadd.f32 %v2428, %v2516
    %v2518 = vpop.f32.mrf.mxu0
    %v2519 = vadd.f32 %v2430, %v2518
    %2520 = vmatmul.bf16.gmra.mxu0 %v1410
    %v2521 = vpop.f32.mrf.mxu0
    %v2522 = vadd.f32 %v2433, %v2521
    %v2523 = vpop.f32.mrf.mxu0
    %v2524 = vadd.f32 %v2435, %v2523
    %2525 = vmatmul.bf16.gmra.mxu0 %v1418
    %v2526 = vpop.f32.mrf.mxu0
    %v2527 = vadd.f32 %v2438, %v2526
    %v2528 = vpop.f32.mrf.mxu0
    %v2529 = vadd.f32 %v2440, %v2528
    %2530 = vmatmul.bf16.gmra.mxu0 %v1426
    %v2531 = vpop.f32.mrf.mxu0
    %v2532 = vadd.f32 %v2443, %v2531
    %v2533 = vpop.f32.mrf.mxu0
    %v2534 = vadd.f32 %v2445, %v2533
    %2535 = vmatmul.bf16.gmra.mxu0 %v1434
    %v2536 = vpop.f32.mrf.mxu0
    %v2537 = vadd.f32 %v2448, %v2536
    %v2538 = vpop.f32.mrf.mxu0
    %v2539 = vadd.f32 %v2450, %v2538
    %2540 = vmatmul.bf16.gmra.mxu0 %v1442
    %v2541 = vpop.f32.mrf.mxu0
    %v2542 = vadd.f32 %v2453, %v2541
    %v2543 = vpop.f32.mrf.mxu0
    %v2544 = vadd.f32 %v2455, %v2543
    %2545 = vmatmul.bf16.gmra.mxu0 %v1450
    %v2546 = vpop.f32.mrf.mxu0
    %v2547 = vadd.f32 %v2458, %v2546
    %v2548 = vpop.f32.mrf.mxu0
    %v2549 = vadd.f32 %v2460, %v2548
    %2550 = vmatmul.bf16.gmra.mxu0 %v1458
    %v2551 = vpop.f32.mrf.mxu0
    %v2552 = vadd.f32 %v2463, %v2551
    %v2553 = vpop.f32.mrf.mxu0
    %v2554 = vadd.f32 %v2465, %v2553
    %2555 = vmatmul.bf16.gmra.mxu0 %v1466
    %v2556 = vpop.f32.mrf.mxu0
    %v2557 = vadd.f32 %v2468, %v2556
    %v2558 = vpop.f32.mrf.mxu0
    %v2559 = vadd.f32 %v2470, %v2558
    %2560 = vdwg.mxu0
    %2561 = vmatpush.bf16.msra.mxu0 %v2100
    %2562 = vmatpush.bf16.msra.mxu0 %v2098
    %2563 = vmatpush.bf16.msra.mxu0 %v2096
    %2564 = vmatpush.bf16.msra.mxu0 %v2094
    %2565 = vmatpush.bf16.msra.mxu0 %v2092
    %2566 = vmatpush.bf16.msra.mxu0 %v2090
    %2567 = vmatpush.bf16.msra.mxu0 %v2088
    %2568 = vmatpush.bf16.msra.mxu0 %v2086
    %2569 = vmatmul.bf16.gmra.mxu0 %v1347
    %v2570 = vpop.f32.mrf.mxu0
    %v2571 = vadd.f32 %v2482, %v2570
    %v2572 = vpop.f32.mrf.mxu0
    %v2573 = vadd.f32 %v2484, %v2572
    %2574 = vmatmul.bf16.gmra.mxu0 %v1355
    %v2575 = vpop.f32.mrf.mxu0
    %v2576 = vadd.f32 %v2487, %v2575
    %v2577 = vpop.f32.mrf.mxu0
    %v2578 = vadd.f32 %v2489, %v2577
    %2579 = vmatmul.bf16.gmra.mxu0 %v1363
    %v2580 = vpop.f32.mrf.mxu0
    %v2581 = vadd.f32 %v2492, %v2580
    %v2582 = vpop.f32.mrf.mxu0
    %v2583 = vadd.f32 %v2494, %v2582
    %2584 = vmatmul.bf16.gmra.mxu0 %v1371
    %v2585 = vpop.f32.mrf.mxu0
    %v2586 = vadd.f32 %v2497, %v2585
    %v2587 = vpop.f32.mrf.mxu0
    %v2588 = vadd.f32 %v2499, %v2587
    %2589 = vmatmul.bf16.gmra.mxu0 %v1379
    %v2590 = vpop.f32.mrf.mxu0
    %v2591 = vadd.f32 %v2502, %v2590
    %v2592 = vpop.f32.mrf.mxu0
    %v2593 = vadd.f32 %v2504, %v2592
    %2594 = vmatmul.bf16.gmra.mxu0 %v1387
    %v2595 = vpop.f32.mrf.mxu0
    %v2596 = vadd.f32 %v2507, %v2595
    %v2597 = vpop.f32.mrf.mxu0
    %v2598 = vadd.f32 %v2509, %v2597
    %2599 = vmatmul.bf16.gmra.mxu0 %v1395
    %v2600 = vpop.f32.mrf.mxu0
    %v2601 = vadd.f32 %v2512, %v2600
    %v2602 = vpop.f32.mrf.mxu0
    %v2603 = vadd.f32 %v2514, %v2602
    %2604 = vmatmul.bf16.gmra.mxu0 %v1403
    %v2605 = vpop.f32.mrf.mxu0
    %v2606 = vadd.f32 %v2517, %v2605
    %v2607 = vpop.f32.mrf.mxu0
    %v2608 = vadd.f32 %v2519, %v2607
    %2609 = vmatmul.bf16.gmra.mxu0 %v1411
    %v2610 = vpop.f32.mrf.mxu0
    %v2611 = vadd.f32 %v2522, %v2610
    %v2612 = vpop.f32.mrf.mxu0
    %v2613 = vadd.f32 %v2524, %v2612
    %2614 = vmatmul.bf16.gmra.mxu0 %v1419
    %v2615 = vpop.f32.mrf.mxu0
    %v2616 = vadd.f32 %v2527, %v2615
    %v2617 = vpop.f32.mrf.mxu0
    %v2618 = vadd.f32 %v2529, %v2617
    %2619 = vmatmul.bf16.gmra.mxu0 %v1427
    %v2620 = vpop.f32.mrf.mxu0
    %v2621 = vadd.f32 %v2532, %v2620
    %v2622 = vpop.f32.mrf.mxu0
    %v2623 = vadd.f32 %v2534, %v2622
    %2624 = vmatmul.bf16.gmra.mxu0 %v1435
    %v2625 = vpop.f32.mrf.mxu0
    %v2626 = vadd.f32 %v2537, %v2625
    %v2627 = vpop.f32.mrf.mxu0
    %v2628 = vadd.f32 %v2539, %v2627
    %2629 = vmatmul.bf16.gmra.mxu0 %v1443
    %v2630 = vpop.f32.mrf.mxu0
    %v2631 = vadd.f32 %v2542, %v2630
    %v2632 = vpop.f32.mrf.mxu0
    %v2633 = vadd.f32 %v2544, %v2632
    %2634 = vmatmul.bf16.gmra.mxu0 %v1451
    %v2635 = vpop.f32.mrf.mxu0
    %v2636 = vadd.f32 %v2547, %v2635
    %v2637 = vpop.f32.mrf.mxu0
    %v2638 = vadd.f32 %v2549, %v2637
    %2639 = vmatmul.bf16.gmra.mxu0 %v1459
    %v2640 = vpop.f32.mrf.mxu0
    %v2641 = vadd.f32 %v2552, %v2640
    %v2642 = vpop.f32.mrf.mxu0
    %v2643 = vadd.f32 %v2554, %v2642
    %2644 = vmatmul.bf16.gmra.mxu0 %v1467
    %v2645 = vpop.f32.mrf.mxu0
    %v2646 = vadd.f32 %v2557, %v2645
    %v2647 = vpop.f32.mrf.mxu0
    %v2648 = vadd.f32 %v2559, %v2647
    %2649 = vdwg.mxu0
    %2650 = vmatpush.bf16.msra.mxu0 %v2116
    %2651 = vmatpush.bf16.msra.mxu0 %v2114
    %2652 = vmatpush.bf16.msra.mxu0 %v2112
    %2653 = vmatpush.bf16.msra.mxu0 %v2110
    %2654 = vmatpush.bf16.msra.mxu0 %v2108
    %2655 = vmatpush.bf16.msra.mxu0 %v2106
    %2656 = vmatpush.bf16.msra.mxu0 %v2104
    %2657 = vmatpush.bf16.msra.mxu0 %v2102
    %2658 = vmatmul.bf16.gmra.mxu0 %v1348
    %v2659 = vpop.f32.mrf.mxu0
    %v2660 = vadd.f32 %v2571, %v2659
    %v2661 = vpop.f32.mrf.mxu0
    %v2662 = vadd.f32 %v2573, %v2661
    %2663 = vmatmul.bf16.gmra.mxu0 %v1356
    %v2664 = vpop.f32.mrf.mxu0
    %v2665 = vadd.f32 %v2576, %v2664
    %v2666 = vpop.f32.mrf.mxu0
    %v2667 = vadd.f32 %v2578, %v2666
    %2668 = vmatmul.bf16.gmra.mxu0 %v1364
    %v2669 = vpop.f32.mrf.mxu0
    %v2670 = vadd.f32 %v2581, %v2669
    %v2671 = vpop.f32.mrf.mxu0
    %v2672 = vadd.f32 %v2583, %v2671
    %2673 = vmatmul.bf16.gmra.mxu0 %v1372
    %v2674 = vpop.f32.mrf.mxu0
    %v2675 = vadd.f32 %v2586, %v2674
    %v2676 = vpop.f32.mrf.mxu0
    %v2677 = vadd.f32 %v2588, %v2676
    %2678 = vmatmul.bf16.gmra.mxu0 %v1380
    %v2679 = vpop.f32.mrf.mxu0
    %v2680 = vadd.f32 %v2591, %v2679
    %v2681 = vpop.f32.mrf.mxu0
    %v2682 = vadd.f32 %v2593, %v2681
    %2683 = vmatmul.bf16.gmra.mxu0 %v1388
    %v2684 = vpop.f32.mrf.mxu0
    %v2685 = vadd.f32 %v2596, %v2684
    %v2686 = vpop.f32.mrf.mxu0
    %v2687 = vadd.f32 %v2598, %v2686
    %2688 = vmatmul.bf16.gmra.mxu0 %v1396
    %v2689 = vpop.f32.mrf.mxu0
    %v2690 = vadd.f32 %v2601, %v2689
    %v2691 = vpop.f32.mrf.mxu0
    %v2692 = vadd.f32 %v2603, %v2691
    %2693 = vmatmul.bf16.gmra.mxu0 %v1404
    %v2694 = vpop.f32.mrf.mxu0
    %v2695 = vadd.f32 %v2606, %v2694
    %v2696 = vpop.f32.mrf.mxu0
    %v2697 = vadd.f32 %v2608, %v2696
    %2698 = vmatmul.bf16.gmra.mxu0 %v1412
    %v2699 = vpop.f32.mrf.mxu0
    %v2700 = vadd.f32 %v2611, %v2699
    %v2701 = vpop.f32.mrf.mxu0
    %v2702 = vadd.f32 %v2613, %v2701
    %2703 = vmatmul.bf16.gmra.mxu0 %v1420
    %v2704 = vpop.f32.mrf.mxu0
    %v2705 = vadd.f32 %v2616, %v2704
    %v2706 = vpop.f32.mrf.mxu0
    %v2707 = vadd.f32 %v2618, %v2706
    %2708 = vmatmul.bf16.gmra.mxu0 %v1428
    %v2709 = vpop.f32.mrf.mxu0
    %v2710 = vadd.f32 %v2621, %v2709
    %v2711 = vpop.f32.mrf.mxu0
    %v2712 = vadd.f32 %v2623, %v2711
    %2713 = vmatmul.bf16.gmra.mxu0 %v1436
    %v2714 = vpop.f32.mrf.mxu0
    %v2715 = vadd.f32 %v2626, %v2714
    %v2716 = vpop.f32.mrf.mxu0
    %v2717 = vadd.f32 %v2628, %v2716
    %2718 = vmatmul.bf16.gmra.mxu0 %v1444
    %v2719 = vpop.f32.mrf.mxu0
    %v2720 = vadd.f32 %v2631, %v2719
    %v2721 = vpop.f32.mrf.mxu0
    %v2722 = vadd.f32 %v2633, %v2721
    %2723 = vmatmul.bf16.gmra.mxu0 %v1452
    %v2724 = vpop.f32.mrf.mxu0
    %v2725 = vadd.f32 %v2636, %v2724
    %v2726 = vpop.f32.mrf.mxu0
    %v2727 = vadd.f32 %v2638, %v2726
    %2728 = vmatmul.bf16.gmra.mxu0 %v1460
    %v2729 = vpop.f32.mrf.mxu0
    %v2730 = vadd.f32 %v2641, %v2729
    %v2731 = vpop.f32.mrf.mxu0
    %v2732 = vadd.f32 %v2643, %v2731
    %2733 = vmatmul.bf16.gmra.mxu0 %v1468
    %v2734 = vpop.f32.mrf.mxu0
    %v2735 = vadd.f32 %v2646, %v2734
    %v2736 = vpop.f32.mrf.mxu0
    %v2737 = vadd.f32 %v2648, %v2736
    %2738 = vdwg.mxu0
    %2739 = vmatpush.bf16.msra.mxu0 %v2132
    %2740 = vmatpush.bf16.msra.mxu0 %v2130
    %2741 = vmatpush.bf16.msra.mxu0 %v2128
    %2742 = vmatpush.bf16.msra.mxu0 %v2126
    %2743 = vmatpush.bf16.msra.mxu0 %v2124
    %2744 = vmatpush.bf16.msra.mxu0 %v2122
    %2745 = vmatpush.bf16.msra.mxu0 %v2120
    %2746 = vmatpush.bf16.msra.mxu0 %v2118
    %2747 = vmatmul.bf16.gmra.mxu0 %v1349
    %v2748 = vpop.f32.mrf.mxu0
    %v2749 = vadd.f32 %v2660, %v2748
    %v2750 = vpop.f32.mrf.mxu0
    %v2751 = vadd.f32 %v2662, %v2750
    %2752 = vmatmul.bf16.gmra.mxu0 %v1357
    %v2753 = vpop.f32.mrf.mxu0
    %v2754 = vadd.f32 %v2665, %v2753
    %v2755 = vpop.f32.mrf.mxu0
    %v2756 = vadd.f32 %v2667, %v2755
    %2757 = vmatmul.bf16.gmra.mxu0 %v1365
    %v2758 = vpop.f32.mrf.mxu0
    %v2759 = vadd.f32 %v2670, %v2758
    %v2760 = vpop.f32.mrf.mxu0
    %v2761 = vadd.f32 %v2672, %v2760
    %2762 = vmatmul.bf16.gmra.mxu0 %v1373
    %v2763 = vpop.f32.mrf.mxu0
    %v2764 = vadd.f32 %v2675, %v2763
    %v2765 = vpop.f32.mrf.mxu0
    %v2766 = vadd.f32 %v2677, %v2765
    %2767 = vmatmul.bf16.gmra.mxu0 %v1381
    %v2768 = vpop.f32.mrf.mxu0
    %v2769 = vadd.f32 %v2680, %v2768
    %v2770 = vpop.f32.mrf.mxu0
    %v2771 = vadd.f32 %v2682, %v2770
    %2772 = vmatmul.bf16.gmra.mxu0 %v1389
    %v2773 = vpop.f32.mrf.mxu0
    %v2774 = vadd.f32 %v2685, %v2773
    %v2775 = vpop.f32.mrf.mxu0
    %v2776 = vadd.f32 %v2687, %v2775
    %2777 = vmatmul.bf16.gmra.mxu0 %v1397
    %v2778 = vpop.f32.mrf.mxu0
    %v2779 = vadd.f32 %v2690, %v2778
    %v2780 = vpop.f32.mrf.mxu0
    %v2781 = vadd.f32 %v2692, %v2780
    %2782 = vmatmul.bf16.gmra.mxu0 %v1405
    %v2783 = vpop.f32.mrf.mxu0
    %v2784 = vadd.f32 %v2695, %v2783
    %v2785 = vpop.f32.mrf.mxu0
    %v2786 = vadd.f32 %v2697, %v2785
    %2787 = vmatmul.bf16.gmra.mxu0 %v1413
    %v2788 = vpop.f32.mrf.mxu0
    %v2789 = vadd.f32 %v2700, %v2788
    %v2790 = vpop.f32.mrf.mxu0
    %v2791 = vadd.f32 %v2702, %v2790
    %2792 = vmatmul.bf16.gmra.mxu0 %v1421
    %v2793 = vpop.f32.mrf.mxu0
    %v2794 = vadd.f32 %v2705, %v2793
    %v2795 = vpop.f32.mrf.mxu0
    %v2796 = vadd.f32 %v2707, %v2795
    %2797 = vmatmul.bf16.gmra.mxu0 %v1429
    %v2798 = vpop.f32.mrf.mxu0
    %v2799 = vadd.f32 %v2710, %v2798
    %v2800 = vpop.f32.mrf.mxu0
    %v2801 = vadd.f32 %v2712, %v2800
    %2802 = vmatmul.bf16.gmra.mxu0 %v1437
    %v2803 = vpop.f32.mrf.mxu0
    %v2804 = vadd.f32 %v2715, %v2803
    %v2805 = vpop.f32.mrf.mxu0
    %v2806 = vadd.f32 %v2717, %v2805
    %2807 = vmatmul.bf16.gmra.mxu0 %v1445
    %v2808 = vpop.f32.mrf.mxu0
    %v2809 = vadd.f32 %v2720, %v2808
    %v2810 = vpop.f32.mrf.mxu0
    %v2811 = vadd.f32 %v2722, %v2810
    %2812 = vmatmul.bf16.gmra.mxu0 %v1453
    %v2813 = vpop.f32.mrf.mxu0
    %v2814 = vadd.f32 %v2725, %v2813
    %v2815 = vpop.f32.mrf.mxu0
    %v2816 = vadd.f32 %v2727, %v2815
    %2817 = vmatmul.bf16.gmra.mxu0 %v1461
    %v2818 = vpop.f32.mrf.mxu0
    %v2819 = vadd.f32 %v2730, %v2818
    %v2820 = vpop.f32.mrf.mxu0
    %v2821 = vadd.f32 %v2732, %v2820
    %2822 = vmatmul.bf16.gmra.mxu0 %v1469
    %v2823 = vpop.f32.mrf.mxu0
    %v2824 = vadd.f32 %v2735, %v2823
    %v2825 = vpop.f32.mrf.mxu0
    %v2826 = vadd.f32 %v2737, %v2825
    %2827 = vdwg.mxu0
    %2828 = vmatpush.bf16.msra.mxu0 %v2148
    %2829 = vmatpush.bf16.msra.mxu0 %v2146
    %2830 = vmatpush.bf16.msra.mxu0 %v2144
    %2831 = vmatpush.bf16.msra.mxu0 %v2142
    %2832 = vmatpush.bf16.msra.mxu0 %v2140
    %2833 = vmatpush.bf16.msra.mxu0 %v2138
    %2834 = vmatpush.bf16.msra.mxu0 %v2136
    %2835 = vmatpush.bf16.msra.mxu0 %v2134
    %2836 = vmatmul.bf16.gmra.mxu0 %v1350
    %v2837 = vpop.f32.mrf.mxu0
    %v2838 = vadd.f32 %v2749, %v2837
    %v2839 = vpop.f32.mrf.mxu0
    %v2840 = vadd.f32 %v2751, %v2839
    %2841 = vmatmul.bf16.gmra.mxu0 %v1358
    %v2842 = vpop.f32.mrf.mxu0
    %v2843 = vadd.f32 %v2754, %v2842
    %v2844 = vpop.f32.mrf.mxu0
    %v2845 = vadd.f32 %v2756, %v2844
    %2846 = vmatmul.bf16.gmra.mxu0 %v1366
    %v2847 = vpop.f32.mrf.mxu0
    %v2848 = vadd.f32 %v2759, %v2847
    %v2849 = vpop.f32.mrf.mxu0
    %v2850 = vadd.f32 %v2761, %v2849
    %2851 = vmatmul.bf16.gmra.mxu0 %v1374
    %v2852 = vpop.f32.mrf.mxu0
    %v2853 = vadd.f32 %v2764, %v2852
    %v2854 = vpop.f32.mrf.mxu0
    %v2855 = vadd.f32 %v2766, %v2854
    %2856 = vmatmul.bf16.gmra.mxu0 %v1382
    %v2857 = vpop.f32.mrf.mxu0
    %v2858 = vadd.f32 %v2769, %v2857
    %v2859 = vpop.f32.mrf.mxu0
    %v2860 = vadd.f32 %v2771, %v2859
    %2861 = vmatmul.bf16.gmra.mxu0 %v1390
    %v2862 = vpop.f32.mrf.mxu0
    %v2863 = vadd.f32 %v2774, %v2862
    %v2864 = vpop.f32.mrf.mxu0
    %v2865 = vadd.f32 %v2776, %v2864
    %2866 = vmatmul.bf16.gmra.mxu0 %v1398
    %v2867 = vpop.f32.mrf.mxu0
    %v2868 = vadd.f32 %v2779, %v2867
    %v2869 = vpop.f32.mrf.mxu0
    %v2870 = vadd.f32 %v2781, %v2869
    %2871 = vmatmul.bf16.gmra.mxu0 %v1406
    %v2872 = vpop.f32.mrf.mxu0
    %v2873 = vadd.f32 %v2784, %v2872
    %v2874 = vpop.f32.mrf.mxu0
    %v2875 = vadd.f32 %v2786, %v2874
    %2876 = vmatmul.bf16.gmra.mxu0 %v1414
    %v2877 = vpop.f32.mrf.mxu0
    %v2878 = vadd.f32 %v2789, %v2877
    %v2879 = vpop.f32.mrf.mxu0
    %v2880 = vadd.f32 %v2791, %v2879
    %2881 = vmatmul.bf16.gmra.mxu0 %v1422
    %v2882 = vpop.f32.mrf.mxu0
    %v2883 = vadd.f32 %v2794, %v2882
    %v2884 = vpop.f32.mrf.mxu0
    %v2885 = vadd.f32 %v2796, %v2884
    %2886 = vmatmul.bf16.gmra.mxu0 %v1430
    %v2887 = vpop.f32.mrf.mxu0
    %v2888 = vadd.f32 %v2799, %v2887
    %v2889 = vpop.f32.mrf.mxu0
    %v2890 = vadd.f32 %v2801, %v2889
    %2891 = vmatmul.bf16.gmra.mxu0 %v1438
    %v2892 = vpop.f32.mrf.mxu0
    %v2893 = vadd.f32 %v2804, %v2892
    %v2894 = vpop.f32.mrf.mxu0
    %v2895 = vadd.f32 %v2806, %v2894
    %2896 = vmatmul.bf16.gmra.mxu0 %v1446
    %v2897 = vpop.f32.mrf.mxu0
    %v2898 = vadd.f32 %v2809, %v2897
    %v2899 = vpop.f32.mrf.mxu0
    %v2900 = vadd.f32 %v2811, %v2899
    %2901 = vmatmul.bf16.gmra.mxu0 %v1454
    %v2902 = vpop.f32.mrf.mxu0
    %v2903 = vadd.f32 %v2814, %v2902
    %v2904 = vpop.f32.mrf.mxu0
    %v2905 = vadd.f32 %v2816, %v2904
    %2906 = vmatmul.bf16.gmra.mxu0 %v1462
    %v2907 = vpop.f32.mrf.mxu0
    %v2908 = vadd.f32 %v2819, %v2907
    %v2909 = vpop.f32.mrf.mxu0
    %v2910 = vadd.f32 %v2821, %v2909
    %2911 = vmatmul.bf16.gmra.mxu0 %v1470
    %v2912 = vpop.f32.mrf.mxu0
    %v2913 = vadd.f32 %v2824, %v2912
    %v2914 = vpop.f32.mrf.mxu0
    %v2915 = vadd.f32 %v2826, %v2914
    %2916 = vdwg.mxu0
    %2917 = vmatpush.bf16.msra.mxu0 %v2164
    %2918 = vmatpush.bf16.msra.mxu0 %v2162
    %2919 = vmatpush.bf16.msra.mxu0 %v2160
    %2920 = vmatpush.bf16.msra.mxu0 %v2158
    %2921 = vmatpush.bf16.msra.mxu0 %v2156
    %2922 = vmatpush.bf16.msra.mxu0 %v2154
    %2923 = vmatpush.bf16.msra.mxu0 %v2152
    %2924 = vmatpush.bf16.msra.mxu0 %v2150
    %2925 = vmatmul.bf16.gmra.mxu0 %v1351
    %v2926 = vpop.f32.mrf.mxu0
    %v2927 = vadd.f32 %v2838, %v2926
    %v2928 = vpop.f32.mrf.mxu0
    %v2929 = vadd.f32 %v2840, %v2928
    %2930 = vmatmul.bf16.gmra.mxu0 %v1359
    %v2931 = vpop.f32.mrf.mxu0
    %v2932 = vadd.f32 %v2843, %v2931
    %v2933 = vpop.f32.mrf.mxu0
    %v2934 = vadd.f32 %v2845, %v2933
    %2935 = vmatmul.bf16.gmra.mxu0 %v1367
    %v2936 = vpop.f32.mrf.mxu0
    %v2937 = vadd.f32 %v2848, %v2936
    %v2938 = vpop.f32.mrf.mxu0
    %v2939 = vadd.f32 %v2850, %v2938
    %2940 = vmatmul.bf16.gmra.mxu0 %v1375
    %v2941 = vpop.f32.mrf.mxu0
    %v2942 = vadd.f32 %v2853, %v2941
    %v2943 = vpop.f32.mrf.mxu0
    %v2944 = vadd.f32 %v2855, %v2943
    %2945 = vmatmul.bf16.gmra.mxu0 %v1383
    %v2946 = vpop.f32.mrf.mxu0
    %v2947 = vadd.f32 %v2858, %v2946
    %v2948 = vpop.f32.mrf.mxu0
    %v2949 = vadd.f32 %v2860, %v2948
    %2950 = vmatmul.bf16.gmra.mxu0 %v1391
    %v2951 = vpop.f32.mrf.mxu0
    %v2952 = vadd.f32 %v2863, %v2951
    %v2953 = vpop.f32.mrf.mxu0
    %v2954 = vadd.f32 %v2865, %v2953
    %2955 = vmatmul.bf16.gmra.mxu0 %v1399
    %v2956 = vpop.f32.mrf.mxu0
    %v2957 = vadd.f32 %v2868, %v2956
    %v2958 = vpop.f32.mrf.mxu0
    %v2959 = vadd.f32 %v2870, %v2958
    %2960 = vmatmul.bf16.gmra.mxu0 %v1407
    %v2961 = vpop.f32.mrf.mxu0
    %v2962 = vadd.f32 %v2873, %v2961
    %v2963 = vpop.f32.mrf.mxu0
    %v2964 = vadd.f32 %v2875, %v2963
    %2965 = vmatmul.bf16.gmra.mxu0 %v1415
    %v2966 = vpop.f32.mrf.mxu0
    %v2967 = vadd.f32 %v2878, %v2966
    %v2968 = vpop.f32.mrf.mxu0
    %v2969 = vadd.f32 %v2880, %v2968
    %2970 = vmatmul.bf16.gmra.mxu0 %v1423
    %v2971 = vpop.f32.mrf.mxu0
    %v2972 = vadd.f32 %v2883, %v2971
    %v2973 = vpop.f32.mrf.mxu0
    %v2974 = vadd.f32 %v2885, %v2973
    %2975 = vmatmul.bf16.gmra.mxu0 %v1431
    %v2976 = vpop.f32.mrf.mxu0
    %v2977 = vadd.f32 %v2888, %v2976
    %v2978 = vpop.f32.mrf.mxu0
    %v2979 = vadd.f32 %v2890, %v2978
    %2980 = vmatmul.bf16.gmra.mxu0 %v1439
    %v2981 = vpop.f32.mrf.mxu0
    %v2982 = vadd.f32 %v2893, %v2981
    %v2983 = vpop.f32.mrf.mxu0
    %v2984 = vadd.f32 %v2895, %v2983
    %2985 = vmatmul.bf16.gmra.mxu0 %v1447
    %v2986 = vpop.f32.mrf.mxu0
    %v2987 = vadd.f32 %v2898, %v2986
    %v2988 = vpop.f32.mrf.mxu0
    %v2989 = vadd.f32 %v2900, %v2988
    %2990 = vmatmul.bf16.gmra.mxu0 %v1455
    %v2991 = vpop.f32.mrf.mxu0
    %v2992 = vadd.f32 %v2903, %v2991
    %v2993 = vpop.f32.mrf.mxu0
    %v2994 = vadd.f32 %v2905, %v2993
    %2995 = vmatmul.bf16.gmra.mxu0 %v1463
    %v2996 = vpop.f32.mrf.mxu0
    %v2997 = vadd.f32 %v2908, %v2996
    %v2998 = vpop.f32.mrf.mxu0
    %v2999 = vadd.f32 %v2910, %v2998
    %3000 = vmatmul.bf16.gmra.mxu0 %v1471
    %v3001 = vpop.f32.mrf.mxu0
    %v3002 = vadd.f32 %v2913, %v3001
    %v3003 = vpop.f32.mrf.mxu0
    %v3004 = vadd.f32 %v2915, %v3003
    %3005 = vdwg.mxu0
    %3006 = vmatpush.bf16.msra.mxu0 %v2053
    %3007 = vmatpush.bf16.msra.mxu0 %v2051
    %3008 = vmatpush.bf16.msra.mxu0 %v2049
    %3009 = vmatpush.bf16.msra.mxu0 %v2047
    %3010 = vmatpush.bf16.msra.mxu0 %v2045
    %3011 = vmatpush.bf16.msra.mxu0 %v2043
    %3012 = vmatpush.bf16.msra.mxu0 %v2041
    %3013 = vmatpush.bf16.msra.mxu0 %v2039
    %3014 = vmatmul.bf16.gmra.mxu0 %v1344
    %v3015 = vpop.f32.mrf.mxu0
    %v3016 = vadd.f32 %v1651, %v3015
    %v3017 = vpop.f32.mrf.mxu0
    %v3018 = vadd.f32 %v1651, %v3017
    %3019 = vmatmul.bf16.gmra.mxu0 %v1352
    %v3020 = vpop.f32.mrf.mxu0
    %v3021 = vadd.f32 %v1651, %v3020
    %v3022 = vpop.f32.mrf.mxu0
    %v3023 = vadd.f32 %v1651, %v3022
    %3024 = vmatmul.bf16.gmra.mxu0 %v1360
    %v3025 = vpop.f32.mrf.mxu0
    %v3026 = vadd.f32 %v1651, %v3025
    %v3027 = vpop.f32.mrf.mxu0
    %v3028 = vadd.f32 %v1651, %v3027
    %3029 = vmatmul.bf16.gmra.mxu0 %v1368
    %v3030 = vpop.f32.mrf.mxu0
    %v3031 = vadd.f32 %v1651, %v3030
    %v3032 = vpop.f32.mrf.mxu0
    %v3033 = vadd.f32 %v1651, %v3032
    %3034 = vmatmul.bf16.gmra.mxu0 %v1376
    %v3035 = vpop.f32.mrf.mxu0
    %v3036 = vadd.f32 %v1651, %v3035
    %v3037 = vpop.f32.mrf.mxu0
    %v3038 = vadd.f32 %v1651, %v3037
    %3039 = vmatmul.bf16.gmra.mxu0 %v1384
    %v3040 = vpop.f32.mrf.mxu0
    %v3041 = vadd.f32 %v1651, %v3040
    %v3042 = vpop.f32.mrf.mxu0
    %v3043 = vadd.f32 %v1651, %v3042
    %3044 = vmatmul.bf16.gmra.mxu0 %v1392
    %v3045 = vpop.f32.mrf.mxu0
    %v3046 = vadd.f32 %v1651, %v3045
    %v3047 = vpop.f32.mrf.mxu0
    %v3048 = vadd.f32 %v1651, %v3047
    %3049 = vmatmul.bf16.gmra.mxu0 %v1400
    %v3050 = vpop.f32.mrf.mxu0
    %v3051 = vadd.f32 %v1651, %v3050
    %v3052 = vpop.f32.mrf.mxu0
    %v3053 = vadd.f32 %v1651, %v3052
    %3054 = vmatmul.bf16.gmra.mxu0 %v1408
    %v3055 = vpop.f32.mrf.mxu0
    %v3056 = vadd.f32 %v1651, %v3055
    %v3057 = vpop.f32.mrf.mxu0
    %v3058 = vadd.f32 %v1651, %v3057
    %3059 = vmatmul.bf16.gmra.mxu0 %v1416
    %v3060 = vpop.f32.mrf.mxu0
    %v3061 = vadd.f32 %v1651, %v3060
    %v3062 = vpop.f32.mrf.mxu0
    %v3063 = vadd.f32 %v1651, %v3062
    %3064 = vmatmul.bf16.gmra.mxu0 %v1424
    %v3065 = vpop.f32.mrf.mxu0
    %v3066 = vadd.f32 %v1651, %v3065
    %v3067 = vpop.f32.mrf.mxu0
    %v3068 = vadd.f32 %v1651, %v3067
    %3069 = vmatmul.bf16.gmra.mxu0 %v1432
    %v3070 = vpop.f32.mrf.mxu0
    %v3071 = vadd.f32 %v1651, %v3070
    %v3072 = vpop.f32.mrf.mxu0
    %v3073 = vadd.f32 %v1651, %v3072
    %3074 = vmatmul.bf16.gmra.mxu0 %v1440
    %v3075 = vpop.f32.mrf.mxu0
    %v3076 = vadd.f32 %v1651, %v3075
    %v3077 = vpop.f32.mrf.mxu0
    %v3078 = vadd.f32 %v1651, %v3077
    %3079 = vmatmul.bf16.gmra.mxu0 %v1448
    %v3080 = vpop.f32.mrf.mxu0
    %v3081 = vadd.f32 %v1651, %v3080
    %v3082 = vpop.f32.mrf.mxu0
    %v3083 = vadd.f32 %v1651, %v3082
    %3084 = vmatmul.bf16.gmra.mxu0 %v1456
    %v3085 = vpop.f32.mrf.mxu0
    %v3086 = vadd.f32 %v1651, %v3085
    %v3087 = vpop.f32.mrf.mxu0
    %v3088 = vadd.f32 %v1651, %v3087
    %3089 = vmatmul.bf16.gmra.mxu0 %v1464
    %v3090 = vpop.f32.mrf.mxu0
    %v3091 = vadd.f32 %v1651, %v3090
    %v3092 = vpop.f32.mrf.mxu0
    %v3093 = vadd.f32 %v1651, %v3092
    %3094 = vdwg.mxu0
    %3095 = vmatpush.bf16.msra.mxu0 %v2069
    %3096 = vmatpush.bf16.msra.mxu0 %v2067
    %3097 = vmatpush.bf16.msra.mxu0 %v2065
    %3098 = vmatpush.bf16.msra.mxu0 %v2063
    %3099 = vmatpush.bf16.msra.mxu0 %v2061
    %3100 = vmatpush.bf16.msra.mxu0 %v2059
    %3101 = vmatpush.bf16.msra.mxu0 %v2057
    %3102 = vmatpush.bf16.msra.mxu0 %v2055
    %3103 = vmatmul.bf16.gmra.mxu0 %v1345
    %v3104 = vpop.f32.mrf.mxu0
    %v3105 = vadd.f32 %v3016, %v3104
    %v3106 = vpop.f32.mrf.mxu0
    %v3107 = vadd.f32 %v3018, %v3106
    %3108 = vmatmul.bf16.gmra.mxu0 %v1353
    %v3109 = vpop.f32.mrf.mxu0
    %v3110 = vadd.f32 %v3021, %v3109
    %v3111 = vpop.f32.mrf.mxu0
    %v3112 = vadd.f32 %v3023, %v3111
    %3113 = vmatmul.bf16.gmra.mxu0 %v1361
    %v3114 = vpop.f32.mrf.mxu0
    %v3115 = vadd.f32 %v3026, %v3114
    %v3116 = vpop.f32.mrf.mxu0
    %v3117 = vadd.f32 %v3028, %v3116
    %3118 = vmatmul.bf16.gmra.mxu0 %v1369
    %v3119 = vpop.f32.mrf.mxu0
    %v3120 = vadd.f32 %v3031, %v3119
    %v3121 = vpop.f32.mrf.mxu0
    %v3122 = vadd.f32 %v3033, %v3121
    %3123 = vmatmul.bf16.gmra.mxu0 %v1377
    %v3124 = vpop.f32.mrf.mxu0
    %v3125 = vadd.f32 %v3036, %v3124
    %v3126 = vpop.f32.mrf.mxu0
    %v3127 = vadd.f32 %v3038, %v3126
    %3128 = vmatmul.bf16.gmra.mxu0 %v1385
    %v3129 = vpop.f32.mrf.mxu0
    %v3130 = vadd.f32 %v3041, %v3129
    %v3131 = vpop.f32.mrf.mxu0
    %v3132 = vadd.f32 %v3043, %v3131
    %3133 = vmatmul.bf16.gmra.mxu0 %v1393
    %v3134 = vpop.f32.mrf.mxu0
    %v3135 = vadd.f32 %v3046, %v3134
    %v3136 = vpop.f32.mrf.mxu0
    %v3137 = vadd.f32 %v3048, %v3136
    %3138 = vmatmul.bf16.gmra.mxu0 %v1401
    %v3139 = vpop.f32.mrf.mxu0
    %v3140 = vadd.f32 %v3051, %v3139
    %v3141 = vpop.f32.mrf.mxu0
    %v3142 = vadd.f32 %v3053, %v3141
    %3143 = vmatmul.bf16.gmra.mxu0 %v1409
    %v3144 = vpop.f32.mrf.mxu0
    %v3145 = vadd.f32 %v3056, %v3144
    %v3146 = vpop.f32.mrf.mxu0
    %v3147 = vadd.f32 %v3058, %v3146
    %3148 = vmatmul.bf16.gmra.mxu0 %v1417
    %v3149 = vpop.f32.mrf.mxu0
    %v3150 = vadd.f32 %v3061, %v3149
    %v3151 = vpop.f32.mrf.mxu0
    %v3152 = vadd.f32 %v3063, %v3151
    %3153 = vmatmul.bf16.gmra.mxu0 %v1425
    %v3154 = vpop.f32.mrf.mxu0
    %v3155 = vadd.f32 %v3066, %v3154
    %v3156 = vpop.f32.mrf.mxu0
    %v3157 = vadd.f32 %v3068, %v3156
    %3158 = vmatmul.bf16.gmra.mxu0 %v1433
    %v3159 = vpop.f32.mrf.mxu0
    %v3160 = vadd.f32 %v3071, %v3159
    %v3161 = vpop.f32.mrf.mxu0
    %v3162 = vadd.f32 %v3073, %v3161
    %3163 = vmatmul.bf16.gmra.mxu0 %v1441
    %v3164 = vpop.f32.mrf.mxu0
    %v3165 = vadd.f32 %v3076, %v3164
    %v3166 = vpop.f32.mrf.mxu0
    %v3167 = vadd.f32 %v3078, %v3166
    %3168 = vmatmul.bf16.gmra.mxu0 %v1449
    %v3169 = vpop.f32.mrf.mxu0
    %v3170 = vadd.f32 %v3081, %v3169
    %v3171 = vpop.f32.mrf.mxu0
    %v3172 = vadd.f32 %v3083, %v3171
    %3173 = vmatmul.bf16.gmra.mxu0 %v1457
    %v3174 = vpop.f32.mrf.mxu0
    %v3175 = vadd.f32 %v3086, %v3174
    %v3176 = vpop.f32.mrf.mxu0
    %v3177 = vadd.f32 %v3088, %v3176
    %3178 = vmatmul.bf16.gmra.mxu0 %v1465
    %v3179 = vpop.f32.mrf.mxu0
    %v3180 = vadd.f32 %v3091, %v3179
    %v3181 = vpop.f32.mrf.mxu0
    %v3182 = vadd.f32 %v3093, %v3181
    %3183 = vdwg.mxu0
    %3184 = vmatpush.bf16.msra.mxu0 %v2085
    %3185 = vmatpush.bf16.msra.mxu0 %v2083
    %3186 = vmatpush.bf16.msra.mxu0 %v2081
    %3187 = vmatpush.bf16.msra.mxu0 %v2079
    %3188 = vmatpush.bf16.msra.mxu0 %v2077
    %3189 = vmatpush.bf16.msra.mxu0 %v2075
    %3190 = vmatpush.bf16.msra.mxu0 %v2073
    %3191 = vmatpush.bf16.msra.mxu0 %v2071
    %3192 = vmatmul.bf16.gmra.mxu0 %v1346
    %v3193 = vpop.f32.mrf.mxu0
    %v3194 = vadd.f32 %v3105, %v3193
    %v3195 = vpop.f32.mrf.mxu0
    %v3196 = vadd.f32 %v3107, %v3195
    %3197 = vmatmul.bf16.gmra.mxu0 %v1354
    %v3198 = vpop.f32.mrf.mxu0
    %v3199 = vadd.f32 %v3110, %v3198
    %v3200 = vpop.f32.mrf.mxu0
    %v3201 = vadd.f32 %v3112, %v3200
    %3202 = vmatmul.bf16.gmra.mxu0 %v1362
    %v3203 = vpop.f32.mrf.mxu0
    %v3204 = vadd.f32 %v3115, %v3203
    %v3205 = vpop.f32.mrf.mxu0
    %v3206 = vadd.f32 %v3117, %v3205
    %3207 = vmatmul.bf16.gmra.mxu0 %v1370
    %v3208 = vpop.f32.mrf.mxu0
    %v3209 = vadd.f32 %v3120, %v3208
    %v3210 = vpop.f32.mrf.mxu0
    %v3211 = vadd.f32 %v3122, %v3210
    %3212 = vmatmul.bf16.gmra.mxu0 %v1378
    %v3213 = vpop.f32.mrf.mxu0
    %v3214 = vadd.f32 %v3125, %v3213
    %v3215 = vpop.f32.mrf.mxu0
    %v3216 = vadd.f32 %v3127, %v3215
    %3217 = vmatmul.bf16.gmra.mxu0 %v1386
    %v3218 = vpop.f32.mrf.mxu0
    %v3219 = vadd.f32 %v3130, %v3218
    %v3220 = vpop.f32.mrf.mxu0
    %v3221 = vadd.f32 %v3132, %v3220
    %3222 = vmatmul.bf16.gmra.mxu0 %v1394
    %v3223 = vpop.f32.mrf.mxu0
    %v3224 = vadd.f32 %v3135, %v3223
    %v3225 = vpop.f32.mrf.mxu0
    %v3226 = vadd.f32 %v3137, %v3225
    %3227 = vmatmul.bf16.gmra.mxu0 %v1402
    %v3228 = vpop.f32.mrf.mxu0
    %v3229 = vadd.f32 %v3140, %v3228
    %v3230 = vpop.f32.mrf.mxu0
    %v3231 = vadd.f32 %v3142, %v3230
    %3232 = vmatmul.bf16.gmra.mxu0 %v1410
    %v3233 = vpop.f32.mrf.mxu0
    %v3234 = vadd.f32 %v3145, %v3233
    %v3235 = vpop.f32.mrf.mxu0
    %v3236 = vadd.f32 %v3147, %v3235
    %3237 = vmatmul.bf16.gmra.mxu0 %v1418
    %v3238 = vpop.f32.mrf.mxu0
    %v3239 = vadd.f32 %v3150, %v3238
    %v3240 = vpop.f32.mrf.mxu0
    %v3241 = vadd.f32 %v3152, %v3240
    %3242 = vmatmul.bf16.gmra.mxu0 %v1426
    %v3243 = vpop.f32.mrf.mxu0
    %v3244 = vadd.f32 %v3155, %v3243
    %v3245 = vpop.f32.mrf.mxu0
    %v3246 = vadd.f32 %v3157, %v3245
    %3247 = vmatmul.bf16.gmra.mxu0 %v1434
    %v3248 = vpop.f32.mrf.mxu0
    %v3249 = vadd.f32 %v3160, %v3248
    %v3250 = vpop.f32.mrf.mxu0
    %v3251 = vadd.f32 %v3162, %v3250
    %3252 = vmatmul.bf16.gmra.mxu0 %v1442
    %v3253 = vpop.f32.mrf.mxu0
    %v3254 = vadd.f32 %v3165, %v3253
    %v3255 = vpop.f32.mrf.mxu0
    %v3256 = vadd.f32 %v3167, %v3255
    %3257 = vmatmul.bf16.gmra.mxu0 %v1450
    %v3258 = vpop.f32.mrf.mxu0
    %v3259 = vadd.f32 %v3170, %v3258
    %v3260 = vpop.f32.mrf.mxu0
    %v3261 = vadd.f32 %v3172, %v3260
    %3262 = vmatmul.bf16.gmra.mxu0 %v1458
    %v3263 = vpop.f32.mrf.mxu0
    %v3264 = vadd.f32 %v3175, %v3263
    %v3265 = vpop.f32.mrf.mxu0
    %v3266 = vadd.f32 %v3177, %v3265
    %3267 = vmatmul.bf16.gmra.mxu0 %v1466
    %v3268 = vpop.f32.mrf.mxu0
    %v3269 = vadd.f32 %v3180, %v3268
    %v3270 = vpop.f32.mrf.mxu0
    %v3271 = vadd.f32 %v3182, %v3270
    %3272 = vdwg.mxu0
    %3273 = vmatpush.bf16.msra.mxu0 %v2101
    %3274 = vmatpush.bf16.msra.mxu0 %v2099
    %3275 = vmatpush.bf16.msra.mxu0 %v2097
    %3276 = vmatpush.bf16.msra.mxu0 %v2095
    %3277 = vmatpush.bf16.msra.mxu0 %v2093
    %3278 = vmatpush.bf16.msra.mxu0 %v2091
    %3279 = vmatpush.bf16.msra.mxu0 %v2089
    %3280 = vmatpush.bf16.msra.mxu0 %v2087
    %3281 = vmatmul.bf16.gmra.mxu0 %v1347
    %v3282 = vpop.f32.mrf.mxu0
    %v3283 = vadd.f32 %v3194, %v3282
    %v3284 = vpop.f32.mrf.mxu0
    %v3285 = vadd.f32 %v3196, %v3284
    %3286 = vmatmul.bf16.gmra.mxu0 %v1355
    %v3287 = vpop.f32.mrf.mxu0
    %v3288 = vadd.f32 %v3199, %v3287
    %v3289 = vpop.f32.mrf.mxu0
    %v3290 = vadd.f32 %v3201, %v3289
    %3291 = vmatmul.bf16.gmra.mxu0 %v1363
    %v3292 = vpop.f32.mrf.mxu0
    %v3293 = vadd.f32 %v3204, %v3292
    %v3294 = vpop.f32.mrf.mxu0
    %v3295 = vadd.f32 %v3206, %v3294
    %3296 = vmatmul.bf16.gmra.mxu0 %v1371
    %v3297 = vpop.f32.mrf.mxu0
    %v3298 = vadd.f32 %v3209, %v3297
    %v3299 = vpop.f32.mrf.mxu0
    %v3300 = vadd.f32 %v3211, %v3299
    %3301 = vmatmul.bf16.gmra.mxu0 %v1379
    %v3302 = vpop.f32.mrf.mxu0
    %v3303 = vadd.f32 %v3214, %v3302
    %v3304 = vpop.f32.mrf.mxu0
    %v3305 = vadd.f32 %v3216, %v3304
    %3306 = vmatmul.bf16.gmra.mxu0 %v1387
    %v3307 = vpop.f32.mrf.mxu0
    %v3308 = vadd.f32 %v3219, %v3307
    %v3309 = vpop.f32.mrf.mxu0
    %v3310 = vadd.f32 %v3221, %v3309
    %3311 = vmatmul.bf16.gmra.mxu0 %v1395
    %v3312 = vpop.f32.mrf.mxu0
    %v3313 = vadd.f32 %v3224, %v3312
    %v3314 = vpop.f32.mrf.mxu0
    %v3315 = vadd.f32 %v3226, %v3314
    %3316 = vmatmul.bf16.gmra.mxu0 %v1403
    %v3317 = vpop.f32.mrf.mxu0
    %v3318 = vadd.f32 %v3229, %v3317
    %v3319 = vpop.f32.mrf.mxu0
    %v3320 = vadd.f32 %v3231, %v3319
    %3321 = vmatmul.bf16.gmra.mxu0 %v1411
    %v3322 = vpop.f32.mrf.mxu0
    %v3323 = vadd.f32 %v3234, %v3322
    %v3324 = vpop.f32.mrf.mxu0
    %v3325 = vadd.f32 %v3236, %v3324
    %3326 = vmatmul.bf16.gmra.mxu0 %v1419
    %v3327 = vpop.f32.mrf.mxu0
    %v3328 = vadd.f32 %v3239, %v3327
    %v3329 = vpop.f32.mrf.mxu0
    %v3330 = vadd.f32 %v3241, %v3329
    %3331 = vmatmul.bf16.gmra.mxu0 %v1427
    %v3332 = vpop.f32.mrf.mxu0
    %v3333 = vadd.f32 %v3244, %v3332
    %v3334 = vpop.f32.mrf.mxu0
    %v3335 = vadd.f32 %v3246, %v3334
    %3336 = vmatmul.bf16.gmra.mxu0 %v1435
    %v3337 = vpop.f32.mrf.mxu0
    %v3338 = vadd.f32 %v3249, %v3337
    %v3339 = vpop.f32.mrf.mxu0
    %v3340 = vadd.f32 %v3251, %v3339
    %3341 = vmatmul.bf16.gmra.mxu0 %v1443
    %v3342 = vpop.f32.mrf.mxu0
    %v3343 = vadd.f32 %v3254, %v3342
    %v3344 = vpop.f32.mrf.mxu0
    %v3345 = vadd.f32 %v3256, %v3344
    %3346 = vmatmul.bf16.gmra.mxu0 %v1451
    %v3347 = vpop.f32.mrf.mxu0
    %v3348 = vadd.f32 %v3259, %v3347
    %v3349 = vpop.f32.mrf.mxu0
    %v3350 = vadd.f32 %v3261, %v3349
    %3351 = vmatmul.bf16.gmra.mxu0 %v1459
    %v3352 = vpop.f32.mrf.mxu0
    %v3353 = vadd.f32 %v3264, %v3352
    %v3354 = vpop.f32.mrf.mxu0
    %v3355 = vadd.f32 %v3266, %v3354
    %3356 = vmatmul.bf16.gmra.mxu0 %v1467
    %v3357 = vpop.f32.mrf.mxu0
    %v3358 = vadd.f32 %v3269, %v3357
    %v3359 = vpop.f32.mrf.mxu0
    %v3360 = vadd.f32 %v3271, %v3359
    %3361 = vdwg.mxu0
    %3362 = vmatpush.bf16.msra.mxu0 %v2117
    %3363 = vmatpush.bf16.msra.mxu0 %v2115
    %3364 = vmatpush.bf16.msra.mxu0 %v2113
    %3365 = vmatpush.bf16.msra.mxu0 %v2111
    %3366 = vmatpush.bf16.msra.mxu0 %v2109
    %3367 = vmatpush.bf16.msra.mxu0 %v2107
    %3368 = vmatpush.bf16.msra.mxu0 %v2105
    %3369 = vmatpush.bf16.msra.mxu0 %v2103
    %3370 = vmatmul.bf16.gmra.mxu0 %v1348
    %v3371 = vpop.f32.mrf.mxu0
    %v3372 = vadd.f32 %v3283, %v3371
    %v3373 = vpop.f32.mrf.mxu0
    %v3374 = vadd.f32 %v3285, %v3373
    %3375 = vmatmul.bf16.gmra.mxu0 %v1356
    %v3376 = vpop.f32.mrf.mxu0
    %v3377 = vadd.f32 %v3288, %v3376
    %v3378 = vpop.f32.mrf.mxu0
    %v3379 = vadd.f32 %v3290, %v3378
    %3380 = vmatmul.bf16.gmra.mxu0 %v1364
    %v3381 = vpop.f32.mrf.mxu0
    %v3382 = vadd.f32 %v3293, %v3381
    %v3383 = vpop.f32.mrf.mxu0
    %v3384 = vadd.f32 %v3295, %v3383
    %3385 = vmatmul.bf16.gmra.mxu0 %v1372
    %v3386 = vpop.f32.mrf.mxu0
    %v3387 = vadd.f32 %v3298, %v3386
    %v3388 = vpop.f32.mrf.mxu0
    %v3389 = vadd.f32 %v3300, %v3388
    %3390 = vmatmul.bf16.gmra.mxu0 %v1380
    %v3391 = vpop.f32.mrf.mxu0
    %v3392 = vadd.f32 %v3303, %v3391
    %v3393 = vpop.f32.mrf.mxu0
    %v3394 = vadd.f32 %v3305, %v3393
    %3395 = vmatmul.bf16.gmra.mxu0 %v1388
    %v3396 = vpop.f32.mrf.mxu0
    %v3397 = vadd.f32 %v3308, %v3396
    %v3398 = vpop.f32.mrf.mxu0
    %v3399 = vadd.f32 %v3310, %v3398
    %3400 = vmatmul.bf16.gmra.mxu0 %v1396
    %v3401 = vpop.f32.mrf.mxu0
    %v3402 = vadd.f32 %v3313, %v3401
    %v3403 = vpop.f32.mrf.mxu0
    %v3404 = vadd.f32 %v3315, %v3403
    %3405 = vmatmul.bf16.gmra.mxu0 %v1404
    %v3406 = vpop.f32.mrf.mxu0
    %v3407 = vadd.f32 %v3318, %v3406
    %v3408 = vpop.f32.mrf.mxu0
    %v3409 = vadd.f32 %v3320, %v3408
    %3410 = vmatmul.bf16.gmra.mxu0 %v1412
    %v3411 = vpop.f32.mrf.mxu0
    %v3412 = vadd.f32 %v3323, %v3411
    %v3413 = vpop.f32.mrf.mxu0
    %v3414 = vadd.f32 %v3325, %v3413
    %3415 = vmatmul.bf16.gmra.mxu0 %v1420
    %v3416 = vpop.f32.mrf.mxu0
    %v3417 = vadd.f32 %v3328, %v3416
    %v3418 = vpop.f32.mrf.mxu0
    %v3419 = vadd.f32 %v3330, %v3418
    %3420 = vmatmul.bf16.gmra.mxu0 %v1428
    %v3421 = vpop.f32.mrf.mxu0
    %v3422 = vadd.f32 %v3333, %v3421
    %v3423 = vpop.f32.mrf.mxu0
    %v3424 = vadd.f32 %v3335, %v3423
    %3425 = vmatmul.bf16.gmra.mxu0 %v1436
    %v3426 = vpop.f32.mrf.mxu0
    %v3427 = vadd.f32 %v3338, %v3426
    %v3428 = vpop.f32.mrf.mxu0
    %v3429 = vadd.f32 %v3340, %v3428
    %3430 = vmatmul.bf16.gmra.mxu0 %v1444
    %v3431 = vpop.f32.mrf.mxu0
    %v3432 = vadd.f32 %v3343, %v3431
    %v3433 = vpop.f32.mrf.mxu0
    %v3434 = vadd.f32 %v3345, %v3433
    %3435 = vmatmul.bf16.gmra.mxu0 %v1452
    %v3436 = vpop.f32.mrf.mxu0
    %v3437 = vadd.f32 %v3348, %v3436
    %v3438 = vpop.f32.mrf.mxu0
    %v3439 = vadd.f32 %v3350, %v3438
    %3440 = vmatmul.bf16.gmra.mxu0 %v1460
    %v3441 = vpop.f32.mrf.mxu0
    %v3442 = vadd.f32 %v3353, %v3441
    %v3443 = vpop.f32.mrf.mxu0
    %v3444 = vadd.f32 %v3355, %v3443
    %3445 = vmatmul.bf16.gmra.mxu0 %v1468
    %v3446 = vpop.f32.mrf.mxu0
    %v3447 = vadd.f32 %v3358, %v3446
    %v3448 = vpop.f32.mrf.mxu0
    %v3449 = vadd.f32 %v3360, %v3448
    %3450 = vdwg.mxu0
    %3451 = vmatpush.bf16.msra.mxu0 %v2133
    %3452 = vmatpush.bf16.msra.mxu0 %v2131
    %3453 = vmatpush.bf16.msra.mxu0 %v2129
    %3454 = vmatpush.bf16.msra.mxu0 %v2127
    %3455 = vmatpush.bf16.msra.mxu0 %v2125
    %3456 = vmatpush.bf16.msra.mxu0 %v2123
    %3457 = vmatpush.bf16.msra.mxu0 %v2121
    %3458 = vmatpush.bf16.msra.mxu0 %v2119
    %3459 = vmatmul.bf16.gmra.mxu0 %v1349
    %v3460 = vpop.f32.mrf.mxu0
    %v3461 = vadd.f32 %v3372, %v3460
    %v3462 = vpop.f32.mrf.mxu0
    %v3463 = vadd.f32 %v3374, %v3462
    %3464 = vmatmul.bf16.gmra.mxu0 %v1357
    %v3465 = vpop.f32.mrf.mxu0
    %v3466 = vadd.f32 %v3377, %v3465
    %v3467 = vpop.f32.mrf.mxu0
    %v3468 = vadd.f32 %v3379, %v3467
    %3469 = vmatmul.bf16.gmra.mxu0 %v1365
    %v3470 = vpop.f32.mrf.mxu0
    %v3471 = vadd.f32 %v3382, %v3470
    %v3472 = vpop.f32.mrf.mxu0
    %v3473 = vadd.f32 %v3384, %v3472
    %3474 = vmatmul.bf16.gmra.mxu0 %v1373
    %v3475 = vpop.f32.mrf.mxu0
    %v3476 = vadd.f32 %v3387, %v3475
    %v3477 = vpop.f32.mrf.mxu0
    %v3478 = vadd.f32 %v3389, %v3477
    %3479 = vmatmul.bf16.gmra.mxu0 %v1381
    %v3480 = vpop.f32.mrf.mxu0
    %v3481 = vadd.f32 %v3392, %v3480
    %v3482 = vpop.f32.mrf.mxu0
    %v3483 = vadd.f32 %v3394, %v3482
    %3484 = vmatmul.bf16.gmra.mxu0 %v1389
    %v3485 = vpop.f32.mrf.mxu0
    %v3486 = vadd.f32 %v3397, %v3485
    %v3487 = vpop.f32.mrf.mxu0
    %v3488 = vadd.f32 %v3399, %v3487
    %3489 = vmatmul.bf16.gmra.mxu0 %v1397
    %v3490 = vpop.f32.mrf.mxu0
    %v3491 = vadd.f32 %v3402, %v3490
    %v3492 = vpop.f32.mrf.mxu0
    %v3493 = vadd.f32 %v3404, %v3492
    %3494 = vmatmul.bf16.gmra.mxu0 %v1405
    %v3495 = vpop.f32.mrf.mxu0
    %v3496 = vadd.f32 %v3407, %v3495
    %v3497 = vpop.f32.mrf.mxu0
    %v3498 = vadd.f32 %v3409, %v3497
    %3499 = vmatmul.bf16.gmra.mxu0 %v1413
    %v3500 = vpop.f32.mrf.mxu0
    %v3501 = vadd.f32 %v3412, %v3500
    %v3502 = vpop.f32.mrf.mxu0
    %v3503 = vadd.f32 %v3414, %v3502
    %3504 = vmatmul.bf16.gmra.mxu0 %v1421
    %v3505 = vpop.f32.mrf.mxu0
    %v3506 = vadd.f32 %v3417, %v3505
    %v3507 = vpop.f32.mrf.mxu0
    %v3508 = vadd.f32 %v3419, %v3507
    %3509 = vmatmul.bf16.gmra.mxu0 %v1429
    %v3510 = vpop.f32.mrf.mxu0
    %v3511 = vadd.f32 %v3422, %v3510
    %v3512 = vpop.f32.mrf.mxu0
    %v3513 = vadd.f32 %v3424, %v3512
    %3514 = vmatmul.bf16.gmra.mxu0 %v1437
    %v3515 = vpop.f32.mrf.mxu0
    %v3516 = vadd.f32 %v3427, %v3515
    %v3517 = vpop.f32.mrf.mxu0
    %v3518 = vadd.f32 %v3429, %v3517
    %3519 = vmatmul.bf16.gmra.mxu0 %v1445
    %v3520 = vpop.f32.mrf.mxu0
    %v3521 = vadd.f32 %v3432, %v3520
    %v3522 = vpop.f32.mrf.mxu0
    %v3523 = vadd.f32 %v3434, %v3522
    %3524 = vmatmul.bf16.gmra.mxu0 %v1453
    %v3525 = vpop.f32.mrf.mxu0
    %v3526 = vadd.f32 %v3437, %v3525
    %v3527 = vpop.f32.mrf.mxu0
    %v3528 = vadd.f32 %v3439, %v3527
    %3529 = vmatmul.bf16.gmra.mxu0 %v1461
    %v3530 = vpop.f32.mrf.mxu0
    %v3531 = vadd.f32 %v3442, %v3530
    %v3532 = vpop.f32.mrf.mxu0
    %v3533 = vadd.f32 %v3444, %v3532
    %3534 = vmatmul.bf16.gmra.mxu0 %v1469
    %v3535 = vpop.f32.mrf.mxu0
    %v3536 = vadd.f32 %v3447, %v3535
    %v3537 = vpop.f32.mrf.mxu0
    %v3538 = vadd.f32 %v3449, %v3537
    %3539 = vdwg.mxu0
    %3540 = vmatpush.bf16.msra.mxu0 %v2149
    %3541 = vmatpush.bf16.msra.mxu0 %v2147
    %3542 = vmatpush.bf16.msra.mxu0 %v2145
    %3543 = vmatpush.bf16.msra.mxu0 %v2143
    %3544 = vmatpush.bf16.msra.mxu0 %v2141
    %3545 = vmatpush.bf16.msra.mxu0 %v2139
    %3546 = vmatpush.bf16.msra.mxu0 %v2137
    %3547 = vmatpush.bf16.msra.mxu0 %v2135
    %3548 = vmatmul.bf16.gmra.mxu0 %v1350
    %v3549 = vpop.f32.mrf.mxu0
    %v3550 = vadd.f32 %v3461, %v3549
    %v3551 = vpop.f32.mrf.mxu0
    %v3552 = vadd.f32 %v3463, %v3551
    %3553 = vmatmul.bf16.gmra.mxu0 %v1358
    %v3554 = vpop.f32.mrf.mxu0
    %v3555 = vadd.f32 %v3466, %v3554
    %v3556 = vpop.f32.mrf.mxu0
    %v3557 = vadd.f32 %v3468, %v3556
    %3558 = vmatmul.bf16.gmra.mxu0 %v1366
    %v3559 = vpop.f32.mrf.mxu0
    %v3560 = vadd.f32 %v3471, %v3559
    %v3561 = vpop.f32.mrf.mxu0
    %v3562 = vadd.f32 %v3473, %v3561
    %3563 = vmatmul.bf16.gmra.mxu0 %v1374
    %v3564 = vpop.f32.mrf.mxu0
    %v3565 = vadd.f32 %v3476, %v3564
    %v3566 = vpop.f32.mrf.mxu0
    %v3567 = vadd.f32 %v3478, %v3566
    %3568 = vmatmul.bf16.gmra.mxu0 %v1382
    %v3569 = vpop.f32.mrf.mxu0
    %v3570 = vadd.f32 %v3481, %v3569
    %v3571 = vpop.f32.mrf.mxu0
    %v3572 = vadd.f32 %v3483, %v3571
    %3573 = vmatmul.bf16.gmra.mxu0 %v1390
    %v3574 = vpop.f32.mrf.mxu0
    %v3575 = vadd.f32 %v3486, %v3574
    %v3576 = vpop.f32.mrf.mxu0
    %v3577 = vadd.f32 %v3488, %v3576
    %3578 = vmatmul.bf16.gmra.mxu0 %v1398
    %v3579 = vpop.f32.mrf.mxu0
    %v3580 = vadd.f32 %v3491, %v3579
    %v3581 = vpop.f32.mrf.mxu0
    %v3582 = vadd.f32 %v3493, %v3581
    %3583 = vmatmul.bf16.gmra.mxu0 %v1406
    %v3584 = vpop.f32.mrf.mxu0
    %v3585 = vadd.f32 %v3496, %v3584
    %v3586 = vpop.f32.mrf.mxu0
    %v3587 = vadd.f32 %v3498, %v3586
    %3588 = vmatmul.bf16.gmra.mxu0 %v1414
    %v3589 = vpop.f32.mrf.mxu0
    %v3590 = vadd.f32 %v3501, %v3589
    %v3591 = vpop.f32.mrf.mxu0
    %v3592 = vadd.f32 %v3503, %v3591
    %3593 = vmatmul.bf16.gmra.mxu0 %v1422
    %v3594 = vpop.f32.mrf.mxu0
    %v3595 = vadd.f32 %v3506, %v3594
    %v3596 = vpop.f32.mrf.mxu0
    %v3597 = vadd.f32 %v3508, %v3596
    %3598 = vmatmul.bf16.gmra.mxu0 %v1430
    %v3599 = vpop.f32.mrf.mxu0
    %v3600 = vadd.f32 %v3511, %v3599
    %v3601 = vpop.f32.mrf.mxu0
    %v3602 = vadd.f32 %v3513, %v3601
    %3603 = vmatmul.bf16.gmra.mxu0 %v1438
    %v3604 = vpop.f32.mrf.mxu0
    %v3605 = vadd.f32 %v3516, %v3604
    %v3606 = vpop.f32.mrf.mxu0
    %v3607 = vadd.f32 %v3518, %v3606
    %3608 = vmatmul.bf16.gmra.mxu0 %v1446
    %v3609 = vpop.f32.mrf.mxu0
    %v3610 = vadd.f32 %v3521, %v3609
    %v3611 = vpop.f32.mrf.mxu0
    %v3612 = vadd.f32 %v3523, %v3611
    %3613 = vmatmul.bf16.gmra.mxu0 %v1454
    %v3614 = vpop.f32.mrf.mxu0
    %v3615 = vadd.f32 %v3526, %v3614
    %v3616 = vpop.f32.mrf.mxu0
    %v3617 = vadd.f32 %v3528, %v3616
    %3618 = vmatmul.bf16.gmra.mxu0 %v1462
    %v3619 = vpop.f32.mrf.mxu0
    %v3620 = vadd.f32 %v3531, %v3619
    %v3621 = vpop.f32.mrf.mxu0
    %v3622 = vadd.f32 %v3533, %v3621
    %3623 = vmatmul.bf16.gmra.mxu0 %v1470
    %v3624 = vpop.f32.mrf.mxu0
    %v3625 = vadd.f32 %v3536, %v3624
    %v3626 = vpop.f32.mrf.mxu0
    %v3627 = vadd.f32 %v3538, %v3626
    %3628 = vdwg.mxu0
    %3629 = vmatpush.bf16.msra.mxu0 %v2165
    %3630 = vmatpush.bf16.msra.mxu0 %v2163
    %3631 = vmatpush.bf16.msra.mxu0 %v2161
    %3632 = vmatpush.bf16.msra.mxu0 %v2159
    %3633 = vmatpush.bf16.msra.mxu0 %v2157
    %3634 = vmatpush.bf16.msra.mxu0 %v2155
    %3635 = vmatpush.bf16.msra.mxu0 %v2153
    %3636 = vmatpush.bf16.msra.mxu0 %v2151
    %3637 = vmatmul.bf16.gmra.mxu0 %v1351
    %v3638 = vpop.f32.mrf.mxu0
    %v3639 = vadd.f32 %v3550, %v3638
    %v3640 = vpop.f32.mrf.mxu0
    %v3641 = vadd.f32 %v3552, %v3640
    %3642 = vmatmul.bf16.gmra.mxu0 %v1359
    %v3643 = vpop.f32.mrf.mxu0
    %v3644 = vadd.f32 %v3555, %v3643
    %v3645 = vpop.f32.mrf.mxu0
    %v3646 = vadd.f32 %v3557, %v3645
    %3647 = vmatmul.bf16.gmra.mxu0 %v1367
    %v3648 = vpop.f32.mrf.mxu0
    %v3649 = vadd.f32 %v3560, %v3648
    %v3650 = vpop.f32.mrf.mxu0
    %v3651 = vadd.f32 %v3562, %v3650
    %3652 = vmatmul.bf16.gmra.mxu0 %v1375
    %v3653 = vpop.f32.mrf.mxu0
    %v3654 = vadd.f32 %v3565, %v3653
    %v3655 = vpop.f32.mrf.mxu0
    %v3656 = vadd.f32 %v3567, %v3655
    %3657 = vmatmul.bf16.gmra.mxu0 %v1383
    %v3658 = vpop.f32.mrf.mxu0
    %v3659 = vadd.f32 %v3570, %v3658
    %v3660 = vpop.f32.mrf.mxu0
    %v3661 = vadd.f32 %v3572, %v3660
    %3662 = vmatmul.bf16.gmra.mxu0 %v1391
    %v3663 = vpop.f32.mrf.mxu0
    %v3664 = vadd.f32 %v3575, %v3663
    %v3665 = vpop.f32.mrf.mxu0
    %v3666 = vadd.f32 %v3577, %v3665
    %3667 = vmatmul.bf16.gmra.mxu0 %v1399
    %v3668 = vpop.f32.mrf.mxu0
    %v3669 = vadd.f32 %v3580, %v3668
    %v3670 = vpop.f32.mrf.mxu0
    %v3671 = vadd.f32 %v3582, %v3670
    %3672 = vmatmul.bf16.gmra.mxu0 %v1407
    %v3673 = vpop.f32.mrf.mxu0
    %v3674 = vadd.f32 %v3585, %v3673
    %v3675 = vpop.f32.mrf.mxu0
    %v3676 = vadd.f32 %v3587, %v3675
    %3677 = vmatmul.bf16.gmra.mxu0 %v1415
    %v3678 = vpop.f32.mrf.mxu0
    %v3679 = vadd.f32 %v3590, %v3678
    %v3680 = vpop.f32.mrf.mxu0
    %v3681 = vadd.f32 %v3592, %v3680
    %3682 = vmatmul.bf16.gmra.mxu0 %v1423
    %v3683 = vpop.f32.mrf.mxu0
    %v3684 = vadd.f32 %v3595, %v3683
    %v3685 = vpop.f32.mrf.mxu0
    %v3686 = vadd.f32 %v3597, %v3685
    %3687 = vmatmul.bf16.gmra.mxu0 %v1431
    %v3688 = vpop.f32.mrf.mxu0
    %v3689 = vadd.f32 %v3600, %v3688
    %v3690 = vpop.f32.mrf.mxu0
    %v3691 = vadd.f32 %v3602, %v3690
    %3692 = vmatmul.bf16.gmra.mxu0 %v1439
    %v3693 = vpop.f32.mrf.mxu0
    %v3694 = vadd.f32 %v3605, %v3693
    %v3695 = vpop.f32.mrf.mxu0
    %v3696 = vadd.f32 %v3607, %v3695
    %3697 = vmatmul.bf16.gmra.mxu0 %v1447
    %v3698 = vpop.f32.mrf.mxu0
    %v3699 = vadd.f32 %v3610, %v3698
    %v3700 = vpop.f32.mrf.mxu0
    %v3701 = vadd.f32 %v3612, %v3700
    %3702 = vmatmul.bf16.gmra.mxu0 %v1455
    %v3703 = vpop.f32.mrf.mxu0
    %v3704 = vadd.f32 %v3615, %v3703
    %v3705 = vpop.f32.mrf.mxu0
    %v3706 = vadd.f32 %v3617, %v3705
    %3707 = vmatmul.bf16.gmra.mxu0 %v1463
    %v3708 = vpop.f32.mrf.mxu0
    %v3709 = vadd.f32 %v3620, %v3708
    %v3710 = vpop.f32.mrf.mxu0
    %v3711 = vadd.f32 %v3622, %v3710
    %3712 = vmatmul.bf16.gmra.mxu0 %v1471
    %v3713 = vpop.f32.mrf.mxu0
    %v3714 = vadd.f32 %v3625, %v3713
    %v3715 = vpop.f32.mrf.mxu0
    %v3716 = vadd.f32 %v3627, %v3715
    %3717 = vdwg.mxu0
    %v3718 = vpack.c.bf16 %v2929, %v2927
    %v3719 = vpack.c.bf16 %v3641, %v3639
    %v3720 = vpack.c.bf16 %v2934, %v2932
    %v3721 = vpack.c.bf16 %v3646, %v3644
    %v3722 = vpack.c.bf16 %v2939, %v2937
    %v3723 = vpack.c.bf16 %v3651, %v3649
    %v3724 = vpack.c.bf16 %v2944, %v2942
    %v3725 = vpack.c.bf16 %v3656, %v3654
    %v3726 = vpack.c.bf16 %v2949, %v2947
    %v3727 = vpack.c.bf16 %v3661, %v3659
    %v3728 = vpack.c.bf16 %v2954, %v2952
    %v3729 = vpack.c.bf16 %v3666, %v3664
    %v3730 = vpack.c.bf16 %v2959, %v2957
    %v3731 = vpack.c.bf16 %v3671, %v3669
    %v3732 = vpack.c.bf16 %v2964, %v2962
    %v3733 = vpack.c.bf16 %v3676, %v3674
    %v3734 = vpack.c.bf16 %v2969, %v2967
    %v3735 = vpack.c.bf16 %v3681, %v3679
    %v3736 = vpack.c.bf16 %v2974, %v2972
    %v3737 = vpack.c.bf16 %v3686, %v3684
    %v3738 = vpack.c.bf16 %v2979, %v2977
    %v3739 = vpack.c.bf16 %v3691, %v3689
    %v3740 = vpack.c.bf16 %v2984, %v2982
    %v3741 = vpack.c.bf16 %v3696, %v3694
    %v3742 = vpack.c.bf16 %v2989, %v2987
    %v3743 = vpack.c.bf16 %v3701, %v3699
    %v3744 = vpack.c.bf16 %v2994, %v2992
    %v3745 = vpack.c.bf16 %v3706, %v3704
    %v3746 = vpack.c.bf16 %v2999, %v2997
    %v3747 = vpack.c.bf16 %v3711, %v3709
    %v3748 = vpack.c.bf16 %v3004, %v3002
    %v3749 = vpack.c.bf16 %v3716, %v3714
    %v3750 = vld [vmem:[%s4] sm:$0xff]
    %v3751 = vld [vmem:[%s4 + $0x8] sm:$0xf]
    %v3752 = vld [vmem:[%s4 + $0xc] sm:$0xff]
    %v3753 = vld [vmem:[%s4 + $0x14] sm:$0xf]
    %v3754 = vld [vmem:[%s4 + $0x18] sm:$0xff]
    %v3755 = vld [vmem:[%s4 + $0x20] sm:$0xf]
    %v3756 = vld [vmem:[%s4 + $0x24] sm:$0xff]
    %v3757 = vld [vmem:[%s4 + $0x2c] sm:$0xf]
    %v3758 = vld [vmem:[%s4 + $0x30] sm:$0xff]
    %v3759 = vld [vmem:[%s4 + $0x38] sm:$0xf]
    %v3760 = vld [vmem:[%s4 + $0x3c] sm:$0xff]
    %v3761 = vld [vmem:[%s4 + $0x44] sm:$0xf]
    %v3762 = vld [vmem:[%s4 + $0x48] sm:$0xff]
    %v3763 = vld [vmem:[%s4 + $0x50] sm:$0xf]
    %v3764 = vld [vmem:[%s4 + $0x54] sm:$0xff]
    %v3765 = vld [vmem:[%s4 + $0x5c] sm:$0xf]
    %v3766 = vld [vmem:[%s4 + $0x60] sm:$0xff]
    %v3767 = vld [vmem:[%s4 + $0x68] sm:$0xf]
    %v3768 = vld [vmem:[%s4 + $0x6c] sm:$0xff]
    %v3769 = vld [vmem:[%s4 + $0x74] sm:$0xf]
    %v3770 = vld [vmem:[%s4 + $0x78] sm:$0xff]
    %v3771 = vld [vmem:[%s4 + $0x80] sm:$0xf]
    %v3772 = vld [vmem:[%s4 + $0x84] sm:$0xff]
    %v3773 = vld [vmem:[%s4 + $0x8c] sm:$0xf]
    %v3774 = vld [vmem:[%s4 + $0x90] sm:$0xff]
    %v3775 = vld [vmem:[%s4 + $0x98] sm:$0xf]
    %v3776 = vld [vmem:[%s4 + $0x9c] sm:$0xff]
    %v3777 = vld [vmem:[%s4 + $0xa4] sm:$0xf]
    %v3778 = vld [vmem:[%s4 + $0xa8] sm:$0xff]
    %v3779 = vld [vmem:[%s4 + $0xb0] sm:$0xf]
    %v3780 = vld [vmem:[%s4 + $0xb4] sm:$0xff]
    %v3781 = vld [vmem:[%s4 + $0xbc] sm:$0xf]
    %v3782 = vld [vmem:[%s4 + $0xc0] sm:$0xff]
    %v3783 = vld [vmem:[%s4 + $0xc8] sm:$0xf]
    %v3784 = vld [vmem:[%s4 + $0xcc] sm:$0xff]
    %v3785 = vld [vmem:[%s4 + $0xd4] sm:$0xf]
    %v3786 = vld [vmem:[%s4 + $0xd8] sm:$0xff]
    %v3787 = vld [vmem:[%s4 + $0xe0] sm:$0xf]
    %v3788 = vld [vmem:[%s4 + $0xe4] sm:$0xff]
    %v3789 = vld [vmem:[%s4 + $0xec] sm:$0xf]
    %v3790 = vld [vmem:[%s4 + $0xf0] sm:$0xff]
    %v3791 = vld [vmem:[%s4 + $0xf8] sm:$0xf]
    %v3792 = vld [vmem:[%s4 + $0xfc] sm:$0xff]
    %v3793 = vld [vmem:[%s4 + $0x104] sm:$0xf]
    %v3794 = vld [vmem:[%s4 + $0x108] sm:$0xff]
    %v3795 = vld [vmem:[%s4 + $0x110] sm:$0xf]
    %v3796 = vld [vmem:[%s4 + $0x114] sm:$0xff]
    %v3797 = vld [vmem:[%s4 + $0x11c] sm:$0xf]
    %v3798 = vld [vmem:[%s4 + $0x120] sm:$0xff]
    %v3799 = vld [vmem:[%s4 + $0x128] sm:$0xf]
    %v3800 = vld [vmem:[%s4 + $0x12c] sm:$0xff]
    %v3801 = vld [vmem:[%s4 + $0x134] sm:$0xf]
    %v3802 = vld [vmem:[%s4 + $0x138] sm:$0xff]
    %v3803 = vld [vmem:[%s4 + $0x140] sm:$0xf]
    %v3804 = vld [vmem:[%s4 + $0x144] sm:$0xff]
    %v3805 = vld [vmem:[%s4 + $0x14c] sm:$0xf]
    %v3806 = vld [vmem:[%s4 + $0x150] sm:$0xff]
    %v3807 = vld [vmem:[%s4 + $0x158] sm:$0xf]
    %v3808 = vld [vmem:[%s4 + $0x15c] sm:$0xff]
    %v3809 = vld [vmem:[%s4 + $0x164] sm:$0xf]
    %v3810 = vld [vmem:[%s4 + $0x168] sm:$0xff]
    %v3811 = vld [vmem:[%s4 + $0x170] sm:$0xf]
    %v3812 = vld [vmem:[%s4 + $0x174] sm:$0xff]
    %v3813 = vld [vmem:[%s4 + $0x17c] sm:$0xf]
    %v3814 = vld [vmem:[%s5] sm:$0xff]
    %v3815 = vld [vmem:[%s5 + $0x8] sm:$0xf]
    %v3816 = vld [vmem:[%s5 + $0xc] sm:$0xff]
    %v3817 = vld [vmem:[%s5 + $0x14] sm:$0xf]
    %v3822 = vunpack.c.l.b16 %v3814
    %v3823 = vunpack.c.h.b16 %v3814
    %v3824 = vunpack.c.l.b16 %v3815
    %v3825 = vunpack.c.l.b16 %v3816
    %v3826 = vunpack.c.h.b16 %v3816
    %v3827 = vunpack.c.l.b16 %v3817
    %v3828 = vpack.c.b16 %v3825, %v3822
    %v3829 = vpack.c.b16 %v3826, %v3823
    %v3830 = vpack.c.b16 %v3827, %v3824
    %vm3834 = vcmask 130048
    %v3836 = vsel %vm3834, %v1504, 0
    %v3839 = vsel %vm3834, %v1505, 0
    %v3842 = vsel %vm3834, %v1506, 0
    %v3845 = vsel %vm3834, %v1507, 0
    %v3848 = vsel %vm3834, %v1508, 0
    %v3851 = vsel %vm3834, %v1509, 0
    %v3854 = vsel %vm3834, %v1510, 0
    %v3857 = vsel %vm3834, %v1511, 0
    %v3860 = vsel %vm3834, %v1512, 0
    %v3863 = vsel %vm3834, %v1513, 0
    %v3866 = vsel %vm3834, %v1514, 0
    %v3869 = vsel %vm3834, %v1515, 0
    %v3872 = vsel %vm3834, %v1516, 0
    %v3875 = vsel %vm3834, %v1517, 0
    %v3878 = vsel %vm3834, %v1518, 0
    %v3881 = vsel %vm3834, %v1519, 0
    %3883 = vmatpush.bf16.msra.mxu0 0
    %3884 = vmatpush.bf16.msra.mxu0 0
    %3885 = vmatpush.bf16.msra.mxu0 0
    %3886 = vmatpush.bf16.msra.mxu0 0
    %3887 = vmatpush.bf16.msra.mxu0 0
    %3888 = vmatpush.bf16.msra.mxu0 0
    %3889 = vmatpush.bf16.msra.mxu0 0
    %3890 = vmatpush.bf16.msra.mxu0 %v3828
    %3891 = vmatmul.bf16.gmra.mxu0 %v3836
    %v3892 = vpop.f32.mrf.mxu0
    %v3893 = vadd.f32 0.0, %v3892
    %v3894 = vpop.f32.mrf.mxu0
    %v3895 = vadd.f32 0.0, %v3894
    %3896 = vmatmul.bf16.gmra.mxu0 %v3839
    %v3897 = vpop.f32.mrf.mxu0
    %v3898 = vadd.f32 0.0, %v3897
    %v3899 = vpop.f32.mrf.mxu0
    %v3900 = vadd.f32 0.0, %v3899
    %3901 = vmatmul.bf16.gmra.mxu0 %v3842
    %v3902 = vpop.f32.mrf.mxu0
    %v3903 = vadd.f32 0.0, %v3902
    %v3904 = vpop.f32.mrf.mxu0
    %v3905 = vadd.f32 0.0, %v3904
    %3906 = vmatmul.bf16.gmra.mxu0 %v3845
    %v3907 = vpop.f32.mrf.mxu0
    %v3908 = vadd.f32 0.0, %v3907
    %v3909 = vpop.f32.mrf.mxu0
    %v3910 = vadd.f32 0.0, %v3909
    %3911 = vmatmul.bf16.gmra.mxu0 %v3848
    %v3912 = vpop.f32.mrf.mxu0
    %v3913 = vadd.f32 0.0, %v3912
    %v3914 = vpop.f32.mrf.mxu0
    %v3915 = vadd.f32 0.0, %v3914
    %3916 = vmatmul.bf16.gmra.mxu0 %v3851
    %v3917 = vpop.f32.mrf.mxu0
    %v3918 = vadd.f32 0.0, %v3917
    %v3919 = vpop.f32.mrf.mxu0
    %v3920 = vadd.f32 0.0, %v3919
    %3921 = vmatmul.bf16.gmra.mxu0 %v3854
    %v3922 = vpop.f32.mrf.mxu0
    %v3923 = vadd.f32 0.0, %v3922
    %v3924 = vpop.f32.mrf.mxu0
    %v3925 = vadd.f32 0.0, %v3924
    %3926 = vmatmul.bf16.gmra.mxu0 %v3857
    %v3927 = vpop.f32.mrf.mxu0
    %v3928 = vadd.f32 0.0, %v3927
    %v3929 = vpop.f32.mrf.mxu0
    %v3930 = vadd.f32 0.0, %v3929
    %3931 = vmatmul.bf16.gmra.mxu0 %v3860
    %v3932 = vpop.f32.mrf.mxu0
    %v3933 = vadd.f32 0.0, %v3932
    %v3934 = vpop.f32.mrf.mxu0
    %v3935 = vadd.f32 0.0, %v3934
    %3936 = vmatmul.bf16.gmra.mxu0 %v3863
    %v3937 = vpop.f32.mrf.mxu0
    %v3938 = vadd.f32 0.0, %v3937
    %v3939 = vpop.f32.mrf.mxu0
    %v3940 = vadd.f32 0.0, %v3939
    %3941 = vmatmul.bf16.gmra.mxu0 %v3866
    %v3942 = vpop.f32.mrf.mxu0
    %v3943 = vadd.f32 0.0, %v3942
    %v3944 = vpop.f32.mrf.mxu0
    %v3945 = vadd.f32 0.0, %v3944
    %3946 = vmatmul.bf16.gmra.mxu0 %v3869
    %v3947 = vpop.f32.mrf.mxu0
    %v3948 = vadd.f32 0.0, %v3947
    %v3949 = vpop.f32.mrf.mxu0
    %v3950 = vadd.f32 0.0, %v3949
    %3951 = vmatmul.bf16.gmra.mxu0 %v3872
    %v3952 = vpop.f32.mrf.mxu0
    %v3953 = vadd.f32 0.0, %v3952
    %v3954 = vpop.f32.mrf.mxu0
    %v3955 = vadd.f32 0.0, %v3954
    %3956 = vmatmul.bf16.gmra.mxu0 %v3875
    %v3957 = vpop.f32.mrf.mxu0
    %v3958 = vadd.f32 0.0, %v3957
    %v3959 = vpop.f32.mrf.mxu0
    %v3960 = vadd.f32 0.0, %v3959
    %3961 = vmatmul.bf16.gmra.mxu0 %v3878
    %v3962 = vpop.f32.mrf.mxu0
    %v3963 = vadd.f32 0.0, %v3962
    %v3964 = vpop.f32.mrf.mxu0
    %v3965 = vadd.f32 0.0, %v3964
    %3966 = vmatmul.bf16.gmra.mxu0 %v3881
    %v3967 = vpop.f32.mrf.mxu0
    %v3968 = vadd.f32 0.0, %v3967
    %v3969 = vpop.f32.mrf.mxu0
    %v3970 = vadd.f32 0.0, %v3969
    %3971 = vdwg.mxu0
    %3972 = vmatpush.bf16.msra.mxu0 0
    %3973 = vmatpush.bf16.msra.mxu0 0
    %3974 = vmatpush.bf16.msra.mxu0 0
    %3975 = vmatpush.bf16.msra.mxu0 0
    %3976 = vmatpush.bf16.msra.mxu0 0
    %3977 = vmatpush.bf16.msra.mxu0 0
    %3978 = vmatpush.bf16.msra.mxu0 0
    %3979 = vmatpush.bf16.msra.mxu0 %v3829
    %3980 = vmatmul.bf16.gmra.mxu0 %v3836
    %v3981 = vpop.f32.mrf.mxu0
    %v3982 = vadd.f32 0.0, %v3981
    %v3983 = vpop.f32.mrf.mxu0
    %v3984 = vadd.f32 0.0, %v3983
    %3985 = vmatmul.bf16.gmra.mxu0 %v3839
    %v3986 = vpop.f32.mrf.mxu0
    %v3987 = vadd.f32 0.0, %v3986
    %v3988 = vpop.f32.mrf.mxu0
    %v3989 = vadd.f32 0.0, %v3988
    %3990 = vmatmul.bf16.gmra.mxu0 %v3842
    %v3991 = vpop.f32.mrf.mxu0
    %v3992 = vadd.f32 0.0, %v3991
    %v3993 = vpop.f32.mrf.mxu0
    %v3994 = vadd.f32 0.0, %v3993
    %3995 = vmatmul.bf16.gmra.mxu0 %v3845
    %v3996 = vpop.f32.mrf.mxu0
    %v3997 = vadd.f32 0.0, %v3996
    %v3998 = vpop.f32.mrf.mxu0
    %v3999 = vadd.f32 0.0, %v3998
    %4000 = vmatmul.bf16.gmra.mxu0 %v3848
    %v4001 = vpop.f32.mrf.mxu0
    %v4002 = vadd.f32 0.0, %v4001
    %v4003 = vpop.f32.mrf.mxu0
    %v4004 = vadd.f32 0.0, %v4003
    %4005 = vmatmul.bf16.gmra.mxu0 %v3851
    %v4006 = vpop.f32.mrf.mxu0
    %v4007 = vadd.f32 0.0, %v4006
    %v4008 = vpop.f32.mrf.mxu0
    %v4009 = vadd.f32 0.0, %v4008
    %4010 = vmatmul.bf16.gmra.mxu0 %v3854
    %v4011 = vpop.f32.mrf.mxu0
    %v4012 = vadd.f32 0.0, %v4011
    %v4013 = vpop.f32.mrf.mxu0
    %v4014 = vadd.f32 0.0, %v4013
    %4015 = vmatmul.bf16.gmra.mxu0 %v3857
    %v4016 = vpop.f32.mrf.mxu0
    %v4017 = vadd.f32 0.0, %v4016
    %v4018 = vpop.f32.mrf.mxu0
    %v4019 = vadd.f32 0.0, %v4018
    %4020 = vmatmul.bf16.gmra.mxu0 %v3860
    %v4021 = vpop.f32.mrf.mxu0
    %v4022 = vadd.f32 0.0, %v4021
    %v4023 = vpop.f32.mrf.mxu0
    %v4024 = vadd.f32 0.0, %v4023
    %4025 = vmatmul.bf16.gmra.mxu0 %v3863
    %v4026 = vpop.f32.mrf.mxu0
    %v4027 = vadd.f32 0.0, %v4026
    %v4028 = vpop.f32.mrf.mxu0
    %v4029 = vadd.f32 0.0, %v4028
    %4030 = vmatmul.bf16.gmra.mxu0 %v3866
    %v4031 = vpop.f32.mrf.mxu0
    %v4032 = vadd.f32 0.0, %v4031
    %v4033 = vpop.f32.mrf.mxu0
    %v4034 = vadd.f32 0.0, %v4033
    %4035 = vmatmul.bf16.gmra.mxu0 %v3869
    %v4036 = vpop.f32.mrf.mxu0
    %v4037 = vadd.f32 0.0, %v4036
    %v4038 = vpop.f32.mrf.mxu0
    %v4039 = vadd.f32 0.0, %v4038
    %4040 = vmatmul.bf16.gmra.mxu0 %v3872
    %v4041 = vpop.f32.mrf.mxu0
    %v4042 = vadd.f32 0.0, %v4041
    %v4043 = vpop.f32.mrf.mxu0
    %v4044 = vadd.f32 0.0, %v4043
    %4045 = vmatmul.bf16.gmra.mxu0 %v3875
    %v4046 = vpop.f32.mrf.mxu0
    %v4047 = vadd.f32 0.0, %v4046
    %v4048 = vpop.f32.mrf.mxu0
    %v4049 = vadd.f32 0.0, %v4048
    %4050 = vmatmul.bf16.gmra.mxu0 %v3878
    %v4051 = vpop.f32.mrf.mxu0
    %v4052 = vadd.f32 0.0, %v4051
    %v4053 = vpop.f32.mrf.mxu0
    %v4054 = vadd.f32 0.0, %v4053
    %4055 = vmatmul.bf16.gmra.mxu0 %v3881
    %v4056 = vpop.f32.mrf.mxu0
    %v4057 = vadd.f32 0.0, %v4056
    %v4058 = vpop.f32.mrf.mxu0
    %v4059 = vadd.f32 0.0, %v4058
    %4060 = vdwg.mxu0
    %4061 = vmatpush.bf16.msra.mxu0 0
    %4062 = vmatpush.bf16.msra.mxu0 0
    %4063 = vmatpush.bf16.msra.mxu0 0
    %4064 = vmatpush.bf16.msra.mxu0 0
    %4065 = vmatpush.bf16.msra.mxu0 0
    %4066 = vmatpush.bf16.msra.mxu0 0
    %4067 = vmatpush.bf16.msra.mxu0 0
    %4068 = vmatpush.bf16.msra.mxu0 %v3830
    %4069 = vmatmul.bf16.gmra.mxu0 %v3836
    %v4070 = vpop.f32.mrf.mxu0
    %v4071 = vadd.f32 0.0, %v4070
    %v4072 = vpop.f32.mrf.mxu0
    %v4073 = vadd.f32 0.0, %v4072
    %4074 = vmatmul.bf16.gmra.mxu0 %v3839
    %v4075 = vpop.f32.mrf.mxu0
    %v4076 = vadd.f32 0.0, %v4075
    %v4077 = vpop.f32.mrf.mxu0
    %v4078 = vadd.f32 0.0, %v4077
    %4079 = vmatmul.bf16.gmra.mxu0 %v3842
    %v4080 = vpop.f32.mrf.mxu0
    %v4081 = vadd.f32 0.0, %v4080
    %v4082 = vpop.f32.mrf.mxu0
    %v4083 = vadd.f32 0.0, %v4082
    %4084 = vmatmul.bf16.gmra.mxu0 %v3845
    %v4085 = vpop.f32.mrf.mxu0
    %v4086 = vadd.f32 0.0, %v4085
    %v4087 = vpop.f32.mrf.mxu0
    %v4088 = vadd.f32 0.0, %v4087
    %4089 = vmatmul.bf16.gmra.mxu0 %v3848
    %v4090 = vpop.f32.mrf.mxu0
    %v4091 = vadd.f32 0.0, %v4090
    %v4092 = vpop.f32.mrf.mxu0
    %v4093 = vadd.f32 0.0, %v4092
    %4094 = vmatmul.bf16.gmra.mxu0 %v3851
    %v4095 = vpop.f32.mrf.mxu0
    %v4096 = vadd.f32 0.0, %v4095
    %v4097 = vpop.f32.mrf.mxu0
    %v4098 = vadd.f32 0.0, %v4097
    %4099 = vmatmul.bf16.gmra.mxu0 %v3854
    %v4100 = vpop.f32.mrf.mxu0
    %v4101 = vadd.f32 0.0, %v4100
    %v4102 = vpop.f32.mrf.mxu0
    %v4103 = vadd.f32 0.0, %v4102
    %4104 = vmatmul.bf16.gmra.mxu0 %v3857
    %v4105 = vpop.f32.mrf.mxu0
    %v4106 = vadd.f32 0.0, %v4105
    %v4107 = vpop.f32.mrf.mxu0
    %v4108 = vadd.f32 0.0, %v4107
    %4109 = vmatmul.bf16.gmra.mxu0 %v3860
    %v4110 = vpop.f32.mrf.mxu0
    %v4111 = vadd.f32 0.0, %v4110
    %v4112 = vpop.f32.mrf.mxu0
    %v4113 = vadd.f32 0.0, %v4112
    %4114 = vmatmul.bf16.gmra.mxu0 %v3863
    %v4115 = vpop.f32.mrf.mxu0
    %v4116 = vadd.f32 0.0, %v4115
    %v4117 = vpop.f32.mrf.mxu0
    %v4118 = vadd.f32 0.0, %v4117
    %4119 = vmatmul.bf16.gmra.mxu0 %v3866
    %v4120 = vpop.f32.mrf.mxu0
    %v4121 = vadd.f32 0.0, %v4120
    %v4122 = vpop.f32.mrf.mxu0
    %v4123 = vadd.f32 0.0, %v4122
    %4124 = vmatmul.bf16.gmra.mxu0 %v3869
    %v4125 = vpop.f32.mrf.mxu0
    %v4126 = vadd.f32 0.0, %v4125
    %v4127 = vpop.f32.mrf.mxu0
    %v4128 = vadd.f32 0.0, %v4127
    %4129 = vmatmul.bf16.gmra.mxu0 %v3872
    %v4130 = vpop.f32.mrf.mxu0
    %v4131 = vadd.f32 0.0, %v4130
    %v4132 = vpop.f32.mrf.mxu0
    %v4133 = vadd.f32 0.0, %v4132
    %4134 = vmatmul.bf16.gmra.mxu0 %v3875
    %v4135 = vpop.f32.mrf.mxu0
    %v4136 = vadd.f32 0.0, %v4135
    %v4137 = vpop.f32.mrf.mxu0
    %v4138 = vadd.f32 0.0, %v4137
    %4139 = vmatmul.bf16.gmra.mxu0 %v3878
    %v4140 = vpop.f32.mrf.mxu0
    %v4141 = vadd.f32 0.0, %v4140
    %v4142 = vpop.f32.mrf.mxu0
    %v4143 = vadd.f32 0.0, %v4142
    %4144 = vmatmul.bf16.gmra.mxu0 %v3881
    %v4145 = vpop.f32.mrf.mxu0
    %v4146 = vadd.f32 0.0, %v4145
    %v4147 = vpop.f32.mrf.mxu0
    %v4148 = vadd.f32 0.0, %v4147
    %4149 = vdwg.mxu0
    %v4214 = vunpack.c.l.b16 %v3750
    %v4215 = vunpack.c.h.b16 %v3750
    %v4216 = vunpack.c.l.b16 %v3751
    %v4217 = vunpack.c.l.b16 %v3752
    %v4218 = vunpack.c.h.b16 %v3752
    %v4219 = vunpack.c.l.b16 %v3753
    %v4220 = vunpack.c.l.b16 %v3754
    %v4221 = vunpack.c.h.b16 %v3754
    %v4222 = vunpack.c.l.b16 %v3755
    %v4223 = vunpack.c.l.b16 %v3756
    %v4224 = vunpack.c.h.b16 %v3756
    %v4225 = vunpack.c.l.b16 %v3757
    %v4226 = vunpack.c.l.b16 %v3758
    %v4227 = vunpack.c.h.b16 %v3758
    %v4228 = vunpack.c.l.b16 %v3759
    %v4229 = vunpack.c.l.b16 %v3760
    %v4230 = vunpack.c.h.b16 %v3760
    %v4231 = vunpack.c.l.b16 %v3761
    %v4232 = vunpack.c.l.b16 %v3762
    %v4233 = vunpack.c.h.b16 %v3762
    %v4234 = vunpack.c.l.b16 %v3763
    %v4235 = vunpack.c.l.b16 %v3764
    %v4236 = vunpack.c.h.b16 %v3764
    %v4237 = vunpack.c.l.b16 %v3765
    %v4238 = vunpack.c.l.b16 %v3766
    %v4239 = vunpack.c.h.b16 %v3766
    %v4240 = vunpack.c.l.b16 %v3767
    %v4241 = vunpack.c.l.b16 %v3768
    %v4242 = vunpack.c.h.b16 %v3768
    %v4243 = vunpack.c.l.b16 %v3769
    %v4244 = vunpack.c.l.b16 %v3770
    %v4245 = vunpack.c.h.b16 %v3770
    %v4246 = vunpack.c.l.b16 %v3771
    %v4247 = vunpack.c.l.b16 %v3772
    %v4248 = vunpack.c.h.b16 %v3772
    %v4249 = vunpack.c.l.b16 %v3773
    %v4250 = vunpack.c.l.b16 %v3774
    %v4251 = vunpack.c.h.b16 %v3774
    %v4252 = vunpack.c.l.b16 %v3775
    %v4253 = vunpack.c.l.b16 %v3776
    %v4254 = vunpack.c.h.b16 %v3776
    %v4255 = vunpack.c.l.b16 %v3777
    %v4256 = vunpack.c.l.b16 %v3778
    %v4257 = vunpack.c.h.b16 %v3778
    %v4258 = vunpack.c.l.b16 %v3779
    %v4259 = vunpack.c.l.b16 %v3780
    %v4260 = vunpack.c.h.b16 %v3780
    %v4261 = vunpack.c.l.b16 %v3781
    %v4262 = vunpack.c.l.b16 %v3782
    %v4263 = vunpack.c.h.b16 %v3782
    %v4264 = vunpack.c.l.b16 %v3783
    %v4265 = vunpack.c.l.b16 %v3784
    %v4266 = vunpack.c.h.b16 %v3784
    %v4267 = vunpack.c.l.b16 %v3785
    %v4268 = vunpack.c.l.b16 %v3786
    %v4269 = vunpack.c.h.b16 %v3786
    %v4270 = vunpack.c.l.b16 %v3787
    %v4271 = vunpack.c.l.b16 %v3788
    %v4272 = vunpack.c.h.b16 %v3788
    %v4273 = vunpack.c.l.b16 %v3789
    %v4274 = vunpack.c.l.b16 %v3790
    %v4275 = vunpack.c.h.b16 %v3790
    %v4276 = vunpack.c.l.b16 %v3791
    %v4277 = vunpack.c.l.b16 %v3792
    %v4278 = vunpack.c.h.b16 %v3792
    %v4279 = vunpack.c.l.b16 %v3793
    %v4280 = vunpack.c.l.b16 %v3794
    %v4281 = vunpack.c.h.b16 %v3794
    %v4282 = vunpack.c.l.b16 %v3795
    %v4283 = vunpack.c.l.b16 %v3796
    %v4284 = vunpack.c.h.b16 %v3796
    %v4285 = vunpack.c.l.b16 %v3797
    %v4286 = vunpack.c.l.b16 %v3798
    %v4287 = vunpack.c.h.b16 %v3798
    %v4288 = vunpack.c.l.b16 %v3799
    %v4289 = vunpack.c.l.b16 %v3800
    %v4290 = vunpack.c.h.b16 %v3800
    %v4291 = vunpack.c.l.b16 %v3801
    %v4292 = vunpack.c.l.b16 %v3802
    %v4293 = vunpack.c.h.b16 %v3802
    %v4294 = vunpack.c.l.b16 %v3803
    %v4295 = vunpack.c.l.b16 %v3804
    %v4296 = vunpack.c.h.b16 %v3804
    %v4297 = vunpack.c.l.b16 %v3805
    %v4298 = vunpack.c.l.b16 %v3806
    %v4299 = vunpack.c.h.b16 %v3806
    %v4300 = vunpack.c.l.b16 %v3807
    %v4301 = vunpack.c.l.b16 %v3808
    %v4302 = vunpack.c.h.b16 %v3808
    %v4303 = vunpack.c.l.b16 %v3809
    %v4304 = vunpack.c.l.b16 %v3810
    %v4305 = vunpack.c.h.b16 %v3810
    %v4306 = vunpack.c.l.b16 %v3811
    %v4307 = vunpack.c.l.b16 %v3812
    %v4308 = vunpack.c.h.b16 %v3812
    %v4309 = vunpack.c.l.b16 %v3813
    %v4310 = vpack.c.b16 %v4217, %v4214
    %v4311 = vpack.c.b16 %v4218, %v4215
    %v4312 = vpack.c.b16 %v4219, %v4216
    %v4313 = vpack.c.b16 %v4223, %v4220
    %v4314 = vpack.c.b16 %v4224, %v4221
    %v4315 = vpack.c.b16 %v4225, %v4222
    %v4316 = vpack.c.b16 %v4229, %v4226
    %v4317 = vpack.c.b16 %v4230, %v4227
    %v4318 = vpack.c.b16 %v4231, %v4228
    %v4319 = vpack.c.b16 %v4235, %v4232
    %v4320 = vpack.c.b16 %v4236, %v4233
    %v4321 = vpack.c.b16 %v4237, %v4234
    %v4322 = vpack.c.b16 %v4241, %v4238
    %v4323 = vpack.c.b16 %v4242, %v4239
    %v4324 = vpack.c.b16 %v4243, %v4240
    %v4325 = vpack.c.b16 %v4247, %v4244
    %v4326 = vpack.c.b16 %v4248, %v4245
    %v4327 = vpack.c.b16 %v4249, %v4246
    %v4328 = vpack.c.b16 %v4253, %v4250
    %v4329 = vpack.c.b16 %v4254, %v4251
    %v4330 = vpack.c.b16 %v4255, %v4252
    %v4331 = vpack.c.b16 %v4259, %v4256
    %v4332 = vpack.c.b16 %v4260, %v4257
    %v4333 = vpack.c.b16 %v4261, %v4258
    %v4334 = vpack.c.b16 %v4265, %v4262
    %v4335 = vpack.c.b16 %v4266, %v4263
    %v4336 = vpack.c.b16 %v4267, %v4264
    %v4337 = vpack.c.b16 %v4271, %v4268
    %v4338 = vpack.c.b16 %v4272, %v4269
    %v4339 = vpack.c.b16 %v4273, %v4270
    %v4340 = vpack.c.b16 %v4277, %v4274
    %v4341 = vpack.c.b16 %v4278, %v4275
    %v4342 = vpack.c.b16 %v4279, %v4276
    %v4343 = vpack.c.b16 %v4283, %v4280
    %v4344 = vpack.c.b16 %v4284, %v4281
    %v4345 = vpack.c.b16 %v4285, %v4282
    %v4346 = vpack.c.b16 %v4289, %v4286
    %v4347 = vpack.c.b16 %v4290, %v4287
    %v4348 = vpack.c.b16 %v4291, %v4288
    %v4349 = vpack.c.b16 %v4295, %v4292
    %v4350 = vpack.c.b16 %v4296, %v4293
    %v4351 = vpack.c.b16 %v4297, %v4294
    %v4352 = vpack.c.b16 %v4301, %v4298
    %v4353 = vpack.c.b16 %v4302, %v4299
    %v4354 = vpack.c.b16 %v4303, %v4300
    %v4355 = vpack.c.b16 %v4307, %v4304
    %v4356 = vpack.c.b16 %v4308, %v4305
    %v4357 = vpack.c.b16 %v4309, %v4306
    %4406 = vmatpush.bf16.msra.mxu0 %v4331
    %4407 = vmatpush.bf16.msra.mxu0 %v4328
    %4408 = vmatpush.bf16.msra.mxu0 %v4325
    %4409 = vmatpush.bf16.msra.mxu0 %v4322
    %4410 = vmatpush.bf16.msra.mxu0 %v4319
    %4411 = vmatpush.bf16.msra.mxu0 %v4316
    %4412 = vmatpush.bf16.msra.mxu0 %v4313
    %4413 = vmatpush.bf16.msra.mxu0 %v4310
    %4414 = vmatmul.bf16.gmra.mxu0 %v3718
    %v4415 = vpop.f32.mrf.mxu0
    %v4416 = vadd.f32 %v3893, %v4415
    %v4417 = vpop.f32.mrf.mxu0
    %v4418 = vadd.f32 %v3895, %v4417
    %4419 = vmatmul.bf16.gmra.mxu0 %v3720
    %v4420 = vpop.f32.mrf.mxu0
    %v4421 = vadd.f32 %v3898, %v4420
    %v4422 = vpop.f32.mrf.mxu0
    %v4423 = vadd.f32 %v3900, %v4422
    %4424 = vmatmul.bf16.gmra.mxu0 %v3722
    %v4425 = vpop.f32.mrf.mxu0
    %v4426 = vadd.f32 %v3903, %v4425
    %v4427 = vpop.f32.mrf.mxu0
    %v4428 = vadd.f32 %v3905, %v4427
    %4429 = vmatmul.bf16.gmra.mxu0 %v3724
    %v4430 = vpop.f32.mrf.mxu0
    %v4431 = vadd.f32 %v3908, %v4430
    %v4432 = vpop.f32.mrf.mxu0
    %v4433 = vadd.f32 %v3910, %v4432
    %4434 = vmatmul.bf16.gmra.mxu0 %v3726
    %v4435 = vpop.f32.mrf.mxu0
    %v4436 = vadd.f32 %v3913, %v4435
    %v4437 = vpop.f32.mrf.mxu0
    %v4438 = vadd.f32 %v3915, %v4437
    %4439 = vmatmul.bf16.gmra.mxu0 %v3728
    %v4440 = vpop.f32.mrf.mxu0
    %v4441 = vadd.f32 %v3918, %v4440
    %v4442 = vpop.f32.mrf.mxu0
    %v4443 = vadd.f32 %v3920, %v4442
    %4444 = vmatmul.bf16.gmra.mxu0 %v3730
    %v4445 = vpop.f32.mrf.mxu0
    %v4446 = vadd.f32 %v3923, %v4445
    %v4447 = vpop.f32.mrf.mxu0
    %v4448 = vadd.f32 %v3925, %v4447
    %4449 = vmatmul.bf16.gmra.mxu0 %v3732
    %v4450 = vpop.f32.mrf.mxu0
    %v4451 = vadd.f32 %v3928, %v4450
    %v4452 = vpop.f32.mrf.mxu0
    %v4453 = vadd.f32 %v3930, %v4452
    %4454 = vmatmul.bf16.gmra.mxu0 %v3734
    %v4455 = vpop.f32.mrf.mxu0
    %v4456 = vadd.f32 %v3933, %v4455
    %v4457 = vpop.f32.mrf.mxu0
    %v4458 = vadd.f32 %v3935, %v4457
    %4459 = vmatmul.bf16.gmra.mxu0 %v3736
    %v4460 = vpop.f32.mrf.mxu0
    %v4461 = vadd.f32 %v3938, %v4460
    %v4462 = vpop.f32.mrf.mxu0
    %v4463 = vadd.f32 %v3940, %v4462
    %4464 = vmatmul.bf16.gmra.mxu0 %v3738
    %v4465 = vpop.f32.mrf.mxu0
    %v4466 = vadd.f32 %v3943, %v4465
    %v4467 = vpop.f32.mrf.mxu0
    %v4468 = vadd.f32 %v3945, %v4467
    %4469 = vmatmul.bf16.gmra.mxu0 %v3740
    %v4470 = vpop.f32.mrf.mxu0
    %v4471 = vadd.f32 %v3948, %v4470
    %v4472 = vpop.f32.mrf.mxu0
    %v4473 = vadd.f32 %v3950, %v4472
    %4474 = vmatmul.bf16.gmra.mxu0 %v3742
    %v4475 = vpop.f32.mrf.mxu0
    %v4476 = vadd.f32 %v3953, %v4475
    %v4477 = vpop.f32.mrf.mxu0
    %v4478 = vadd.f32 %v3955, %v4477
    %4479 = vmatmul.bf16.gmra.mxu0 %v3744
    %v4480 = vpop.f32.mrf.mxu0
    %v4481 = vadd.f32 %v3958, %v4480
    %v4482 = vpop.f32.mrf.mxu0
    %v4483 = vadd.f32 %v3960, %v4482
    %4484 = vmatmul.bf16.gmra.mxu0 %v3746
    %v4485 = vpop.f32.mrf.mxu0
    %v4486 = vadd.f32 %v3963, %v4485
    %v4487 = vpop.f32.mrf.mxu0
    %v4488 = vadd.f32 %v3965, %v4487
    %4489 = vmatmul.bf16.gmra.mxu0 %v3748
    %v4490 = vpop.f32.mrf.mxu0
    %v4491 = vadd.f32 %v3968, %v4490
    %v4492 = vpop.f32.mrf.mxu0
    %v4493 = vadd.f32 %v3970, %v4492
    %4494 = vdwg.mxu0
    %4495 = vmatpush.bf16.msra.mxu0 %v4355
    %4496 = vmatpush.bf16.msra.mxu0 %v4352
    %4497 = vmatpush.bf16.msra.mxu0 %v4349
    %4498 = vmatpush.bf16.msra.mxu0 %v4346
    %4499 = vmatpush.bf16.msra.mxu0 %v4343
    %4500 = vmatpush.bf16.msra.mxu0 %v4340
    %4501 = vmatpush.bf16.msra.mxu0 %v4337
    %4502 = vmatpush.bf16.msra.mxu0 %v4334
    %4503 = vmatmul.bf16.gmra.mxu0 %v3719
    %v4504 = vpop.f32.mrf.mxu0
    %v4505 = vadd.f32 %v4416, %v4504
    %v4506 = vpop.f32.mrf.mxu0
    %v4507 = vadd.f32 %v4418, %v4506
    %4508 = vmatmul.bf16.gmra.mxu0 %v3721
    %v4509 = vpop.f32.mrf.mxu0
    %v4510 = vadd.f32 %v4421, %v4509
    %v4511 = vpop.f32.mrf.mxu0
    %v4512 = vadd.f32 %v4423, %v4511
    %4513 = vmatmul.bf16.gmra.mxu0 %v3723
    %v4514 = vpop.f32.mrf.mxu0
    %v4515 = vadd.f32 %v4426, %v4514
    %v4516 = vpop.f32.mrf.mxu0
    %v4517 = vadd.f32 %v4428, %v4516
    %4518 = vmatmul.bf16.gmra.mxu0 %v3725
    %v4519 = vpop.f32.mrf.mxu0
    %v4520 = vadd.f32 %v4431, %v4519
    %v4521 = vpop.f32.mrf.mxu0
    %v4522 = vadd.f32 %v4433, %v4521
    %4523 = vmatmul.bf16.gmra.mxu0 %v3727
    %v4524 = vpop.f32.mrf.mxu0
    %v4525 = vadd.f32 %v4436, %v4524
    %v4526 = vpop.f32.mrf.mxu0
    %v4527 = vadd.f32 %v4438, %v4526
    %4528 = vmatmul.bf16.gmra.mxu0 %v3729
    %v4529 = vpop.f32.mrf.mxu0
    %v4530 = vadd.f32 %v4441, %v4529
    %v4531 = vpop.f32.mrf.mxu0
    %v4532 = vadd.f32 %v4443, %v4531
    %4533 = vmatmul.bf16.gmra.mxu0 %v3731
    %v4534 = vpop.f32.mrf.mxu0
    %v4535 = vadd.f32 %v4446, %v4534
    %v4536 = vpop.f32.mrf.mxu0
    %v4537 = vadd.f32 %v4448, %v4536
    %4538 = vmatmul.bf16.gmra.mxu0 %v3733
    %v4539 = vpop.f32.mrf.mxu0
    %v4540 = vadd.f32 %v4451, %v4539
    %v4541 = vpop.f32.mrf.mxu0
    %v4542 = vadd.f32 %v4453, %v4541
    %4543 = vmatmul.bf16.gmra.mxu0 %v3735
    %v4544 = vpop.f32.mrf.mxu0
    %v4545 = vadd.f32 %v4456, %v4544
    %v4546 = vpop.f32.mrf.mxu0
    %v4547 = vadd.f32 %v4458, %v4546
    %4548 = vmatmul.bf16.gmra.mxu0 %v3737
    %v4549 = vpop.f32.mrf.mxu0
    %v4550 = vadd.f32 %v4461, %v4549
    %v4551 = vpop.f32.mrf.mxu0
    %v4552 = vadd.f32 %v4463, %v4551
    %4553 = vmatmul.bf16.gmra.mxu0 %v3739
    %v4554 = vpop.f32.mrf.mxu0
    %v4555 = vadd.f32 %v4466, %v4554
    %v4556 = vpop.f32.mrf.mxu0
    %v4557 = vadd.f32 %v4468, %v4556
    %4558 = vmatmul.bf16.gmra.mxu0 %v3741
    %v4559 = vpop.f32.mrf.mxu0
    %v4560 = vadd.f32 %v4471, %v4559
    %v4561 = vpop.f32.mrf.mxu0
    %v4562 = vadd.f32 %v4473, %v4561
    %4563 = vmatmul.bf16.gmra.mxu0 %v3743
    %v4564 = vpop.f32.mrf.mxu0
    %v4565 = vadd.f32 %v4476, %v4564
    %v4566 = vpop.f32.mrf.mxu0
    %v4567 = vadd.f32 %v4478, %v4566
    %4568 = vmatmul.bf16.gmra.mxu0 %v3745
    %v4569 = vpop.f32.mrf.mxu0
    %v4570 = vadd.f32 %v4481, %v4569
    %v4571 = vpop.f32.mrf.mxu0
    %v4572 = vadd.f32 %v4483, %v4571
    %4573 = vmatmul.bf16.gmra.mxu0 %v3747
    %v4574 = vpop.f32.mrf.mxu0
    %v4575 = vadd.f32 %v4486, %v4574
    %v4576 = vpop.f32.mrf.mxu0
    %v4577 = vadd.f32 %v4488, %v4576
    %4578 = vmatmul.bf16.gmra.mxu0 %v3749
    %v4579 = vpop.f32.mrf.mxu0
    %v4580 = vadd.f32 %v4491, %v4579
    %v4581 = vpop.f32.mrf.mxu0
    %v4582 = vadd.f32 %v4493, %v4581
    %4583 = vdwg.mxu0
    %4584 = vmatpush.bf16.msra.mxu0 %v4332
    %4585 = vmatpush.bf16.msra.mxu0 %v4329
    %4586 = vmatpush.bf16.msra.mxu0 %v4326
    %4587 = vmatpush.bf16.msra.mxu0 %v4323
    %4588 = vmatpush.bf16.msra.mxu0 %v4320
    %4589 = vmatpush.bf16.msra.mxu0 %v4317
    %4590 = vmatpush.bf16.msra.mxu0 %v4314
    %4591 = vmatpush.bf16.msra.mxu0 %v4311
    %4592 = vmatmul.bf16.gmra.mxu0 %v3718
    %v4593 = vpop.f32.mrf.mxu0
    %v4594 = vadd.f32 %v3982, %v4593
    %v4595 = vpop.f32.mrf.mxu0
    %v4596 = vadd.f32 %v3984, %v4595
    %4597 = vmatmul.bf16.gmra.mxu0 %v3720
    %v4598 = vpop.f32.mrf.mxu0
    %v4599 = vadd.f32 %v3987, %v4598
    %v4600 = vpop.f32.mrf.mxu0
    %v4601 = vadd.f32 %v3989, %v4600
    %4602 = vmatmul.bf16.gmra.mxu0 %v3722
    %v4603 = vpop.f32.mrf.mxu0
    %v4604 = vadd.f32 %v3992, %v4603
    %v4605 = vpop.f32.mrf.mxu0
    %v4606 = vadd.f32 %v3994, %v4605
    %4607 = vmatmul.bf16.gmra.mxu0 %v3724
    %v4608 = vpop.f32.mrf.mxu0
    %v4609 = vadd.f32 %v3997, %v4608
    %v4610 = vpop.f32.mrf.mxu0
    %v4611 = vadd.f32 %v3999, %v4610
    %4612 = vmatmul.bf16.gmra.mxu0 %v3726
    %v4613 = vpop.f32.mrf.mxu0
    %v4614 = vadd.f32 %v4002, %v4613
    %v4615 = vpop.f32.mrf.mxu0
    %v4616 = vadd.f32 %v4004, %v4615
    %4617 = vmatmul.bf16.gmra.mxu0 %v3728
    %v4618 = vpop.f32.mrf.mxu0
    %v4619 = vadd.f32 %v4007, %v4618
    %v4620 = vpop.f32.mrf.mxu0
    %v4621 = vadd.f32 %v4009, %v4620
    %4622 = vmatmul.bf16.gmra.mxu0 %v3730
    %v4623 = vpop.f32.mrf.mxu0
    %v4624 = vadd.f32 %v4012, %v4623
    %v4625 = vpop.f32.mrf.mxu0
    %v4626 = vadd.f32 %v4014, %v4625
    %4627 = vmatmul.bf16.gmra.mxu0 %v3732
    %v4628 = vpop.f32.mrf.mxu0
    %v4629 = vadd.f32 %v4017, %v4628
    %v4630 = vpop.f32.mrf.mxu0
    %v4631 = vadd.f32 %v4019, %v4630
    %4632 = vmatmul.bf16.gmra.mxu0 %v3734
    %v4633 = vpop.f32.mrf.mxu0
    %v4634 = vadd.f32 %v4022, %v4633
    %v4635 = vpop.f32.mrf.mxu0
    %v4636 = vadd.f32 %v4024, %v4635
    %4637 = vmatmul.bf16.gmra.mxu0 %v3736
    %v4638 = vpop.f32.mrf.mxu0
    %v4639 = vadd.f32 %v4027, %v4638
    %v4640 = vpop.f32.mrf.mxu0
    %v4641 = vadd.f32 %v4029, %v4640
    %4642 = vmatmul.bf16.gmra.mxu0 %v3738
    %v4643 = vpop.f32.mrf.mxu0
    %v4644 = vadd.f32 %v4032, %v4643
    %v4645 = vpop.f32.mrf.mxu0
    %v4646 = vadd.f32 %v4034, %v4645
    %4647 = vmatmul.bf16.gmra.mxu0 %v3740
    %v4648 = vpop.f32.mrf.mxu0
    %v4649 = vadd.f32 %v4037, %v4648
    %v4650 = vpop.f32.mrf.mxu0
    %v4651 = vadd.f32 %v4039, %v4650
    %4652 = vmatmul.bf16.gmra.mxu0 %v3742
    %v4653 = vpop.f32.mrf.mxu0
    %v4654 = vadd.f32 %v4042, %v4653
    %v4655 = vpop.f32.mrf.mxu0
    %v4656 = vadd.f32 %v4044, %v4655
    %4657 = vmatmul.bf16.gmra.mxu0 %v3744
    %v4658 = vpop.f32.mrf.mxu0
    %v4659 = vadd.f32 %v4047, %v4658
    %v4660 = vpop.f32.mrf.mxu0
    %v4661 = vadd.f32 %v4049, %v4660
    %4662 = vmatmul.bf16.gmra.mxu0 %v3746
    %v4663 = vpop.f32.mrf.mxu0
    %v4664 = vadd.f32 %v4052, %v4663
    %v4665 = vpop.f32.mrf.mxu0
    %v4666 = vadd.f32 %v4054, %v4665
    %4667 = vmatmul.bf16.gmra.mxu0 %v3748
    %v4668 = vpop.f32.mrf.mxu0
    %v4669 = vadd.f32 %v4057, %v4668
    %v4670 = vpop.f32.mrf.mxu0
    %v4671 = vadd.f32 %v4059, %v4670
    %4672 = vdwg.mxu0
    %4673 = vmatpush.bf16.msra.mxu0 %v4356
    %4674 = vmatpush.bf16.msra.mxu0 %v4353
    %4675 = vmatpush.bf16.msra.mxu0 %v4350
    %4676 = vmatpush.bf16.msra.mxu0 %v4347
    %4677 = vmatpush.bf16.msra.mxu0 %v4344
    %4678 = vmatpush.bf16.msra.mxu0 %v4341
    %4679 = vmatpush.bf16.msra.mxu0 %v4338
    %4680 = vmatpush.bf16.msra.mxu0 %v4335
    %4681 = vmatmul.bf16.gmra.mxu0 %v3719
    %v4682 = vpop.f32.mrf.mxu0
    %v4683 = vadd.f32 %v4594, %v4682
    %v4684 = vpop.f32.mrf.mxu0
    %v4685 = vadd.f32 %v4596, %v4684
    %4686 = vmatmul.bf16.gmra.mxu0 %v3721
    %v4687 = vpop.f32.mrf.mxu0
    %v4688 = vadd.f32 %v4599, %v4687
    %v4689 = vpop.f32.mrf.mxu0
    %v4690 = vadd.f32 %v4601, %v4689
    %4691 = vmatmul.bf16.gmra.mxu0 %v3723
    %v4692 = vpop.f32.mrf.mxu0
    %v4693 = vadd.f32 %v4604, %v4692
    %v4694 = vpop.f32.mrf.mxu0
    %v4695 = vadd.f32 %v4606, %v4694
    %4696 = vmatmul.bf16.gmra.mxu0 %v3725
    %v4697 = vpop.f32.mrf.mxu0
    %v4698 = vadd.f32 %v4609, %v4697
    %v4699 = vpop.f32.mrf.mxu0
    %v4700 = vadd.f32 %v4611, %v4699
    %4701 = vmatmul.bf16.gmra.mxu0 %v3727
    %v4702 = vpop.f32.mrf.mxu0
    %v4703 = vadd.f32 %v4614, %v4702
    %v4704 = vpop.f32.mrf.mxu0
    %v4705 = vadd.f32 %v4616, %v4704
    %4706 = vmatmul.bf16.gmra.mxu0 %v3729
    %v4707 = vpop.f32.mrf.mxu0
    %v4708 = vadd.f32 %v4619, %v4707
    %v4709 = vpop.f32.mrf.mxu0
    %v4710 = vadd.f32 %v4621, %v4709
    %4711 = vmatmul.bf16.gmra.mxu0 %v3731
    %v4712 = vpop.f32.mrf.mxu0
    %v4713 = vadd.f32 %v4624, %v4712
    %v4714 = vpop.f32.mrf.mxu0
    %v4715 = vadd.f32 %v4626, %v4714
    %4716 = vmatmul.bf16.gmra.mxu0 %v3733
    %v4717 = vpop.f32.mrf.mxu0
    %v4718 = vadd.f32 %v4629, %v4717
    %v4719 = vpop.f32.mrf.mxu0
    %v4720 = vadd.f32 %v4631, %v4719
    %4721 = vmatmul.bf16.gmra.mxu0 %v3735
    %v4722 = vpop.f32.mrf.mxu0
    %v4723 = vadd.f32 %v4634, %v4722
    %v4724 = vpop.f32.mrf.mxu0
    %v4725 = vadd.f32 %v4636, %v4724
    %4726 = vmatmul.bf16.gmra.mxu0 %v3737
    %v4727 = vpop.f32.mrf.mxu0
    %v4728 = vadd.f32 %v4639, %v4727
    %v4729 = vpop.f32.mrf.mxu0
    %v4730 = vadd.f32 %v4641, %v4729
    %4731 = vmatmul.bf16.gmra.mxu0 %v3739
    %v4732 = vpop.f32.mrf.mxu0
    %v4733 = vadd.f32 %v4644, %v4732
    %v4734 = vpop.f32.mrf.mxu0
    %v4735 = vadd.f32 %v4646, %v4734
    %4736 = vmatmul.bf16.gmra.mxu0 %v3741
    %v4737 = vpop.f32.mrf.mxu0
    %v4738 = vadd.f32 %v4649, %v4737
    %v4739 = vpop.f32.mrf.mxu0
    %v4740 = vadd.f32 %v4651, %v4739
    %4741 = vmatmul.bf16.gmra.mxu0 %v3743
    %v4742 = vpop.f32.mrf.mxu0
    %v4743 = vadd.f32 %v4654, %v4742
    %v4744 = vpop.f32.mrf.mxu0
    %v4745 = vadd.f32 %v4656, %v4744
    %4746 = vmatmul.bf16.gmra.mxu0 %v3745
    %v4747 = vpop.f32.mrf.mxu0
    %v4748 = vadd.f32 %v4659, %v4747
    %v4749 = vpop.f32.mrf.mxu0
    %v4750 = vadd.f32 %v4661, %v4749
    %4751 = vmatmul.bf16.gmra.mxu0 %v3747
    %v4752 = vpop.f32.mrf.mxu0
    %v4753 = vadd.f32 %v4664, %v4752
    %v4754 = vpop.f32.mrf.mxu0
    %v4755 = vadd.f32 %v4666, %v4754
    %4756 = vmatmul.bf16.gmra.mxu0 %v3749
    %v4757 = vpop.f32.mrf.mxu0
    %v4758 = vadd.f32 %v4669, %v4757
    %v4759 = vpop.f32.mrf.mxu0
    %v4760 = vadd.f32 %v4671, %v4759
    %4761 = vdwg.mxu0
    %4762 = vmatpush.bf16.msra.mxu0 %v4333
    %4763 = vmatpush.bf16.msra.mxu0 %v4330
    %4764 = vmatpush.bf16.msra.mxu0 %v4327
    %4765 = vmatpush.bf16.msra.mxu0 %v4324
    %4766 = vmatpush.bf16.msra.mxu0 %v4321
    %4767 = vmatpush.bf16.msra.mxu0 %v4318
    %4768 = vmatpush.bf16.msra.mxu0 %v4315
    %4769 = vmatpush.bf16.msra.mxu0 %v4312
    %4770 = vmatmul.bf16.gmra.mxu0 %v3718
    %v4771 = vpop.f32.mrf.mxu0
    %v4772 = vadd.f32 %v4071, %v4771
    %v4773 = vpop.f32.mrf.mxu0
    %v4774 = vadd.f32 %v4073, %v4773
    %4775 = vmatmul.bf16.gmra.mxu0 %v3720
    %v4776 = vpop.f32.mrf.mxu0
    %v4777 = vadd.f32 %v4076, %v4776
    %v4778 = vpop.f32.mrf.mxu0
    %v4779 = vadd.f32 %v4078, %v4778
    %4780 = vmatmul.bf16.gmra.mxu0 %v3722
    %v4781 = vpop.f32.mrf.mxu0
    %v4782 = vadd.f32 %v4081, %v4781
    %v4783 = vpop.f32.mrf.mxu0
    %v4784 = vadd.f32 %v4083, %v4783
    %4785 = vmatmul.bf16.gmra.mxu0 %v3724
    %v4786 = vpop.f32.mrf.mxu0
    %v4787 = vadd.f32 %v4086, %v4786
    %v4788 = vpop.f32.mrf.mxu0
    %v4789 = vadd.f32 %v4088, %v4788
    %4790 = vmatmul.bf16.gmra.mxu0 %v3726
    %v4791 = vpop.f32.mrf.mxu0
    %v4792 = vadd.f32 %v4091, %v4791
    %v4793 = vpop.f32.mrf.mxu0
    %v4794 = vadd.f32 %v4093, %v4793
    %4795 = vmatmul.bf16.gmra.mxu0 %v3728
    %v4796 = vpop.f32.mrf.mxu0
    %v4797 = vadd.f32 %v4096, %v4796
    %v4798 = vpop.f32.mrf.mxu0
    %v4799 = vadd.f32 %v4098, %v4798
    %4800 = vmatmul.bf16.gmra.mxu0 %v3730
    %v4801 = vpop.f32.mrf.mxu0
    %v4802 = vadd.f32 %v4101, %v4801
    %v4803 = vpop.f32.mrf.mxu0
    %v4804 = vadd.f32 %v4103, %v4803
    %4805 = vmatmul.bf16.gmra.mxu0 %v3732
    %v4806 = vpop.f32.mrf.mxu0
    %v4807 = vadd.f32 %v4106, %v4806
    %v4808 = vpop.f32.mrf.mxu0
    %v4809 = vadd.f32 %v4108, %v4808
    %4810 = vmatmul.bf16.gmra.mxu0 %v3734
    %v4811 = vpop.f32.mrf.mxu0
    %v4812 = vadd.f32 %v4111, %v4811
    %v4813 = vpop.f32.mrf.mxu0
    %v4814 = vadd.f32 %v4113, %v4813
    %4815 = vmatmul.bf16.gmra.mxu0 %v3736
    %v4816 = vpop.f32.mrf.mxu0
    %v4817 = vadd.f32 %v4116, %v4816
    %v4818 = vpop.f32.mrf.mxu0
    %v4819 = vadd.f32 %v4118, %v4818
    %4820 = vmatmul.bf16.gmra.mxu0 %v3738
    %v4821 = vpop.f32.mrf.mxu0
    %v4822 = vadd.f32 %v4121, %v4821
    %v4823 = vpop.f32.mrf.mxu0
    %v4824 = vadd.f32 %v4123, %v4823
    %4825 = vmatmul.bf16.gmra.mxu0 %v3740
    %v4826 = vpop.f32.mrf.mxu0
    %v4827 = vadd.f32 %v4126, %v4826
    %v4828 = vpop.f32.mrf.mxu0
    %v4829 = vadd.f32 %v4128, %v4828
    %4830 = vmatmul.bf16.gmra.mxu0 %v3742
    %v4831 = vpop.f32.mrf.mxu0
    %v4832 = vadd.f32 %v4131, %v4831
    %v4833 = vpop.f32.mrf.mxu0
    %v4834 = vadd.f32 %v4133, %v4833
    %4835 = vmatmul.bf16.gmra.mxu0 %v3744
    %v4836 = vpop.f32.mrf.mxu0
    %v4837 = vadd.f32 %v4136, %v4836
    %v4838 = vpop.f32.mrf.mxu0
    %v4839 = vadd.f32 %v4138, %v4838
    %4840 = vmatmul.bf16.gmra.mxu0 %v3746
    %v4841 = vpop.f32.mrf.mxu0
    %v4842 = vadd.f32 %v4141, %v4841
    %v4843 = vpop.f32.mrf.mxu0
    %v4844 = vadd.f32 %v4143, %v4843
    %4845 = vmatmul.bf16.gmra.mxu0 %v3748
    %v4846 = vpop.f32.mrf.mxu0
    %v4847 = vadd.f32 %v4146, %v4846
    %v4848 = vpop.f32.mrf.mxu0
    %v4849 = vadd.f32 %v4148, %v4848
    %4850 = vdwg.mxu0
    %4851 = vmatpush.bf16.msra.mxu0 %v4357
    %4852 = vmatpush.bf16.msra.mxu0 %v4354
    %4853 = vmatpush.bf16.msra.mxu0 %v4351
    %4854 = vmatpush.bf16.msra.mxu0 %v4348
    %4855 = vmatpush.bf16.msra.mxu0 %v4345
    %4856 = vmatpush.bf16.msra.mxu0 %v4342
    %4857 = vmatpush.bf16.msra.mxu0 %v4339
    %4858 = vmatpush.bf16.msra.mxu0 %v4336
    %4859 = vmatmul.bf16.gmra.mxu0 %v3719
    %v4860 = vpop.f32.mrf.mxu0
    %v4861 = vadd.f32 %v4772, %v4860
    %v4862 = vpop.f32.mrf.mxu0
    %v4863 = vadd.f32 %v4774, %v4862
    %4864 = vmatmul.bf16.gmra.mxu0 %v3721
    %v4865 = vpop.f32.mrf.mxu0
    %v4866 = vadd.f32 %v4777, %v4865
    %v4867 = vpop.f32.mrf.mxu0
    %v4868 = vadd.f32 %v4779, %v4867
    %4869 = vmatmul.bf16.gmra.mxu0 %v3723
    %v4870 = vpop.f32.mrf.mxu0
    %v4871 = vadd.f32 %v4782, %v4870
    %v4872 = vpop.f32.mrf.mxu0
    %v4873 = vadd.f32 %v4784, %v4872
    %4874 = vmatmul.bf16.gmra.mxu0 %v3725
    %v4875 = vpop.f32.mrf.mxu0
    %v4876 = vadd.f32 %v4787, %v4875
    %v4877 = vpop.f32.mrf.mxu0
    %v4878 = vadd.f32 %v4789, %v4877
    %4879 = vmatmul.bf16.gmra.mxu0 %v3727
    %v4880 = vpop.f32.mrf.mxu0
    %v4881 = vadd.f32 %v4792, %v4880
    %v4882 = vpop.f32.mrf.mxu0
    %v4883 = vadd.f32 %v4794, %v4882
    %4884 = vmatmul.bf16.gmra.mxu0 %v3729
    %v4885 = vpop.f32.mrf.mxu0
    %v4886 = vadd.f32 %v4797, %v4885
    %v4887 = vpop.f32.mrf.mxu0
    %v4888 = vadd.f32 %v4799, %v4887
    %4889 = vmatmul.bf16.gmra.mxu0 %v3731
    %v4890 = vpop.f32.mrf.mxu0
    %v4891 = vadd.f32 %v4802, %v4890
    %v4892 = vpop.f32.mrf.mxu0
    %v4893 = vadd.f32 %v4804, %v4892
    %4894 = vmatmul.bf16.gmra.mxu0 %v3733
    %v4895 = vpop.f32.mrf.mxu0
    %v4896 = vadd.f32 %v4807, %v4895
    %v4897 = vpop.f32.mrf.mxu0
    %v4898 = vadd.f32 %v4809, %v4897
    %4899 = vmatmul.bf16.gmra.mxu0 %v3735
    %v4900 = vpop.f32.mrf.mxu0
    %v4901 = vadd.f32 %v4812, %v4900
    %v4902 = vpop.f32.mrf.mxu0
    %v4903 = vadd.f32 %v4814, %v4902
    %4904 = vmatmul.bf16.gmra.mxu0 %v3737
    %v4905 = vpop.f32.mrf.mxu0
    %v4906 = vadd.f32 %v4817, %v4905
    %v4907 = vpop.f32.mrf.mxu0
    %v4908 = vadd.f32 %v4819, %v4907
    %4909 = vmatmul.bf16.gmra.mxu0 %v3739
    %v4910 = vpop.f32.mrf.mxu0
    %v4911 = vadd.f32 %v4822, %v4910
    %v4912 = vpop.f32.mrf.mxu0
    %v4913 = vadd.f32 %v4824, %v4912
    %4914 = vmatmul.bf16.gmra.mxu0 %v3741
    %v4915 = vpop.f32.mrf.mxu0
    %v4916 = vadd.f32 %v4827, %v4915
    %v4917 = vpop.f32.mrf.mxu0
    %v4918 = vadd.f32 %v4829, %v4917
    %4919 = vmatmul.bf16.gmra.mxu0 %v3743
    %v4920 = vpop.f32.mrf.mxu0
    %v4921 = vadd.f32 %v4832, %v4920
    %v4922 = vpop.f32.mrf.mxu0
    %v4923 = vadd.f32 %v4834, %v4922
    %4924 = vmatmul.bf16.gmra.mxu0 %v3745
    %v4925 = vpop.f32.mrf.mxu0
    %v4926 = vadd.f32 %v4837, %v4925
    %v4927 = vpop.f32.mrf.mxu0
    %v4928 = vadd.f32 %v4839, %v4927
    %4929 = vmatmul.bf16.gmra.mxu0 %v3747
    %v4930 = vpop.f32.mrf.mxu0
    %v4931 = vadd.f32 %v4842, %v4930
    %v4932 = vpop.f32.mrf.mxu0
    %v4933 = vadd.f32 %v4844, %v4932
    %4934 = vmatmul.bf16.gmra.mxu0 %v3749
    %v4935 = vpop.f32.mrf.mxu0
    %v4936 = vadd.f32 %v4847, %v4935
    %v4937 = vpop.f32.mrf.mxu0
    %v4938 = vadd.f32 %v4849, %v4937
    %4939 = vdwg.mxu0
    %v4940 = vld [vmem:[%s6] sm:$0x7]
    %v4942 = vperm.slane %v4940, 0
    %v4943 = vperm.slane %v4940, 1
    %v4944 = vperm.slane %v4940, 2
    %v4948 = vadd.f32 %v4505, %v4942
    %v4949 = vadd.f32 %v4683, %v4943
    %v4950 = vadd.f32 %v4861, %v4944
    %v4951 = vadd.f32 %v4507, %v4942
    %v4952 = vadd.f32 %v4685, %v4943
    %v4953 = vadd.f32 %v4863, %v4944
    %v4954 = vadd.f32 %v4510, %v4942
    %v4955 = vadd.f32 %v4688, %v4943
    %v4956 = vadd.f32 %v4866, %v4944
    %v4957 = vadd.f32 %v4512, %v4942
    %v4958 = vadd.f32 %v4690, %v4943
    %v4959 = vadd.f32 %v4868, %v4944
    %v4960 = vadd.f32 %v4515, %v4942
    %v4961 = vadd.f32 %v4693, %v4943
    %v4962 = vadd.f32 %v4871, %v4944
    %v4963 = vadd.f32 %v4517, %v4942
    %v4964 = vadd.f32 %v4695, %v4943
    %v4965 = vadd.f32 %v4873, %v4944
    %v4966 = vadd.f32 %v4520, %v4942
    %v4967 = vadd.f32 %v4698, %v4943
    %v4968 = vadd.f32 %v4876, %v4944
    %v4969 = vadd.f32 %v4522, %v4942
    %v4970 = vadd.f32 %v4700, %v4943
    %v4971 = vadd.f32 %v4878, %v4944
    %v4972 = vadd.f32 %v4525, %v4942
    %v4973 = vadd.f32 %v4703, %v4943
    %v4974 = vadd.f32 %v4881, %v4944
    %v4975 = vadd.f32 %v4527, %v4942
    %v4976 = vadd.f32 %v4705, %v4943
    %v4977 = vadd.f32 %v4883, %v4944
    %v4978 = vadd.f32 %v4530, %v4942
    %v4979 = vadd.f32 %v4708, %v4943
    %v4980 = vadd.f32 %v4886, %v4944
    %v4981 = vadd.f32 %v4532, %v4942
    %v4982 = vadd.f32 %v4710, %v4943
    %v4983 = vadd.f32 %v4888, %v4944
    %v4984 = vadd.f32 %v4535, %v4942
    %v4985 = vadd.f32 %v4713, %v4943
    %v4986 = vadd.f32 %v4891, %v4944
    %v4987 = vadd.f32 %v4537, %v4942
    %v4988 = vadd.f32 %v4715, %v4943
    %v4989 = vadd.f32 %v4893, %v4944
    %v4990 = vadd.f32 %v4540, %v4942
    %v4991 = vadd.f32 %v4718, %v4943
    %v4992 = vadd.f32 %v4896, %v4944
    %v4993 = vadd.f32 %v4542, %v4942
    %v4994 = vadd.f32 %v4720, %v4943
    %v4995 = vadd.f32 %v4898, %v4944
    %v4996 = vadd.f32 %v4545, %v4942
    %v4997 = vadd.f32 %v4723, %v4943
    %v4998 = vadd.f32 %v4901, %v4944
    %v4999 = vadd.f32 %v4547, %v4942
    %v5000 = vadd.f32 %v4725, %v4943
    %v5001 = vadd.f32 %v4903, %v4944
    %v5002 = vadd.f32 %v4550, %v4942
    %v5003 = vadd.f32 %v4728, %v4943
    %v5004 = vadd.f32 %v4906, %v4944
    %v5005 = vadd.f32 %v4552, %v4942
    %v5006 = vadd.f32 %v4730, %v4943
    %v5007 = vadd.f32 %v4908, %v4944
    %v5008 = vadd.f32 %v4555, %v4942
    %v5009 = vadd.f32 %v4733, %v4943
    %v5010 = vadd.f32 %v4911, %v4944
    %v5011 = vadd.f32 %v4557, %v4942
    %v5012 = vadd.f32 %v4735, %v4943
    %v5013 = vadd.f32 %v4913, %v4944
    %v5014 = vadd.f32 %v4560, %v4942
    %v5015 = vadd.f32 %v4738, %v4943
    %v5016 = vadd.f32 %v4916, %v4944
    %v5017 = vadd.f32 %v4562, %v4942
    %v5018 = vadd.f32 %v4740, %v4943
    %v5019 = vadd.f32 %v4918, %v4944
    %v5020 = vadd.f32 %v4565, %v4942
    %v5021 = vadd.f32 %v4743, %v4943
    %v5022 = vadd.f32 %v4921, %v4944
    %v5023 = vadd.f32 %v4567, %v4942
    %v5024 = vadd.f32 %v4745, %v4943
    %v5025 = vadd.f32 %v4923, %v4944
    %v5026 = vadd.f32 %v4570, %v4942
    %v5027 = vadd.f32 %v4748, %v4943
    %v5028 = vadd.f32 %v4926, %v4944
    %v5029 = vadd.f32 %v4572, %v4942
    %v5030 = vadd.f32 %v4750, %v4943
    %v5031 = vadd.f32 %v4928, %v4944
    %v5032 = vadd.f32 %v4575, %v4942
    %v5033 = vadd.f32 %v4753, %v4943
    %v5034 = vadd.f32 %v4931, %v4944
    %v5035 = vadd.f32 %v4577, %v4942
    %v5036 = vadd.f32 %v4755, %v4943
    %v5037 = vadd.f32 %v4933, %v4944
    %v5038 = vadd.f32 %v4580, %v4942
    %v5039 = vadd.f32 %v4758, %v4943
    %v5040 = vadd.f32 %v4936, %v4944
    %v5041 = vadd.f32 %v4582, %v4942
    %v5042 = vadd.f32 %v4760, %v4943
    %v5043 = vadd.f32 %v4938, %v4944
    %v5044 = vmax.f32 %v4948, 0.0
    %v5045 = vmax.f32 %v4949, 0.0
    %v5046 = vmax.f32 %v4950, 0.0
    %v5047 = vmax.f32 %v4951, 0.0
    %v5048 = vmax.f32 %v4952, 0.0
    %v5049 = vmax.f32 %v4953, 0.0
    %v5050 = vmax.f32 %v4954, 0.0
    %v5051 = vmax.f32 %v4955, 0.0
    %v5052 = vmax.f32 %v4956, 0.0
    %v5053 = vmax.f32 %v4957, 0.0
    %v5054 = vmax.f32 %v4958, 0.0
    %v5055 = vmax.f32 %v4959, 0.0
    %v5056 = vmax.f32 %v4960, 0.0
    %v5057 = vmax.f32 %v4961, 0.0
    %v5058 = vmax.f32 %v4962, 0.0
    %v5059 = vmax.f32 %v4963, 0.0
    %v5060 = vmax.f32 %v4964, 0.0
    %v5061 = vmax.f32 %v4965, 0.0
    %v5062 = vmax.f32 %v4966, 0.0
    %v5063 = vmax.f32 %v4967, 0.0
    %v5064 = vmax.f32 %v4968, 0.0
    %v5065 = vmax.f32 %v4969, 0.0
    %v5066 = vmax.f32 %v4970, 0.0
    %v5067 = vmax.f32 %v4971, 0.0
    %v5068 = vmax.f32 %v4972, 0.0
    %v5069 = vmax.f32 %v4973, 0.0
    %v5070 = vmax.f32 %v4974, 0.0
    %v5071 = vmax.f32 %v4975, 0.0
    %v5072 = vmax.f32 %v4976, 0.0
    %v5073 = vmax.f32 %v4977, 0.0
    %v5074 = vmax.f32 %v4978, 0.0
    %v5075 = vmax.f32 %v4979, 0.0
    %v5076 = vmax.f32 %v4980, 0.0
    %v5077 = vmax.f32 %v4981, 0.0
    %v5078 = vmax.f32 %v4982, 0.0
    %v5079 = vmax.f32 %v4983, 0.0
    %v5080 = vmax.f32 %v4984, 0.0
    %v5081 = vmax.f32 %v4985, 0.0
    %v5082 = vmax.f32 %v4986, 0.0
    %v5083 = vmax.f32 %v4987, 0.0
    %v5084 = vmax.f32 %v4988, 0.0
    %v5085 = vmax.f32 %v4989, 0.0
    %v5086 = vmax.f32 %v4990, 0.0
    %v5087 = vmax.f32 %v4991, 0.0
    %v5088 = vmax.f32 %v4992, 0.0
    %v5089 = vmax.f32 %v4993, 0.0
    %v5090 = vmax.f32 %v4994, 0.0
    %v5091 = vmax.f32 %v4995, 0.0
    %v5092 = vmax.f32 %v4996, 0.0
    %v5093 = vmax.f32 %v4997, 0.0
    %v5094 = vmax.f32 %v4998, 0.0
    %v5095 = vmax.f32 %v4999, 0.0
    %v5096 = vmax.f32 %v5000, 0.0
    %v5097 = vmax.f32 %v5001, 0.0
    %v5098 = vmax.f32 %v5002, 0.0
    %v5099 = vmax.f32 %v5003, 0.0
    %v5100 = vmax.f32 %v5004, 0.0
    %v5101 = vmax.f32 %v5005, 0.0
    %v5102 = vmax.f32 %v5006, 0.0
    %v5103 = vmax.f32 %v5007, 0.0
    %v5104 = vmax.f32 %v5008, 0.0
    %v5105 = vmax.f32 %v5009, 0.0
    %v5106 = vmax.f32 %v5010, 0.0
    %v5107 = vmax.f32 %v5011, 0.0
    %v5108 = vmax.f32 %v5012, 0.0
    %v5109 = vmax.f32 %v5013, 0.0
    %v5110 = vmax.f32 %v5014, 0.0
    %v5111 = vmax.f32 %v5015, 0.0
    %v5112 = vmax.f32 %v5016, 0.0
    %v5113 = vmax.f32 %v5017, 0.0
    %v5114 = vmax.f32 %v5018, 0.0
    %v5115 = vmax.f32 %v5019, 0.0
    %v5116 = vmax.f32 %v5020, 0.0
    %v5117 = vmax.f32 %v5021, 0.0
    %v5118 = vmax.f32 %v5022, 0.0
    %v5119 = vmax.f32 %v5023, 0.0
    %v5120 = vmax.f32 %v5024, 0.0
    %v5121 = vmax.f32 %v5025, 0.0
    %v5122 = vmax.f32 %v5026, 0.0
    %v5123 = vmax.f32 %v5027, 0.0
    %v5124 = vmax.f32 %v5028, 0.0
    %v5125 = vmax.f32 %v5029, 0.0
    %v5126 = vmax.f32 %v5030, 0.0
    %v5127 = vmax.f32 %v5031, 0.0
    %v5128 = vmax.f32 %v5032, 0.0
    %v5129 = vmax.f32 %v5033, 0.0
    %v5130 = vmax.f32 %v5034, 0.0
    %v5131 = vmax.f32 %v5035, 0.0
    %v5132 = vmax.f32 %v5036, 0.0
    %v5133 = vmax.f32 %v5037, 0.0
    %v5134 = vmax.f32 %v5038, 0.0
    %v5135 = vmax.f32 %v5039, 0.0
    %v5136 = vmax.f32 %v5040, 0.0
    %v5137 = vmax.f32 %v5041, 0.0
    %v5138 = vmax.f32 %v5042, 0.0
    %v5139 = vmax.f32 %v5043, 0.0
    %v5140 = vpack.c.bf16 %v5047, %v5044
    %v5141 = vpack.c.bf16 %v5048, %v5045
    %v5142 = vpack.c.bf16 %v5049, %v5046
    %v5143 = vpack.c.bf16 %v5053, %v5050
    %v5144 = vpack.c.bf16 %v5054, %v5051
    %v5145 = vpack.c.bf16 %v5055, %v5052
    %v5146 = vpack.c.bf16 %v5059, %v5056
    %v5147 = vpack.c.bf16 %v5060, %v5057
    %v5148 = vpack.c.bf16 %v5061, %v5058
    %v5149 = vpack.c.bf16 %v5065, %v5062
    %v5150 = vpack.c.bf16 %v5066, %v5063
    %v5151 = vpack.c.bf16 %v5067, %v5064
    %v5152 = vpack.c.bf16 %v5071, %v5068
    %v5153 = vpack.c.bf16 %v5072, %v5069
    %v5154 = vpack.c.bf16 %v5073, %v5070
    %v5155 = vpack.c.bf16 %v5077, %v5074
    %v5156 = vpack.c.bf16 %v5078, %v5075
    %v5157 = vpack.c.bf16 %v5079, %v5076
    %v5158 = vpack.c.bf16 %v5083, %v5080
    %v5159 = vpack.c.bf16 %v5084, %v5081
    %v5160 = vpack.c.bf16 %v5085, %v5082
    %v5161 = vpack.c.bf16 %v5089, %v5086
    %v5162 = vpack.c.bf16 %v5090, %v5087
    %v5163 = vpack.c.bf16 %v5091, %v5088
    %v5164 = vpack.c.bf16 %v5095, %v5092
    %v5165 = vpack.c.bf16 %v5096, %v5093
    %v5166 = vpack.c.bf16 %v5097, %v5094
    %v5167 = vpack.c.bf16 %v5101, %v5098
    %v5168 = vpack.c.bf16 %v5102, %v5099
    %v5169 = vpack.c.bf16 %v5103, %v5100
    %v5170 = vpack.c.bf16 %v5107, %v5104
    %v5171 = vpack.c.bf16 %v5108, %v5105
    %v5172 = vpack.c.bf16 %v5109, %v5106
    %v5173 = vpack.c.bf16 %v5113, %v5110
    %v5174 = vpack.c.bf16 %v5114, %v5111
    %v5175 = vpack.c.bf16 %v5115, %v5112
    %v5176 = vpack.c.bf16 %v5119, %v5116
    %v5177 = vpack.c.bf16 %v5120, %v5117
    %v5178 = vpack.c.bf16 %v5121, %v5118
    %v5179 = vpack.c.bf16 %v5125, %v5122
    %v5180 = vpack.c.bf16 %v5126, %v5123
    %v5181 = vpack.c.bf16 %v5127, %v5124
    %v5182 = vpack.c.bf16 %v5131, %v5128
    %v5183 = vpack.c.bf16 %v5132, %v5129
    %v5184 = vpack.c.bf16 %v5133, %v5130
    %v5185 = vpack.c.bf16 %v5137, %v5134
    %v5186 = vpack.c.bf16 %v5138, %v5135
    %v5187 = vpack.c.bf16 %v5139, %v5136
    %v5188 = vld [vmem:[%s7] sm:$0xff]
    %v5189 = vld [vmem:[%s7 + $0x8] sm:$0xf]
    %v5190 = vld [vmem:[%s7 + $0xc] sm:$0xff]
    %v5191 = vld [vmem:[%s7 + $0x14] sm:$0xf]
    %v5192 = vld [vmem:[%s7 + $0x18] sm:$0xff]
    %v5193 = vld [vmem:[%s7 + $0x20] sm:$0xf]
    %v5194 = vld [vmem:[%s7 + $0x24] sm:$0xff]
    %v5195 = vld [vmem:[%s7 + $0x2c] sm:$0xf]
    %v5196 = vld [vmem:[%s7 + $0x30] sm:$0xff]
    %v5197 = vld [vmem:[%s7 + $0x38] sm:$0xf]
    %v5198 = vld [vmem:[%s7 + $0x3c] sm:$0xff]
    %v5199 = vld [vmem:[%s7 + $0x44] sm:$0xf]
    %v5200 = vld [vmem:[%s7 + $0x48] sm:$0xff]
    %v5201 = vld [vmem:[%s7 + $0x50] sm:$0xf]
    %v5202 = vld [vmem:[%s7 + $0x54] sm:$0xff]
    %v5203 = vld [vmem:[%s7 + $0x5c] sm:$0xf]
    %v5204 = vld [vmem:[%s7 + $0x60] sm:$0xff]
    %v5205 = vld [vmem:[%s7 + $0x68] sm:$0xf]
    %v5206 = vld [vmem:[%s7 + $0x6c] sm:$0xff]
    %v5207 = vld [vmem:[%s7 + $0x74] sm:$0xf]
    %v5208 = vld [vmem:[%s7 + $0x78] sm:$0xff]
    %v5209 = vld [vmem:[%s7 + $0x80] sm:$0xf]
    %v5210 = vld [vmem:[%s7 + $0x84] sm:$0xff]
    %v5211 = vld [vmem:[%s7 + $0x8c] sm:$0xf]
    %v5212 = vld [vmem:[%s7 + $0x90] sm:$0xff]
    %v5213 = vld [vmem:[%s7 + $0x98] sm:$0xf]
    %v5214 = vld [vmem:[%s7 + $0x9c] sm:$0xff]
    %v5215 = vld [vmem:[%s7 + $0xa4] sm:$0xf]
    %v5216 = vld [vmem:[%s7 + $0xa8] sm:$0xff]
    %v5217 = vld [vmem:[%s7 + $0xb0] sm:$0xf]
    %v5218 = vld [vmem:[%s7 + $0xb4] sm:$0xff]
    %v5219 = vld [vmem:[%s7 + $0xbc] sm:$0xf]
    %v5220 = vld [vmem:[%s7 + $0xc0] sm:$0xff]
    %v5221 = vld [vmem:[%s7 + $0xc8] sm:$0xf]
    %v5222 = vld [vmem:[%s7 + $0xcc] sm:$0xff]
    %v5223 = vld [vmem:[%s7 + $0xd4] sm:$0xf]
    %v5224 = vld [vmem:[%s7 + $0xd8] sm:$0xff]
    %v5225 = vld [vmem:[%s7 + $0xe0] sm:$0xf]
    %v5226 = vld [vmem:[%s7 + $0xe4] sm:$0xff]
    %v5227 = vld [vmem:[%s7 + $0xec] sm:$0xf]
    %v5228 = vld [vmem:[%s7 + $0xf0] sm:$0xff]
    %v5229 = vld [vmem:[%s7 + $0xf8] sm:$0xf]
    %v5230 = vld [vmem:[%s7 + $0xfc] sm:$0xff]
    %v5231 = vld [vmem:[%s7 + $0x104] sm:$0xf]
    %v5232 = vld [vmem:[%s7 + $0x108] sm:$0xff]
    %v5233 = vld [vmem:[%s7 + $0x110] sm:$0xf]
    %v5234 = vld [vmem:[%s7 + $0x114] sm:$0xff]
    %v5235 = vld [vmem:[%s7 + $0x11c] sm:$0xf]
    %v5236 = vld [vmem:[%s7 + $0x120] sm:$0xff]
    %v5237 = vld [vmem:[%s7 + $0x128] sm:$0xf]
    %v5238 = vld [vmem:[%s7 + $0x12c] sm:$0xff]
    %v5239 = vld [vmem:[%s7 + $0x134] sm:$0xf]
    %v5240 = vld [vmem:[%s7 + $0x138] sm:$0xff]
    %v5241 = vld [vmem:[%s7 + $0x140] sm:$0xf]
    %v5242 = vld [vmem:[%s7 + $0x144] sm:$0xff]
    %v5243 = vld [vmem:[%s7 + $0x14c] sm:$0xf]
    %v5244 = vld [vmem:[%s7 + $0x150] sm:$0xff]
    %v5245 = vld [vmem:[%s7 + $0x158] sm:$0xf]
    %v5246 = vld [vmem:[%s7 + $0x15c] sm:$0xff]
    %v5247 = vld [vmem:[%s7 + $0x164] sm:$0xf]
    %v5248 = vld [vmem:[%s7 + $0x168] sm:$0xff]
    %v5249 = vld [vmem:[%s7 + $0x170] sm:$0xf]
    %v5250 = vld [vmem:[%s7 + $0x174] sm:$0xff]
    %v5251 = vld [vmem:[%s7 + $0x17c] sm:$0xf]
    %v5252 = vld [vmem:[%s7 + $0x180] sm:$0xff]
    %v5253 = vld [vmem:[%s7 + $0x188] sm:$0xf]
    %v5254 = vld [vmem:[%s7 + $0x18c] sm:$0xff]
    %v5255 = vld [vmem:[%s7 + $0x194] sm:$0xf]
    %v5256 = vld [vmem:[%s8] sm:$0x7]
    %v5258 = vperm.slane %v5256, 0
    %v5259 = vperm.slane %v5256, 1
    %v5260 = vperm.slane %v5256, 2
    %v5332 = vunpack.c.l.b16 %v5188
    %v5333 = vunpack.c.h.b16 %v5188
    %v5334 = vunpack.c.l.b16 %v5189
    %v5335 = vunpack.c.l.b16 %v5190
    %v5336 = vunpack.c.h.b16 %v5190
    %v5337 = vunpack.c.l.b16 %v5191
    %v5338 = vunpack.c.l.b16 %v5192
    %v5339 = vunpack.c.h.b16 %v5192
    %v5340 = vunpack.c.l.b16 %v5193
    %v5341 = vunpack.c.l.b16 %v5194
    %v5342 = vunpack.c.h.b16 %v5194
    %v5343 = vunpack.c.l.b16 %v5195
    %v5344 = vunpack.c.l.b16 %v5196
    %v5345 = vunpack.c.h.b16 %v5196
    %v5346 = vunpack.c.l.b16 %v5197
    %v5347 = vunpack.c.l.b16 %v5198
    %v5348 = vunpack.c.h.b16 %v5198
    %v5349 = vunpack.c.l.b16 %v5199
    %v5350 = vunpack.c.l.b16 %v5200
    %v5351 = vunpack.c.h.b16 %v5200
    %v5352 = vunpack.c.l.b16 %v5201
    %v5353 = vunpack.c.l.b16 %v5202
    %v5354 = vunpack.c.h.b16 %v5202
    %v5355 = vunpack.c.l.b16 %v5203
    %v5356 = vunpack.c.l.b16 %v5204
    %v5357 = vunpack.c.h.b16 %v5204
    %v5358 = vunpack.c.l.b16 %v5205
    %v5359 = vunpack.c.l.b16 %v5206
    %v5360 = vunpack.c.h.b16 %v5206
    %v5361 = vunpack.c.l.b16 %v5207
    %v5362 = vunpack.c.l.b16 %v5208
    %v5363 = vunpack.c.h.b16 %v5208
    %v5364 = vunpack.c.l.b16 %v5209
    %v5365 = vunpack.c.l.b16 %v5210
    %v5366 = vunpack.c.h.b16 %v5210
    %v5367 = vunpack.c.l.b16 %v5211
    %v5368 = vunpack.c.l.b16 %v5212
    %v5369 = vunpack.c.h.b16 %v5212
    %v5370 = vunpack.c.l.b16 %v5213
    %v5371 = vunpack.c.l.b16 %v5214
    %v5372 = vunpack.c.h.b16 %v5214
    %v5373 = vunpack.c.l.b16 %v5215
    %v5374 = vunpack.c.l.b16 %v5216
    %v5375 = vunpack.c.h.b16 %v5216
    %v5376 = vunpack.c.l.b16 %v5217
    %v5377 = vunpack.c.l.b16 %v5218
    %v5378 = vunpack.c.h.b16 %v5218
    %v5379 = vunpack.c.l.b16 %v5219
    %v5380 = vunpack.c.l.b16 %v5220
    %v5381 = vunpack.c.h.b16 %v5220
    %v5382 = vunpack.c.l.b16 %v5221
    %v5383 = vunpack.c.l.b16 %v5222
    %v5384 = vunpack.c.h.b16 %v5222
    %v5385 = vunpack.c.l.b16 %v5223
    %v5386 = vunpack.c.l.b16 %v5224
    %v5387 = vunpack.c.h.b16 %v5224
    %v5388 = vunpack.c.l.b16 %v5225
    %v5389 = vunpack.c.l.b16 %v5226
    %v5390 = vunpack.c.h.b16 %v5226
    %v5391 = vunpack.c.l.b16 %v5227
    %v5392 = vunpack.c.l.b16 %v5228
    %v5393 = vunpack.c.h.b16 %v5228
    %v5394 = vunpack.c.l.b16 %v5229
    %v5395 = vunpack.c.l.b16 %v5230
    %v5396 = vunpack.c.h.b16 %v5230
    %v5397 = vunpack.c.l.b16 %v5231
    %v5398 = vunpack.c.l.b16 %v5232
    %v5399 = vunpack.c.h.b16 %v5232
    %v5400 = vunpack.c.l.b16 %v5233
    %v5401 = vunpack.c.l.b16 %v5234
    %v5402 = vunpack.c.h.b16 %v5234
    %v5403 = vunpack.c.l.b16 %v5235
    %v5404 = vunpack.c.l.b16 %v5236
    %v5405 = vunpack.c.h.b16 %v5236
    %v5406 = vunpack.c.l.b16 %v5237
    %v5407 = vunpack.c.l.b16 %v5238
    %v5408 = vunpack.c.h.b16 %v5238
    %v5409 = vunpack.c.l.b16 %v5239
    %v5410 = vunpack.c.l.b16 %v5240
    %v5411 = vunpack.c.h.b16 %v5240
    %v5412 = vunpack.c.l.b16 %v5241
    %v5413 = vunpack.c.l.b16 %v5242
    %v5414 = vunpack.c.h.b16 %v5242
    %v5415 = vunpack.c.l.b16 %v5243
    %v5416 = vunpack.c.l.b16 %v5244
    %v5417 = vunpack.c.h.b16 %v5244
    %v5418 = vunpack.c.l.b16 %v5245
    %v5419 = vunpack.c.l.b16 %v5246
    %v5420 = vunpack.c.h.b16 %v5246
    %v5421 = vunpack.c.l.b16 %v5247
    %v5422 = vunpack.c.l.b16 %v5248
    %v5423 = vunpack.c.h.b16 %v5248
    %v5424 = vunpack.c.l.b16 %v5249
    %v5425 = vunpack.c.l.b16 %v5250
    %v5426 = vunpack.c.h.b16 %v5250
    %v5427 = vunpack.c.l.b16 %v5251
    %v5428 = vunpack.c.l.b16 %v5252
    %v5429 = vunpack.c.h.b16 %v5252
    %v5430 = vunpack.c.l.b16 %v5253
    %v5431 = vunpack.c.l.b16 %v5254
    %v5432 = vunpack.c.h.b16 %v5254
    %v5433 = vunpack.c.l.b16 %v5255
    %v5434 = vpack.c.b16 %v5335, %v5332
    %v5435 = vpack.c.b16 %v5336, %v5333
    %v5436 = vpack.c.b16 %v5337, %v5334
    %v5437 = vpack.c.b16 %v5341, %v5338
    %v5438 = vpack.c.b16 %v5342, %v5339
    %v5439 = vpack.c.b16 %v5343, %v5340
    %v5440 = vpack.c.b16 %v5347, %v5344
    %v5441 = vpack.c.b16 %v5348, %v5345
    %v5442 = vpack.c.b16 %v5349, %v5346
    %v5443 = vpack.c.b16 %v5353, %v5350
    %v5444 = vpack.c.b16 %v5354, %v5351
    %v5445 = vpack.c.b16 %v5355, %v5352
    %v5446 = vpack.c.b16 %v5359, %v5356
    %v5447 = vpack.c.b16 %v5360, %v5357
    %v5448 = vpack.c.b16 %v5361, %v5358
    %v5449 = vpack.c.b16 %v5365, %v5362
    %v5450 = vpack.c.b16 %v5366, %v5363
    %v5451 = vpack.c.b16 %v5367, %v5364
    %v5452 = vpack.c.b16 %v5371, %v5368
    %v5453 = vpack.c.b16 %v5372, %v5369
    %v5454 = vpack.c.b16 %v5373, %v5370
    %v5455 = vpack.c.b16 %v5377, %v5374
    %v5456 = vpack.c.b16 %v5378, %v5375
    %v5457 = vpack.c.b16 %v5379, %v5376
    %v5458 = vpack.c.b16 %v5383, %v5380
    %v5459 = vpack.c.b16 %v5384, %v5381
    %v5460 = vpack.c.b16 %v5385, %v5382
    %v5461 = vpack.c.b16 %v5389, %v5386
    %v5462 = vpack.c.b16 %v5390, %v5387
    %v5463 = vpack.c.b16 %v5391, %v5388
    %v5464 = vpack.c.b16 %v5395, %v5392
    %v5465 = vpack.c.b16 %v5396, %v5393
    %v5466 = vpack.c.b16 %v5397, %v5394
    %v5467 = vpack.c.b16 %v5401, %v5398
    %v5468 = vpack.c.b16 %v5402, %v5399
    %v5469 = vpack.c.b16 %v5403, %v5400
    %v5470 = vpack.c.b16 %v5407, %v5404
    %v5471 = vpack.c.b16 %v5408, %v5405
    %v5472 = vpack.c.b16 %v5409, %v5406
    %v5473 = vpack.c.b16 %v5413, %v5410
    %v5474 = vpack.c.b16 %v5414, %v5411
    %v5475 = vpack.c.b16 %v5415, %v5412
    %v5476 = vpack.c.b16 %v5419, %v5416
    %v5477 = vpack.c.b16 %v5420, %v5417
    %v5478 = vpack.c.b16 %v5421, %v5418
    %v5479 = vpack.c.b16 %v5425, %v5422
    %v5480 = vpack.c.b16 %v5426, %v5423
    %v5481 = vpack.c.b16 %v5427, %v5424
    %v5482 = vpack.c.b16 %v5431, %v5428
    %v5483 = vpack.c.b16 %v5432, %v5429
    %v5484 = vpack.c.b16 %v5433, %v5430
    %v5537 = vsel %vm3834, %v5142, 0
    %v5540 = vsel %vm3834, %v5145, 0
    %v5543 = vsel %vm3834, %v5148, 0
    %v5546 = vsel %vm3834, %v5151, 0
    %v5549 = vsel %vm3834, %v5154, 0
    %v5552 = vsel %vm3834, %v5157, 0
    %v5555 = vsel %vm3834, %v5160, 0
    %v5558 = vsel %vm3834, %v5163, 0
    %v5561 = vsel %vm3834, %v5166, 0
    %v5564 = vsel %vm3834, %v5169, 0
    %v5567 = vsel %vm3834, %v5172, 0
    %v5570 = vsel %vm3834, %v5175, 0
    %v5573 = vsel %vm3834, %v5178, 0
    %v5576 = vsel %vm3834, %v5181, 0
    %v5579 = vsel %vm3834, %v5184, 0
    %v5582 = vsel %vm3834, %v5187, 0
    %5584 = vmatpush.bf16.msra.mxu0 %v5455
    %5585 = vmatpush.bf16.msra.mxu0 %v5452
    %5586 = vmatpush.bf16.msra.mxu0 %v5449
    %5587 = vmatpush.bf16.msra.mxu0 %v5446
    %5588 = vmatpush.bf16.msra.mxu0 %v5443
    %5589 = vmatpush.bf16.msra.mxu0 %v5440
    %5590 = vmatpush.bf16.msra.mxu0 %v5437
    %5591 = vmatpush.bf16.msra.mxu0 %v5434
    %5592 = vmatmul.bf16.gmra.mxu0 %v5140
    %v5593 = vpop.f32.mrf.mxu0
    %v5594 = vadd.f32 %v5258, %v5593
    %v5595 = vpop.f32.mrf.mxu0
    %v5596 = vadd.f32 %v5258, %v5595
    %5597 = vmatmul.bf16.gmra.mxu0 %v5143
    %v5598 = vpop.f32.mrf.mxu0
    %v5599 = vadd.f32 %v5258, %v5598
    %v5600 = vpop.f32.mrf.mxu0
    %v5601 = vadd.f32 %v5258, %v5600
    %5602 = vmatmul.bf16.gmra.mxu0 %v5146
    %v5603 = vpop.f32.mrf.mxu0
    %v5604 = vadd.f32 %v5258, %v5603
    %v5605 = vpop.f32.mrf.mxu0
    %v5606 = vadd.f32 %v5258, %v5605
    %5607 = vmatmul.bf16.gmra.mxu0 %v5149
    %v5608 = vpop.f32.mrf.mxu0
    %v5609 = vadd.f32 %v5258, %v5608
    %v5610 = vpop.f32.mrf.mxu0
    %v5611 = vadd.f32 %v5258, %v5610
    %5612 = vmatmul.bf16.gmra.mxu0 %v5152
    %v5613 = vpop.f32.mrf.mxu0
    %v5614 = vadd.f32 %v5258, %v5613
    %v5615 = vpop.f32.mrf.mxu0
    %v5616 = vadd.f32 %v5258, %v5615
    %5617 = vmatmul.bf16.gmra.mxu0 %v5155
    %v5618 = vpop.f32.mrf.mxu0
    %v5619 = vadd.f32 %v5258, %v5618
    %v5620 = vpop.f32.mrf.mxu0
    %v5621 = vadd.f32 %v5258, %v5620
    %5622 = vmatmul.bf16.gmra.mxu0 %v5158
    %v5623 = vpop.f32.mrf.mxu0
    %v5624 = vadd.f32 %v5258, %v5623
    %v5625 = vpop.f32.mrf.mxu0
    %v5626 = vadd.f32 %v5258, %v5625
    %5627 = vmatmul.bf16.gmra.mxu0 %v5161
    %v5628 = vpop.f32.mrf.mxu0
    %v5629 = vadd.f32 %v5258, %v5628
    %v5630 = vpop.f32.mrf.mxu0
    %v5631 = vadd.f32 %v5258, %v5630
    %5632 = vmatmul.bf16.gmra.mxu0 %v5164
    %v5633 = vpop.f32.mrf.mxu0
    %v5634 = vadd.f32 %v5258, %v5633
    %v5635 = vpop.f32.mrf.mxu0
    %v5636 = vadd.f32 %v5258, %v5635
    %5637 = vmatmul.bf16.gmra.mxu0 %v5167
    %v5638 = vpop.f32.mrf.mxu0
    %v5639 = vadd.f32 %v5258, %v5638
    %v5640 = vpop.f32.mrf.mxu0
    %v5641 = vadd.f32 %v5258, %v5640
    %5642 = vmatmul.bf16.gmra.mxu0 %v5170
    %v5643 = vpop.f32.mrf.mxu0
    %v5644 = vadd.f32 %v5258, %v5643
    %v5645 = vpop.f32.mrf.mxu0
    %v5646 = vadd.f32 %v5258, %v5645
    %5647 = vmatmul.bf16.gmra.mxu0 %v5173
    %v5648 = vpop.f32.mrf.mxu0
    %v5649 = vadd.f32 %v5258, %v5648
    %v5650 = vpop.f32.mrf.mxu0
    %v5651 = vadd.f32 %v5258, %v5650
    %5652 = vmatmul.bf16.gmra.mxu0 %v5176
    %v5653 = vpop.f32.mrf.mxu0
    %v5654 = vadd.f32 %v5258, %v5653
    %v5655 = vpop.f32.mrf.mxu0
    %v5656 = vadd.f32 %v5258, %v5655
    %5657 = vmatmul.bf16.gmra.mxu0 %v5179
    %v5658 = vpop.f32.mrf.mxu0
    %v5659 = vadd.f32 %v5258, %v5658
    %v5660 = vpop.f32.mrf.mxu0
    %v5661 = vadd.f32 %v5258, %v5660
    %5662 = vmatmul.bf16.gmra.mxu0 %v5182
    %v5663 = vpop.f32.mrf.mxu0
    %v5664 = vadd.f32 %v5258, %v5663
    %v5665 = vpop.f32.mrf.mxu0
    %v5666 = vadd.f32 %v5258, %v5665
    %5667 = vmatmul.bf16.gmra.mxu0 %v5185
    %v5668 = vpop.f32.mrf.mxu0
    %v5669 = vadd.f32 %v5258, %v5668
    %v5670 = vpop.f32.mrf.mxu0
    %v5671 = vadd.f32 %v5258, %v5670
    %5672 = vdwg.mxu0
    %5673 = vmatpush.bf16.msra.mxu0 %v5479
    %5674 = vmatpush.bf16.msra.mxu0 %v5476
    %5675 = vmatpush.bf16.msra.mxu0 %v5473
    %5676 = vmatpush.bf16.msra.mxu0 %v5470
    %5677 = vmatpush.bf16.msra.mxu0 %v5467
    %5678 = vmatpush.bf16.msra.mxu0 %v5464
    %5679 = vmatpush.bf16.msra.mxu0 %v5461
    %5680 = vmatpush.bf16.msra.mxu0 %v5458
    %5681 = vmatmul.bf16.gmra.mxu0 %v5141
    %v5682 = vpop.f32.mrf.mxu0
    %v5683 = vadd.f32 %v5594, %v5682
    %v5684 = vpop.f32.mrf.mxu0
    %v5685 = vadd.f32 %v5596, %v5684
    %5686 = vmatmul.bf16.gmra.mxu0 %v5144
    %v5687 = vpop.f32.mrf.mxu0
    %v5688 = vadd.f32 %v5599, %v5687
    %v5689 = vpop.f32.mrf.mxu0
    %v5690 = vadd.f32 %v5601, %v5689
    %5691 = vmatmul.bf16.gmra.mxu0 %v5147
    %v5692 = vpop.f32.mrf.mxu0
    %v5693 = vadd.f32 %v5604, %v5692
    %v5694 = vpop.f32.mrf.mxu0
    %v5695 = vadd.f32 %v5606, %v5694
    %5696 = vmatmul.bf16.gmra.mxu0 %v5150
    %v5697 = vpop.f32.mrf.mxu0
    %v5698 = vadd.f32 %v5609, %v5697
    %v5699 = vpop.f32.mrf.mxu0
    %v5700 = vadd.f32 %v5611, %v5699
    %5701 = vmatmul.bf16.gmra.mxu0 %v5153
    %v5702 = vpop.f32.mrf.mxu0
    %v5703 = vadd.f32 %v5614, %v5702
    %v5704 = vpop.f32.mrf.mxu0
    %v5705 = vadd.f32 %v5616, %v5704
    %5706 = vmatmul.bf16.gmra.mxu0 %v5156
    %v5707 = vpop.f32.mrf.mxu0
    %v5708 = vadd.f32 %v5619, %v5707
    %v5709 = vpop.f32.mrf.mxu0
    %v5710 = vadd.f32 %v5621, %v5709
    %5711 = vmatmul.bf16.gmra.mxu0 %v5159
    %v5712 = vpop.f32.mrf.mxu0
    %v5713 = vadd.f32 %v5624, %v5712
    %v5714 = vpop.f32.mrf.mxu0
    %v5715 = vadd.f32 %v5626, %v5714
    %5716 = vmatmul.bf16.gmra.mxu0 %v5162
    %v5717 = vpop.f32.mrf.mxu0
    %v5718 = vadd.f32 %v5629, %v5717
    %v5719 = vpop.f32.mrf.mxu0
    %v5720 = vadd.f32 %v5631, %v5719
    %5721 = vmatmul.bf16.gmra.mxu0 %v5165
    %v5722 = vpop.f32.mrf.mxu0
    %v5723 = vadd.f32 %v5634, %v5722
    %v5724 = vpop.f32.mrf.mxu0
    %v5725 = vadd.f32 %v5636, %v5724
    %5726 = vmatmul.bf16.gmra.mxu0 %v5168
    %v5727 = vpop.f32.mrf.mxu0
    %v5728 = vadd.f32 %v5639, %v5727
    %v5729 = vpop.f32.mrf.mxu0
    %v5730 = vadd.f32 %v5641, %v5729
    %5731 = vmatmul.bf16.gmra.mxu0 %v5171
    %v5732 = vpop.f32.mrf.mxu0
    %v5733 = vadd.f32 %v5644, %v5732
    %v5734 = vpop.f32.mrf.mxu0
    %v5735 = vadd.f32 %v5646, %v5734
    %5736 = vmatmul.bf16.gmra.mxu0 %v5174
    %v5737 = vpop.f32.mrf.mxu0
    %v5738 = vadd.f32 %v5649, %v5737
    %v5739 = vpop.f32.mrf.mxu0
    %v5740 = vadd.f32 %v5651, %v5739
    %5741 = vmatmul.bf16.gmra.mxu0 %v5177
    %v5742 = vpop.f32.mrf.mxu0
    %v5743 = vadd.f32 %v5654, %v5742
    %v5744 = vpop.f32.mrf.mxu0
    %v5745 = vadd.f32 %v5656, %v5744
    %5746 = vmatmul.bf16.gmra.mxu0 %v5180
    %v5747 = vpop.f32.mrf.mxu0
    %v5748 = vadd.f32 %v5659, %v5747
    %v5749 = vpop.f32.mrf.mxu0
    %v5750 = vadd.f32 %v5661, %v5749
    %5751 = vmatmul.bf16.gmra.mxu0 %v5183
    %v5752 = vpop.f32.mrf.mxu0
    %v5753 = vadd.f32 %v5664, %v5752
    %v5754 = vpop.f32.mrf.mxu0
    %v5755 = vadd.f32 %v5666, %v5754
    %5756 = vmatmul.bf16.gmra.mxu0 %v5186
    %v5757 = vpop.f32.mrf.mxu0
    %v5758 = vadd.f32 %v5669, %v5757
    %v5759 = vpop.f32.mrf.mxu0
    %v5760 = vadd.f32 %v5671, %v5759
    %5761 = vdwg.mxu0
    %5762 = vmatpush.bf16.msra.mxu0 0
    %5763 = vmatpush.bf16.msra.mxu0 0
    %5764 = vmatpush.bf16.msra.mxu0 0
    %5765 = vmatpush.bf16.msra.mxu0 0
    %5766 = vmatpush.bf16.msra.mxu0 0
    %5767 = vmatpush.bf16.msra.mxu0 0
    %5768 = vmatpush.bf16.msra.mxu0 0
    %5769 = vmatpush.bf16.msra.mxu0 %v5482
    %5770 = vmatmul.bf16.gmra.mxu0 %v5537
    %v5771 = vpop.f32.mrf.mxu0
    %v5772 = vadd.f32 %v5683, %v5771
    %v5773 = vpop.f32.mrf.mxu0
    %v5774 = vadd.f32 %v5685, %v5773
    %5775 = vmatmul.bf16.gmra.mxu0 %v5540
    %v5776 = vpop.f32.mrf.mxu0
    %v5777 = vadd.f32 %v5688, %v5776
    %v5778 = vpop.f32.mrf.mxu0
    %v5779 = vadd.f32 %v5690, %v5778
    %5780 = vmatmul.bf16.gmra.mxu0 %v5543
    %v5781 = vpop.f32.mrf.mxu0
    %v5782 = vadd.f32 %v5693, %v5781
    %v5783 = vpop.f32.mrf.mxu0
    %v5784 = vadd.f32 %v5695, %v5783
    %5785 = vmatmul.bf16.gmra.mxu0 %v5546
    %v5786 = vpop.f32.mrf.mxu0
    %v5787 = vadd.f32 %v5698, %v5786
    %v5788 = vpop.f32.mrf.mxu0
    %v5789 = vadd.f32 %v5700, %v5788
    %5790 = vmatmul.bf16.gmra.mxu0 %v5549
    %v5791 = vpop.f32.mrf.mxu0
    %v5792 = vadd.f32 %v5703, %v5791
    %v5793 = vpop.f32.mrf.mxu0
    %v5794 = vadd.f32 %v5705, %v5793
    %5795 = vmatmul.bf16.gmra.mxu0 %v5552
    %v5796 = vpop.f32.mrf.mxu0
    %v5797 = vadd.f32 %v5708, %v5796
    %v5798 = vpop.f32.mrf.mxu0
    %v5799 = vadd.f32 %v5710, %v5798
    %5800 = vmatmul.bf16.gmra.mxu0 %v5555
    %v5801 = vpop.f32.mrf.mxu0
    %v5802 = vadd.f32 %v5713, %v5801
    %v5803 = vpop.f32.mrf.mxu0
    %v5804 = vadd.f32 %v5715, %v5803
    %5805 = vmatmul.bf16.gmra.mxu0 %v5558
    %v5806 = vpop.f32.mrf.mxu0
    %v5807 = vadd.f32 %v5718, %v5806
    %v5808 = vpop.f32.mrf.mxu0
    %v5809 = vadd.f32 %v5720, %v5808
    %5810 = vmatmul.bf16.gmra.mxu0 %v5561
    %v5811 = vpop.f32.mrf.mxu0
    %v5812 = vadd.f32 %v5723, %v5811
    %v5813 = vpop.f32.mrf.mxu0
    %v5814 = vadd.f32 %v5725, %v5813
    %5815 = vmatmul.bf16.gmra.mxu0 %v5564
    %v5816 = vpop.f32.mrf.mxu0
    %v5817 = vadd.f32 %v5728, %v5816
    %v5818 = vpop.f32.mrf.mxu0
    %v5819 = vadd.f32 %v5730, %v5818
    %5820 = vmatmul.bf16.gmra.mxu0 %v5567
    %v5821 = vpop.f32.mrf.mxu0
    %v5822 = vadd.f32 %v5733, %v5821
    %v5823 = vpop.f32.mrf.mxu0
    %v5824 = vadd.f32 %v5735, %v5823
    %5825 = vmatmul.bf16.gmra.mxu0 %v5570
    %v5826 = vpop.f32.mrf.mxu0
    %v5827 = vadd.f32 %v5738, %v5826
    %v5828 = vpop.f32.mrf.mxu0
    %v5829 = vadd.f32 %v5740, %v5828
    %5830 = vmatmul.bf16.gmra.mxu0 %v5573
    %v5831 = vpop.f32.mrf.mxu0
    %v5832 = vadd.f32 %v5743, %v5831
    %v5833 = vpop.f32.mrf.mxu0
    %v5834 = vadd.f32 %v5745, %v5833
    %5835 = vmatmul.bf16.gmra.mxu0 %v5576
    %v5836 = vpop.f32.mrf.mxu0
    %v5837 = vadd.f32 %v5748, %v5836
    %v5838 = vpop.f32.mrf.mxu0
    %v5839 = vadd.f32 %v5750, %v5838
    %5840 = vmatmul.bf16.gmra.mxu0 %v5579
    %v5841 = vpop.f32.mrf.mxu0
    %v5842 = vadd.f32 %v5753, %v5841
    %v5843 = vpop.f32.mrf.mxu0
    %v5844 = vadd.f32 %v5755, %v5843
    %5845 = vmatmul.bf16.gmra.mxu0 %v5582
    %v5846 = vpop.f32.mrf.mxu0
    %v5847 = vadd.f32 %v5758, %v5846
    %v5848 = vpop.f32.mrf.mxu0
    %v5849 = vadd.f32 %v5760, %v5848
    %5850 = vdwg.mxu0
    %5851 = vmatpush.bf16.msra.mxu0 %v5456
    %5852 = vmatpush.bf16.msra.mxu0 %v5453
    %5853 = vmatpush.bf16.msra.mxu0 %v5450
    %5854 = vmatpush.bf16.msra.mxu0 %v5447
    %5855 = vmatpush.bf16.msra.mxu0 %v5444
    %5856 = vmatpush.bf16.msra.mxu0 %v5441
    %5857 = vmatpush.bf16.msra.mxu0 %v5438
    %5858 = vmatpush.bf16.msra.mxu0 %v5435
    %5859 = vmatmul.bf16.gmra.mxu0 %v5140
    %v5860 = vpop.f32.mrf.mxu0
    %v5861 = vadd.f32 %v5259, %v5860
    %v5862 = vpop.f32.mrf.mxu0
    %v5863 = vadd.f32 %v5259, %v5862
    %5864 = vmatmul.bf16.gmra.mxu0 %v5143
    %v5865 = vpop.f32.mrf.mxu0
    %v5866 = vadd.f32 %v5259, %v5865
    %v5867 = vpop.f32.mrf.mxu0
    %v5868 = vadd.f32 %v5259, %v5867
    %5869 = vmatmul.bf16.gmra.mxu0 %v5146
    %v5870 = vpop.f32.mrf.mxu0
    %v5871 = vadd.f32 %v5259, %v5870
    %v5872 = vpop.f32.mrf.mxu0
    %v5873 = vadd.f32 %v5259, %v5872
    %5874 = vmatmul.bf16.gmra.mxu0 %v5149
    %v5875 = vpop.f32.mrf.mxu0
    %v5876 = vadd.f32 %v5259, %v5875
    %v5877 = vpop.f32.mrf.mxu0
    %v5878 = vadd.f32 %v5259, %v5877
    %5879 = vmatmul.bf16.gmra.mxu0 %v5152
    %v5880 = vpop.f32.mrf.mxu0
    %v5881 = vadd.f32 %v5259, %v5880
    %v5882 = vpop.f32.mrf.mxu0
    %v5883 = vadd.f32 %v5259, %v5882
    %5884 = vmatmul.bf16.gmra.mxu0 %v5155
    %v5885 = vpop.f32.mrf.mxu0
    %v5886 = vadd.f32 %v5259, %v5885
    %v5887 = vpop.f32.mrf.mxu0
    %v5888 = vadd.f32 %v5259, %v5887
    %5889 = vmatmul.bf16.gmra.mxu0 %v5158
    %v5890 = vpop.f32.mrf.mxu0
    %v5891 = vadd.f32 %v5259, %v5890
    %v5892 = vpop.f32.mrf.mxu0
    %v5893 = vadd.f32 %v5259, %v5892
    %5894 = vmatmul.bf16.gmra.mxu0 %v5161
    %v5895 = vpop.f32.mrf.mxu0
    %v5896 = vadd.f32 %v5259, %v5895
    %v5897 = vpop.f32.mrf.mxu0
    %v5898 = vadd.f32 %v5259, %v5897
    %5899 = vmatmul.bf16.gmra.mxu0 %v5164
    %v5900 = vpop.f32.mrf.mxu0
    %v5901 = vadd.f32 %v5259, %v5900
    %v5902 = vpop.f32.mrf.mxu0
    %v5903 = vadd.f32 %v5259, %v5902
    %5904 = vmatmul.bf16.gmra.mxu0 %v5167
    %v5905 = vpop.f32.mrf.mxu0
    %v5906 = vadd.f32 %v5259, %v5905
    %v5907 = vpop.f32.mrf.mxu0
    %v5908 = vadd.f32 %v5259, %v5907
    %5909 = vmatmul.bf16.gmra.mxu0 %v5170
    %v5910 = vpop.f32.mrf.mxu0
    %v5911 = vadd.f32 %v5259, %v5910
    %v5912 = vpop.f32.mrf.mxu0
    %v5913 = vadd.f32 %v5259, %v5912
    %5914 = vmatmul.bf16.gmra.mxu0 %v5173
    %v5915 = vpop.f32.mrf.mxu0
    %v5916 = vadd.f32 %v5259, %v5915
    %v5917 = vpop.f32.mrf.mxu0
    %v5918 = vadd.f32 %v5259, %v5917
    %5919 = vmatmul.bf16.gmra.mxu0 %v5176
    %v5920 = vpop.f32.mrf.mxu0
    %v5921 = vadd.f32 %v5259, %v5920
    %v5922 = vpop.f32.mrf.mxu0
    %v5923 = vadd.f32 %v5259, %v5922
    %5924 = vmatmul.bf16.gmra.mxu0 %v5179
    %v5925 = vpop.f32.mrf.mxu0
    %v5926 = vadd.f32 %v5259, %v5925
    %v5927 = vpop.f32.mrf.mxu0
    %v5928 = vadd.f32 %v5259, %v5927
    %5929 = vmatmul.bf16.gmra.mxu0 %v5182
    %v5930 = vpop.f32.mrf.mxu0
    %v5931 = vadd.f32 %v5259, %v5930
    %v5932 = vpop.f32.mrf.mxu0
    %v5933 = vadd.f32 %v5259, %v5932
    %5934 = vmatmul.bf16.gmra.mxu0 %v5185
    %v5935 = vpop.f32.mrf.mxu0
    %v5936 = vadd.f32 %v5259, %v5935
    %v5937 = vpop.f32.mrf.mxu0
    %v5938 = vadd.f32 %v5259, %v5937
    %5939 = vdwg.mxu0
    %5940 = vmatpush.bf16.msra.mxu0 %v5480
    %5941 = vmatpush.bf16.msra.mxu0 %v5477
    %5942 = vmatpush.bf16.msra.mxu0 %v5474
    %5943 = vmatpush.bf16.msra.mxu0 %v5471
    %5944 = vmatpush.bf16.msra.mxu0 %v5468
    %5945 = vmatpush.bf16.msra.mxu0 %v5465
    %5946 = vmatpush.bf16.msra.mxu0 %v5462
    %5947 = vmatpush.bf16.msra.mxu0 %v5459
    %5948 = vmatmul.bf16.gmra.mxu0 %v5141
    %v5949 = vpop.f32.mrf.mxu0
    %v5950 = vadd.f32 %v5861, %v5949
    %v5951 = vpop.f32.mrf.mxu0
    %v5952 = vadd.f32 %v5863, %v5951
    %5953 = vmatmul.bf16.gmra.mxu0 %v5144
    %v5954 = vpop.f32.mrf.mxu0
    %v5955 = vadd.f32 %v5866, %v5954
    %v5956 = vpop.f32.mrf.mxu0
    %v5957 = vadd.f32 %v5868, %v5956
    %5958 = vmatmul.bf16.gmra.mxu0 %v5147
    %v5959 = vpop.f32.mrf.mxu0
    %v5960 = vadd.f32 %v5871, %v5959
    %v5961 = vpop.f32.mrf.mxu0
    %v5962 = vadd.f32 %v5873, %v5961
    %5963 = vmatmul.bf16.gmra.mxu0 %v5150
    %v5964 = vpop.f32.mrf.mxu0
    %v5965 = vadd.f32 %v5876, %v5964
    %v5966 = vpop.f32.mrf.mxu0
    %v5967 = vadd.f32 %v5878, %v5966
    %5968 = vmatmul.bf16.gmra.mxu0 %v5153
    %v5969 = vpop.f32.mrf.mxu0
    %v5970 = vadd.f32 %v5881, %v5969
    %v5971 = vpop.f32.mrf.mxu0
    %v5972 = vadd.f32 %v5883, %v5971
    %5973 = vmatmul.bf16.gmra.mxu0 %v5156
    %v5974 = vpop.f32.mrf.mxu0
    %v5975 = vadd.f32 %v5886, %v5974
    %v5976 = vpop.f32.mrf.mxu0
    %v5977 = vadd.f32 %v5888, %v5976
    %5978 = vmatmul.bf16.gmra.mxu0 %v5159
    %v5979 = vpop.f32.mrf.mxu0
    %v5980 = vadd.f32 %v5891, %v5979
    %v5981 = vpop.f32.mrf.mxu0
    %v5982 = vadd.f32 %v5893, %v5981
    %5983 = vmatmul.bf16.gmra.mxu0 %v5162
    %v5984 = vpop.f32.mrf.mxu0
    %v5985 = vadd.f32 %v5896, %v5984
    %v5986 = vpop.f32.mrf.mxu0
    %v5987 = vadd.f32 %v5898, %v5986
    %5988 = vmatmul.bf16.gmra.mxu0 %v5165
    %v5989 = vpop.f32.mrf.mxu0
    %v5990 = vadd.f32 %v5901, %v5989
    %v5991 = vpop.f32.mrf.mxu0
    %v5992 = vadd.f32 %v5903, %v5991
    %5993 = vmatmul.bf16.gmra.mxu0 %v5168
    %v5994 = vpop.f32.mrf.mxu0
    %v5995 = vadd.f32 %v5906, %v5994
    %v5996 = vpop.f32.mrf.mxu0
    %v5997 = vadd.f32 %v5908, %v5996
    %5998 = vmatmul.bf16.gmra.mxu0 %v5171
    %v5999 = vpop.f32.mrf.mxu0
    %v6000 = vadd.f32 %v5911, %v5999
    %v6001 = vpop.f32.mrf.mxu0
    %v6002 = vadd.f32 %v5913, %v6001
    %6003 = vmatmul.bf16.gmra.mxu0 %v5174
    %v6004 = vpop.f32.mrf.mxu0
    %v6005 = vadd.f32 %v5916, %v6004
    %v6006 = vpop.f32.mrf.mxu0
    %v6007 = vadd.f32 %v5918, %v6006
    %6008 = vmatmul.bf16.gmra.mxu0 %v5177
    %v6009 = vpop.f32.mrf.mxu0
    %v6010 = vadd.f32 %v5921, %v6009
    %v6011 = vpop.f32.mrf.mxu0
    %v6012 = vadd.f32 %v5923, %v6011
    %6013 = vmatmul.bf16.gmra.mxu0 %v5180
    %v6014 = vpop.f32.mrf.mxu0
    %v6015 = vadd.f32 %v5926, %v6014
    %v6016 = vpop.f32.mrf.mxu0
    %v6017 = vadd.f32 %v5928, %v6016
    %6018 = vmatmul.bf16.gmra.mxu0 %v5183
    %v6019 = vpop.f32.mrf.mxu0
    %v6020 = vadd.f32 %v5931, %v6019
    %v6021 = vpop.f32.mrf.mxu0
    %v6022 = vadd.f32 %v5933, %v6021
    %6023 = vmatmul.bf16.gmra.mxu0 %v5186
    %v6024 = vpop.f32.mrf.mxu0
    %v6025 = vadd.f32 %v5936, %v6024
    %v6026 = vpop.f32.mrf.mxu0
    %v6027 = vadd.f32 %v5938, %v6026
    %6028 = vdwg.mxu0
    %6029 = vmatpush.bf16.msra.mxu0 0
    %6030 = vmatpush.bf16.msra.mxu0 0
    %6031 = vmatpush.bf16.msra.mxu0 0
    %6032 = vmatpush.bf16.msra.mxu0 0
    %6033 = vmatpush.bf16.msra.mxu0 0
    %6034 = vmatpush.bf16.msra.mxu0 0
    %6035 = vmatpush.bf16.msra.mxu0 0
    %6036 = vmatpush.bf16.msra.mxu0 %v5483
    %6037 = vmatmul.bf16.gmra.mxu0 %v5537
    %v6038 = vpop.f32.mrf.mxu0
    %v6039 = vadd.f32 %v5950, %v6038
    %v6040 = vpop.f32.mrf.mxu0
    %v6041 = vadd.f32 %v5952, %v6040
    %6042 = vmatmul.bf16.gmra.mxu0 %v5540
    %v6043 = vpop.f32.mrf.mxu0
    %v6044 = vadd.f32 %v5955, %v6043
    %v6045 = vpop.f32.mrf.mxu0
    %v6046 = vadd.f32 %v5957, %v6045
    %6047 = vmatmul.bf16.gmra.mxu0 %v5543
    %v6048 = vpop.f32.mrf.mxu0
    %v6049 = vadd.f32 %v5960, %v6048
    %v6050 = vpop.f32.mrf.mxu0
    %v6051 = vadd.f32 %v5962, %v6050
    %6052 = vmatmul.bf16.gmra.mxu0 %v5546
    %v6053 = vpop.f32.mrf.mxu0
    %v6054 = vadd.f32 %v5965, %v6053
    %v6055 = vpop.f32.mrf.mxu0
    %v6056 = vadd.f32 %v5967, %v6055
    %6057 = vmatmul.bf16.gmra.mxu0 %v5549
    %v6058 = vpop.f32.mrf.mxu0
    %v6059 = vadd.f32 %v5970, %v6058
    %v6060 = vpop.f32.mrf.mxu0
    %v6061 = vadd.f32 %v5972, %v6060
    %6062 = vmatmul.bf16.gmra.mxu0 %v5552
    %v6063 = vpop.f32.mrf.mxu0
    %v6064 = vadd.f32 %v5975, %v6063
    %v6065 = vpop.f32.mrf.mxu0
    %v6066 = vadd.f32 %v5977, %v6065
    %6067 = vmatmul.bf16.gmra.mxu0 %v5555
    %v6068 = vpop.f32.mrf.mxu0
    %v6069 = vadd.f32 %v5980, %v6068
    %v6070 = vpop.f32.mrf.mxu0
    %v6071 = vadd.f32 %v5982, %v6070
    %6072 = vmatmul.bf16.gmra.mxu0 %v5558
    %v6073 = vpop.f32.mrf.mxu0
    %v6074 = vadd.f32 %v5985, %v6073
    %v6075 = vpop.f32.mrf.mxu0
    %v6076 = vadd.f32 %v5987, %v6075
    %6077 = vmatmul.bf16.gmra.mxu0 %v5561
    %v6078 = vpop.f32.mrf.mxu0
    %v6079 = vadd.f32 %v5990, %v6078
    %v6080 = vpop.f32.mrf.mxu0
    %v6081 = vadd.f32 %v5992, %v6080
    %6082 = vmatmul.bf16.gmra.mxu0 %v5564
    %v6083 = vpop.f32.mrf.mxu0
    %v6084 = vadd.f32 %v5995, %v6083
    %v6085 = vpop.f32.mrf.mxu0
    %v6086 = vadd.f32 %v5997, %v6085
    %6087 = vmatmul.bf16.gmra.mxu0 %v5567
    %v6088 = vpop.f32.mrf.mxu0
    %v6089 = vadd.f32 %v6000, %v6088
    %v6090 = vpop.f32.mrf.mxu0
    %v6091 = vadd.f32 %v6002, %v6090
    %6092 = vmatmul.bf16.gmra.mxu0 %v5570
    %v6093 = vpop.f32.mrf.mxu0
    %v6094 = vadd.f32 %v6005, %v6093
    %v6095 = vpop.f32.mrf.mxu0
    %v6096 = vadd.f32 %v6007, %v6095
    %6097 = vmatmul.bf16.gmra.mxu0 %v5573
    %v6098 = vpop.f32.mrf.mxu0
    %v6099 = vadd.f32 %v6010, %v6098
    %v6100 = vpop.f32.mrf.mxu0
    %v6101 = vadd.f32 %v6012, %v6100
    %6102 = vmatmul.bf16.gmra.mxu0 %v5576
    %v6103 = vpop.f32.mrf.mxu0
    %v6104 = vadd.f32 %v6015, %v6103
    %v6105 = vpop.f32.mrf.mxu0
    %v6106 = vadd.f32 %v6017, %v6105
    %6107 = vmatmul.bf16.gmra.mxu0 %v5579
    %v6108 = vpop.f32.mrf.mxu0
    %v6109 = vadd.f32 %v6020, %v6108
    %v6110 = vpop.f32.mrf.mxu0
    %v6111 = vadd.f32 %v6022, %v6110
    %6112 = vmatmul.bf16.gmra.mxu0 %v5582
    %v6113 = vpop.f32.mrf.mxu0
    %v6114 = vadd.f32 %v6025, %v6113
    %v6115 = vpop.f32.mrf.mxu0
    %v6116 = vadd.f32 %v6027, %v6115
    %6117 = vdwg.mxu0
    %6118 = vmatpush.bf16.msra.mxu0 %v5457
    %6119 = vmatpush.bf16.msra.mxu0 %v5454
    %6120 = vmatpush.bf16.msra.mxu0 %v5451
    %6121 = vmatpush.bf16.msra.mxu0 %v5448
    %6122 = vmatpush.bf16.msra.mxu0 %v5445
    %6123 = vmatpush.bf16.msra.mxu0 %v5442
    %6124 = vmatpush.bf16.msra.mxu0 %v5439
    %6125 = vmatpush.bf16.msra.mxu0 %v5436
    %6126 = vmatmul.bf16.gmra.mxu0 %v5140
    %v6127 = vpop.f32.mrf.mxu0
    %v6128 = vadd.f32 %v5260, %v6127
    %v6129 = vpop.f32.mrf.mxu0
    %v6130 = vadd.f32 %v5260, %v6129
    %6131 = vmatmul.bf16.gmra.mxu0 %v5143
    %v6132 = vpop.f32.mrf.mxu0
    %v6133 = vadd.f32 %v5260, %v6132
    %v6134 = vpop.f32.mrf.mxu0
    %v6135 = vadd.f32 %v5260, %v6134
    %6136 = vmatmul.bf16.gmra.mxu0 %v5146
    %v6137 = vpop.f32.mrf.mxu0
    %v6138 = vadd.f32 %v5260, %v6137
    %v6139 = vpop.f32.mrf.mxu0
    %v6140 = vadd.f32 %v5260, %v6139
    %6141 = vmatmul.bf16.gmra.mxu0 %v5149
    %v6142 = vpop.f32.mrf.mxu0
    %v6143 = vadd.f32 %v5260, %v6142
    %v6144 = vpop.f32.mrf.mxu0
    %v6145 = vadd.f32 %v5260, %v6144
    %6146 = vmatmul.bf16.gmra.mxu0 %v5152
    %v6147 = vpop.f32.mrf.mxu0
    %v6148 = vadd.f32 %v5260, %v6147
    %v6149 = vpop.f32.mrf.mxu0
    %v6150 = vadd.f32 %v5260, %v6149
    %6151 = vmatmul.bf16.gmra.mxu0 %v5155
    %v6152 = vpop.f32.mrf.mxu0
    %v6153 = vadd.f32 %v5260, %v6152
    %v6154 = vpop.f32.mrf.mxu0
    %v6155 = vadd.f32 %v5260, %v6154
    %6156 = vmatmul.bf16.gmra.mxu0 %v5158
    %v6157 = vpop.f32.mrf.mxu0
    %v6158 = vadd.f32 %v5260, %v6157
    %v6159 = vpop.f32.mrf.mxu0
    %v6160 = vadd.f32 %v5260, %v6159
    %6161 = vmatmul.bf16.gmra.mxu0 %v5161
    %v6162 = vpop.f32.mrf.mxu0
    %v6163 = vadd.f32 %v5260, %v6162
    %v6164 = vpop.f32.mrf.mxu0
    %v6165 = vadd.f32 %v5260, %v6164
    %6166 = vmatmul.bf16.gmra.mxu0 %v5164
    %v6167 = vpop.f32.mrf.mxu0
    %v6168 = vadd.f32 %v5260, %v6167
    %v6169 = vpop.f32.mrf.mxu0
    %v6170 = vadd.f32 %v5260, %v6169
    %6171 = vmatmul.bf16.gmra.mxu0 %v5167
    %v6172 = vpop.f32.mrf.mxu0
    %v6173 = vadd.f32 %v5260, %v6172
    %v6174 = vpop.f32.mrf.mxu0
    %v6175 = vadd.f32 %v5260, %v6174
    %6176 = vmatmul.bf16.gmra.mxu0 %v5170
    %v6177 = vpop.f32.mrf.mxu0
    %v6178 = vadd.f32 %v5260, %v6177
    %v6179 = vpop.f32.mrf.mxu0
    %v6180 = vadd.f32 %v5260, %v6179
    %6181 = vmatmul.bf16.gmra.mxu0 %v5173
    %v6182 = vpop.f32.mrf.mxu0
    %v6183 = vadd.f32 %v5260, %v6182
    %v6184 = vpop.f32.mrf.mxu0
    %v6185 = vadd.f32 %v5260, %v6184
    %6186 = vmatmul.bf16.gmra.mxu0 %v5176
    %v6187 = vpop.f32.mrf.mxu0
    %v6188 = vadd.f32 %v5260, %v6187
    %v6189 = vpop.f32.mrf.mxu0
    %v6190 = vadd.f32 %v5260, %v6189
    %6191 = vmatmul.bf16.gmra.mxu0 %v5179
    %v6192 = vpop.f32.mrf.mxu0
    %v6193 = vadd.f32 %v5260, %v6192
    %v6194 = vpop.f32.mrf.mxu0
    %v6195 = vadd.f32 %v5260, %v6194
    %6196 = vmatmul.bf16.gmra.mxu0 %v5182
    %v6197 = vpop.f32.mrf.mxu0
    %v6198 = vadd.f32 %v5260, %v6197
    %v6199 = vpop.f32.mrf.mxu0
    %v6200 = vadd.f32 %v5260, %v6199
    %6201 = vmatmul.bf16.gmra.mxu0 %v5185
    %v6202 = vpop.f32.mrf.mxu0
    %v6203 = vadd.f32 %v5260, %v6202
    %v6204 = vpop.f32.mrf.mxu0
    %v6205 = vadd.f32 %v5260, %v6204
    %6206 = vdwg.mxu0
    %6207 = vmatpush.bf16.msra.mxu0 %v5481
    %6208 = vmatpush.bf16.msra.mxu0 %v5478
    %6209 = vmatpush.bf16.msra.mxu0 %v5475
    %6210 = vmatpush.bf16.msra.mxu0 %v5472
    %6211 = vmatpush.bf16.msra.mxu0 %v5469
    %6212 = vmatpush.bf16.msra.mxu0 %v5466
    %6213 = vmatpush.bf16.msra.mxu0 %v5463
    %6214 = vmatpush.bf16.msra.mxu0 %v5460
    %6215 = vmatmul.bf16.gmra.mxu0 %v5141
    %v6216 = vpop.f32.mrf.mxu0
    %v6217 = vadd.f32 %v6128, %v6216
    %v6218 = vpop.f32.mrf.mxu0
    %v6219 = vadd.f32 %v6130, %v6218
    %6220 = vmatmul.bf16.gmra.mxu0 %v5144
    %v6221 = vpop.f32.mrf.mxu0
    %v6222 = vadd.f32 %v6133, %v6221
    %v6223 = vpop.f32.mrf.mxu0
    %v6224 = vadd.f32 %v6135, %v6223
    %6225 = vmatmul.bf16.gmra.mxu0 %v5147
    %v6226 = vpop.f32.mrf.mxu0
    %v6227 = vadd.f32 %v6138, %v6226
    %v6228 = vpop.f32.mrf.mxu0
    %v6229 = vadd.f32 %v6140, %v6228
    %6230 = vmatmul.bf16.gmra.mxu0 %v5150
    %v6231 = vpop.f32.mrf.mxu0
    %v6232 = vadd.f32 %v6143, %v6231
    %v6233 = vpop.f32.mrf.mxu0
    %v6234 = vadd.f32 %v6145, %v6233
    %6235 = vmatmul.bf16.gmra.mxu0 %v5153
    %v6236 = vpop.f32.mrf.mxu0
    %v6237 = vadd.f32 %v6148, %v6236
    %v6238 = vpop.f32.mrf.mxu0
    %v6239 = vadd.f32 %v6150, %v6238
    %6240 = vmatmul.bf16.gmra.mxu0 %v5156
    %v6241 = vpop.f32.mrf.mxu0
    %v6242 = vadd.f32 %v6153, %v6241
    %v6243 = vpop.f32.mrf.mxu0
    %v6244 = vadd.f32 %v6155, %v6243
    %6245 = vmatmul.bf16.gmra.mxu0 %v5159
    %v6246 = vpop.f32.mrf.mxu0
    %v6247 = vadd.f32 %v6158, %v6246
    %v6248 = vpop.f32.mrf.mxu0
    %v6249 = vadd.f32 %v6160, %v6248
    %6250 = vmatmul.bf16.gmra.mxu0 %v5162
    %v6251 = vpop.f32.mrf.mxu0
    %v6252 = vadd.f32 %v6163, %v6251
    %v6253 = vpop.f32.mrf.mxu0
    %v6254 = vadd.f32 %v6165, %v6253
    %6255 = vmatmul.bf16.gmra.mxu0 %v5165
    %v6256 = vpop.f32.mrf.mxu0
    %v6257 = vadd.f32 %v6168, %v6256
    %v6258 = vpop.f32.mrf.mxu0
    %v6259 = vadd.f32 %v6170, %v6258
    %6260 = vmatmul.bf16.gmra.mxu0 %v5168
    %v6261 = vpop.f32.mrf.mxu0
    %v6262 = vadd.f32 %v6173, %v6261
    %v6263 = vpop.f32.mrf.mxu0
    %v6264 = vadd.f32 %v6175, %v6263
    %6265 = vmatmul.bf16.gmra.mxu0 %v5171
    %v6266 = vpop.f32.mrf.mxu0
    %v6267 = vadd.f32 %v6178, %v6266
    %v6268 = vpop.f32.mrf.mxu0
    %v6269 = vadd.f32 %v6180, %v6268
    %6270 = vmatmul.bf16.gmra.mxu0 %v5174
    %v6271 = vpop.f32.mrf.mxu0
    %v6272 = vadd.f32 %v6183, %v6271
    %v6273 = vpop.f32.mrf.mxu0
    %v6274 = vadd.f32 %v6185, %v6273
    %6275 = vmatmul.bf16.gmra.mxu0 %v5177
    %v6276 = vpop.f32.mrf.mxu0
    %v6277 = vadd.f32 %v6188, %v6276
    %v6278 = vpop.f32.mrf.mxu0
    %v6279 = vadd.f32 %v6190, %v6278
    %6280 = vmatmul.bf16.gmra.mxu0 %v5180
    %v6281 = vpop.f32.mrf.mxu0
    %v6282 = vadd.f32 %v6193, %v6281
    %v6283 = vpop.f32.mrf.mxu0
    %v6284 = vadd.f32 %v6195, %v6283
    %6285 = vmatmul.bf16.gmra.mxu0 %v5183
    %v6286 = vpop.f32.mrf.mxu0
    %v6287 = vadd.f32 %v6198, %v6286
    %v6288 = vpop.f32.mrf.mxu0
    %v6289 = vadd.f32 %v6200, %v6288
    %6290 = vmatmul.bf16.gmra.mxu0 %v5186
    %v6291 = vpop.f32.mrf.mxu0
    %v6292 = vadd.f32 %v6203, %v6291
    %v6293 = vpop.f32.mrf.mxu0
    %v6294 = vadd.f32 %v6205, %v6293
    %6295 = vdwg.mxu0
    %6296 = vmatpush.bf16.msra.mxu0 0
    %6297 = vmatpush.bf16.msra.mxu0 0
    %6298 = vmatpush.bf16.msra.mxu0 0
    %6299 = vmatpush.bf16.msra.mxu0 0
    %6300 = vmatpush.bf16.msra.mxu0 0
    %6301 = vmatpush.bf16.msra.mxu0 0
    %6302 = vmatpush.bf16.msra.mxu0 0
    %6303 = vmatpush.bf16.msra.mxu0 %v5484
    %6304 = vmatmul.bf16.gmra.mxu0 %v5537
    %v6305 = vpop.f32.mrf.mxu0
    %v6306 = vadd.f32 %v6217, %v6305
    %v6307 = vpop.f32.mrf.mxu0
    %v6308 = vadd.f32 %v6219, %v6307
    %6309 = vmatmul.bf16.gmra.mxu0 %v5540
    %v6310 = vpop.f32.mrf.mxu0
    %v6311 = vadd.f32 %v6222, %v6310
    %v6312 = vpop.f32.mrf.mxu0
    %v6313 = vadd.f32 %v6224, %v6312
    %6314 = vmatmul.bf16.gmra.mxu0 %v5543
    %v6315 = vpop.f32.mrf.mxu0
    %v6316 = vadd.f32 %v6227, %v6315
    %v6317 = vpop.f32.mrf.mxu0
    %v6318 = vadd.f32 %v6229, %v6317
    %6319 = vmatmul.bf16.gmra.mxu0 %v5546
    %v6320 = vpop.f32.mrf.mxu0
    %v6321 = vadd.f32 %v6232, %v6320
    %v6322 = vpop.f32.mrf.mxu0
    %v6323 = vadd.f32 %v6234, %v6322
    %6324 = vmatmul.bf16.gmra.mxu0 %v5549
    %v6325 = vpop.f32.mrf.mxu0
    %v6326 = vadd.f32 %v6237, %v6325
    %v6327 = vpop.f32.mrf.mxu0
    %v6328 = vadd.f32 %v6239, %v6327
    %6329 = vmatmul.bf16.gmra.mxu0 %v5552
    %v6330 = vpop.f32.mrf.mxu0
    %v6331 = vadd.f32 %v6242, %v6330
    %v6332 = vpop.f32.mrf.mxu0
    %v6333 = vadd.f32 %v6244, %v6332
    %6334 = vmatmul.bf16.gmra.mxu0 %v5555
    %v6335 = vpop.f32.mrf.mxu0
    %v6336 = vadd.f32 %v6247, %v6335
    %v6337 = vpop.f32.mrf.mxu0
    %v6338 = vadd.f32 %v6249, %v6337
    %6339 = vmatmul.bf16.gmra.mxu0 %v5558
    %v6340 = vpop.f32.mrf.mxu0
    %v6341 = vadd.f32 %v6252, %v6340
    %v6342 = vpop.f32.mrf.mxu0
    %v6343 = vadd.f32 %v6254, %v6342
    %6344 = vmatmul.bf16.gmra.mxu0 %v5561
    %v6345 = vpop.f32.mrf.mxu0
    %v6346 = vadd.f32 %v6257, %v6345
    %v6347 = vpop.f32.mrf.mxu0
    %v6348 = vadd.f32 %v6259, %v6347
    %6349 = vmatmul.bf16.gmra.mxu0 %v5564
    %v6350 = vpop.f32.mrf.mxu0
    %v6351 = vadd.f32 %v6262, %v6350
    %v6352 = vpop.f32.mrf.mxu0
    %v6353 = vadd.f32 %v6264, %v6352
    %6354 = vmatmul.bf16.gmra.mxu0 %v5567
    %v6355 = vpop.f32.mrf.mxu0
    %v6356 = vadd.f32 %v6267, %v6355
    %v6357 = vpop.f32.mrf.mxu0
    %v6358 = vadd.f32 %v6269, %v6357
    %6359 = vmatmul.bf16.gmra.mxu0 %v5570
    %v6360 = vpop.f32.mrf.mxu0
    %v6361 = vadd.f32 %v6272, %v6360
    %v6362 = vpop.f32.mrf.mxu0
    %v6363 = vadd.f32 %v6274, %v6362
    %6364 = vmatmul.bf16.gmra.mxu0 %v5573
    %v6365 = vpop.f32.mrf.mxu0
    %v6366 = vadd.f32 %v6277, %v6365
    %v6367 = vpop.f32.mrf.mxu0
    %v6368 = vadd.f32 %v6279, %v6367
    %6369 = vmatmul.bf16.gmra.mxu0 %v5576
    %v6370 = vpop.f32.mrf.mxu0
    %v6371 = vadd.f32 %v6282, %v6370
    %v6372 = vpop.f32.mrf.mxu0
    %v6373 = vadd.f32 %v6284, %v6372
    %6374 = vmatmul.bf16.gmra.mxu0 %v5579
    %v6375 = vpop.f32.mrf.mxu0
    %v6376 = vadd.f32 %v6287, %v6375
    %v6377 = vpop.f32.mrf.mxu0
    %v6378 = vadd.f32 %v6289, %v6377
    %6379 = vmatmul.bf16.gmra.mxu0 %v5582
    %v6380 = vpop.f32.mrf.mxu0
    %v6381 = vadd.f32 %v6292, %v6380
    %v6382 = vpop.f32.mrf.mxu0
    %v6383 = vadd.f32 %v6294, %v6382
    %6384 = vdwg.mxu0
    %v6385 = vmax.f32 %v5772, 0.0
    %v6386 = vmax.f32 %v6039, 0.0
    %v6387 = vmax.f32 %v6306, 0.0
    %v6388 = vmax.f32 %v5774, 0.0
    %v6389 = vmax.f32 %v6041, 0.0
    %v6390 = vmax.f32 %v6308, 0.0
    %v6391 = vmax.f32 %v5777, 0.0
    %v6392 = vmax.f32 %v6044, 0.0
    %v6393 = vmax.f32 %v6311, 0.0
    %v6394 = vmax.f32 %v5779, 0.0
    %v6395 = vmax.f32 %v6046, 0.0
    %v6396 = vmax.f32 %v6313, 0.0
    %v6397 = vmax.f32 %v5782, 0.0
    %v6398 = vmax.f32 %v6049, 0.0
    %v6399 = vmax.f32 %v6316, 0.0
    %v6400 = vmax.f32 %v5784, 0.0
    %v6401 = vmax.f32 %v6051, 0.0
    %v6402 = vmax.f32 %v6318, 0.0
    %v6403 = vmax.f32 %v5787, 0.0
    %v6404 = vmax.f32 %v6054, 0.0
    %v6405 = vmax.f32 %v6321, 0.0
    %v6406 = vmax.f32 %v5789, 0.0
    %v6407 = vmax.f32 %v6056, 0.0
    %v6408 = vmax.f32 %v6323, 0.0
    %v6409 = vmax.f32 %v5792, 0.0
    %v6410 = vmax.f32 %v6059, 0.0
    %v6411 = vmax.f32 %v6326, 0.0
    %v6412 = vmax.f32 %v5794, 0.0
    %v6413 = vmax.f32 %v6061, 0.0
    %v6414 = vmax.f32 %v6328, 0.0
    %v6415 = vmax.f32 %v5797, 0.0
    %v6416 = vmax.f32 %v6064, 0.0
    %v6417 = vmax.f32 %v6331, 0.0
    %v6418 = vmax.f32 %v5799, 0.0
    %v6419 = vmax.f32 %v6066, 0.0
    %v6420 = vmax.f32 %v6333, 0.0
    %v6421 = vmax.f32 %v5802, 0.0
    %v6422 = vmax.f32 %v6069, 0.0
    %v6423 = vmax.f32 %v6336, 0.0
    %v6424 = vmax.f32 %v5804, 0.0
    %v6425 = vmax.f32 %v6071, 0.0
    %v6426 = vmax.f32 %v6338, 0.0
    %v6427 = vmax.f32 %v5807, 0.0
    %v6428 = vmax.f32 %v6074, 0.0
    %v6429 = vmax.f32 %v6341, 0.0
    %v6430 = vmax.f32 %v5809, 0.0
    %v6431 = vmax.f32 %v6076, 0.0
    %v6432 = vmax.f32 %v6343, 0.0
    %v6433 = vmax.f32 %v5812, 0.0
    %v6434 = vmax.f32 %v6079, 0.0
    %v6435 = vmax.f32 %v6346, 0.0
    %v6436 = vmax.f32 %v5814, 0.0
    %v6437 = vmax.f32 %v6081, 0.0
    %v6438 = vmax.f32 %v6348, 0.0
    %v6439 = vmax.f32 %v5817, 0.0
    %v6440 = vmax.f32 %v6084, 0.0
    %v6441 = vmax.f32 %v6351, 0.0
    %v6442 = vmax.f32 %v5819, 0.0
    %v6443 = vmax.f32 %v6086, 0.0
    %v6444 = vmax.f32 %v6353, 0.0
    %v6445 = vmax.f32 %v5822, 0.0
    %v6446 = vmax.f32 %v6089, 0.0
    %v6447 = vmax.f32 %v6356, 0.0
    %v6448 = vmax.f32 %v5824, 0.0
    %v6449 = vmax.f32 %v6091, 0.0
    %v6450 = vmax.f32 %v6358, 0.0
    %v6451 = vmax.f32 %v5827, 0.0
    %v6452 = vmax.f32 %v6094, 0.0
    %v6453 = vmax.f32 %v6361, 0.0
    %v6454 = vmax.f32 %v5829, 0.0
    %v6455 = vmax.f32 %v6096, 0.0
    %v6456 = vmax.f32 %v6363, 0.0
    %v6457 = vmax.f32 %v5832, 0.0
    %v6458 = vmax.f32 %v6099, 0.0
    %v6459 = vmax.f32 %v6366, 0.0
    %v6460 = vmax.f32 %v5834, 0.0
    %v6461 = vmax.f32 %v6101, 0.0
    %v6462 = vmax.f32 %v6368, 0.0
    %v6463 = vmax.f32 %v5837, 0.0
    %v6464 = vmax.f32 %v6104, 0.0
    %v6465 = vmax.f32 %v6371, 0.0
    %v6466 = vmax.f32 %v5839, 0.0
    %v6467 = vmax.f32 %v6106, 0.0
    %v6468 = vmax.f32 %v6373, 0.0
    %v6469 = vmax.f32 %v5842, 0.0
    %v6470 = vmax.f32 %v6109, 0.0
    %v6471 = vmax.f32 %v6376, 0.0
    %v6472 = vmax.f32 %v5844, 0.0
    %v6473 = vmax.f32 %v6111, 0.0
    %v6474 = vmax.f32 %v6378, 0.0
    %v6475 = vmax.f32 %v5847, 0.0
    %v6476 = vmax.f32 %v6114, 0.0
    %v6477 = vmax.f32 %v6381, 0.0
    %v6478 = vmax.f32 %v5849, 0.0
    %v6479 = vmax.f32 %v6116, 0.0
    %v6480 = vmax.f32 %v6383, 0.0
    %v6481 = vpack.c.bf16 %v6388, %v6385
    %v6482 = vpack.c.bf16 %v6389, %v6386
    %v6483 = vpack.c.bf16 %v6390, %v6387
    %v6484 = vpack.c.bf16 %v6394, %v6391
    %v6485 = vpack.c.bf16 %v6395, %v6392
    %v6486 = vpack.c.bf16 %v6396, %v6393
    %v6487 = vpack.c.bf16 %v6400, %v6397
    %v6488 = vpack.c.bf16 %v6401, %v6398
    %v6489 = vpack.c.bf16 %v6402, %v6399
    %v6490 = vpack.c.bf16 %v6406, %v6403
    %v6491 = vpack.c.bf16 %v6407, %v6404
    %v6492 = vpack.c.bf16 %v6408, %v6405
    %v6493 = vpack.c.bf16 %v6412, %v6409
    %v6494 = vpack.c.bf16 %v6413, %v6410
    %v6495 = vpack.c.bf16 %v6414, %v6411
    %v6496 = vpack.c.bf16 %v6418, %v6415
    %v6497 = vpack.c.bf16 %v6419, %v6416
    %v6498 = vpack.c.bf16 %v6420, %v6417
    %v6499 = vpack.c.bf16 %v6424, %v6421
    %v6500 = vpack.c.bf16 %v6425, %v6422
    %v6501 = vpack.c.bf16 %v6426, %v6423
    %v6502 = vpack.c.bf16 %v6430, %v6427
    %v6503 = vpack.c.bf16 %v6431, %v6428
    %v6504 = vpack.c.bf16 %v6432, %v6429
    %v6505 = vpack.c.bf16 %v6436, %v6433
    %v6506 = vpack.c.bf16 %v6437, %v6434
    %v6507 = vpack.c.bf16 %v6438, %v6435
    %v6508 = vpack.c.bf16 %v6442, %v6439
    %v6509 = vpack.c.bf16 %v6443, %v6440
    %v6510 = vpack.c.bf16 %v6444, %v6441
    %v6511 = vpack.c.bf16 %v6448, %v6445
    %v6512 = vpack.c.bf16 %v6449, %v6446
    %v6513 = vpack.c.bf16 %v6450, %v6447
    %v6514 = vpack.c.bf16 %v6454, %v6451
    %v6515 = vpack.c.bf16 %v6455, %v6452
    %v6516 = vpack.c.bf16 %v6456, %v6453
    %v6517 = vpack.c.bf16 %v6460, %v6457
    %v6518 = vpack.c.bf16 %v6461, %v6458
    %v6519 = vpack.c.bf16 %v6462, %v6459
    %v6520 = vpack.c.bf16 %v6466, %v6463
    %v6521 = vpack.c.bf16 %v6467, %v6464
    %v6522 = vpack.c.bf16 %v6468, %v6465
    %v6523 = vpack.c.bf16 %v6472, %v6469
    %v6524 = vpack.c.bf16 %v6473, %v6470
    %v6525 = vpack.c.bf16 %v6474, %v6471
    %v6526 = vpack.c.bf16 %v6478, %v6475
    %v6527 = vpack.c.bf16 %v6479, %v6476
    %v6528 = vpack.c.bf16 %v6480, %v6477
    %v6529 = vld [vmem:[%s9] sm:$0x7]
    %v6530 = vld [vmem:[#allocation2] sm:$0x1]
    %6532 = vset.pattern.permute.xlu0 0
    %6533 = vperm.xlu0 %6532, %v6530
    %v6534 = vpop.permute.xlu0 %6533
    %v6536 = vperm.slane %v6534, 0
    %6538 = vst [vmem:[#allocation1] ss:$9 sm:$0xff] %v6529
    %v6539 = vld [vmem:[#allocation1] sm:$0xff]
    %v6540 = vld [vmem:[#allocation1 + $0x9] sm:$0xff]
    %v6541 = vld [vmem:[#allocation1 + $0x12] sm:$0xff]
    %v6544 = vsel %vm3834, %v6541, 0
    %v6547 = vsel %vm3834, %v6483, 0
    %v6550 = vsel %vm3834, %v6486, 0
    %v6553 = vsel %vm3834, %v6489, 0
    %v6556 = vsel %vm3834, %v6492, 0
    %v6559 = vsel %vm3834, %v6495, 0
    %v6562 = vsel %vm3834, %v6498, 0
    %v6565 = vsel %vm3834, %v6501, 0
    %v6568 = vsel %vm3834, %v6504, 0
    %v6571 = vsel %vm3834, %v6507, 0
    %v6574 = vsel %vm3834, %v6510, 0
    %v6577 = vsel %vm3834, %v6513, 0
    %v6580 = vsel %vm3834, %v6516, 0
    %v6583 = vsel %vm3834, %v6519, 0
    %v6586 = vsel %vm3834, %v6522, 0
    %v6589 = vsel %vm3834, %v6525, 0
    %v6592 = vsel %vm3834, %v6528, 0
    %6594 = vmatpush.bf16.xpose.msra.mxu0 %v6502
    %6595 = vmatpush.bf16.xpose.msra.mxu0 %v6499
    %6596 = vmatpush.bf16.xpose.msra.mxu0 %v6496
    %6597 = vmatpush.bf16.xpose.msra.mxu0 %v6493
    %6598 = vmatpush.bf16.xpose.msra.mxu0 %v6490
    %6599 = vmatpush.bf16.xpose.msra.mxu0 %v6487
    %6600 = vmatpush.bf16.xpose.msra.mxu0 %v6484
    %6601 = vmatpush.bf16.xpose.msra.mxu0 %v6481
    %6602 = vmatmul.bf16.gmra.mxu0 %v6539
    %v6603 = vpop.f32.mrf.mxu0
    %v6604 = vadd.f32 %v6536, %v6603
    %v6605 = vpop.f32.mrf.mxu0
    %6606 = vdwg.mxu0
    %6607 = vmatpush.bf16.xpose.msra.mxu0 %v6503
    %6608 = vmatpush.bf16.xpose.msra.mxu0 %v6500
    %6609 = vmatpush.bf16.xpose.msra.mxu0 %v6497
    %6610 = vmatpush.bf16.xpose.msra.mxu0 %v6494
    %6611 = vmatpush.bf16.xpose.msra.mxu0 %v6491
    %6612 = vmatpush.bf16.xpose.msra.mxu0 %v6488
    %6613 = vmatpush.bf16.xpose.msra.mxu0 %v6485
    %6614 = vmatpush.bf16.xpose.msra.mxu0 %v6482
    %6615 = vmatmul.bf16.gmra.mxu0 %v6540
    %v6616 = vpop.f32.mrf.mxu0
    %v6617 = vadd.f32 %v6604, %v6616
    %v6618 = vpop.f32.mrf.mxu0
    %6619 = vdwg.mxu0
    %6620 = vmatpush.bf16.xpose.msra.mxu0 %v6568
    %6621 = vmatpush.bf16.xpose.msra.mxu0 %v6565
    %6622 = vmatpush.bf16.xpose.msra.mxu0 %v6562
    %6623 = vmatpush.bf16.xpose.msra.mxu0 %v6559
    %6624 = vmatpush.bf16.xpose.msra.mxu0 %v6556
    %6625 = vmatpush.bf16.xpose.msra.mxu0 %v6553
    %6626 = vmatpush.bf16.xpose.msra.mxu0 %v6550
    %6627 = vmatpush.bf16.xpose.msra.mxu0 %v6547
    %6628 = vmatmul.bf16.gmra.mxu0 %v6544
    %v6629 = vpop.f32.mrf.mxu0
    %v6630 = vadd.f32 %v6617, %v6629
    %v6631 = vpop.f32.mrf.mxu0
    %6632 = vdwg.mxu0
    %6633 = vmatpush.bf16.xpose.msra.mxu0 %v6526
    %6634 = vmatpush.bf16.xpose.msra.mxu0 %v6523
    %6635 = vmatpush.bf16.xpose.msra.mxu0 %v6520
    %6636 = vmatpush.bf16.xpose.msra.mxu0 %v6517
    %6637 = vmatpush.bf16.xpose.msra.mxu0 %v6514
    %6638 = vmatpush.bf16.xpose.msra.mxu0 %v6511
    %6639 = vmatpush.bf16.xpose.msra.mxu0 %v6508
    %6640 = vmatpush.bf16.xpose.msra.mxu0 %v6505
    %6641 = vmatmul.bf16.gmra.mxu0 %v6539
    %v6642 = vpop.f32.mrf.mxu0
    %v6643 = vadd.f32 %v6536, %v6642
    %v6644 = vpop.f32.mrf.mxu0
    %6645 = vdwg.mxu0
    %6646 = vmatpush.bf16.xpose.msra.mxu0 %v6527
    %6647 = vmatpush.bf16.xpose.msra.mxu0 %v6524
    %6648 = vmatpush.bf16.xpose.msra.mxu0 %v6521
    %6649 = vmatpush.bf16.xpose.msra.mxu0 %v6518
    %6650 = vmatpush.bf16.xpose.msra.mxu0 %v6515
    %6651 = vmatpush.bf16.xpose.msra.mxu0 %v6512
    %6652 = vmatpush.bf16.xpose.msra.mxu0 %v6509
    %6653 = vmatpush.bf16.xpose.msra.mxu0 %v6506
    %6654 = vmatmul.bf16.gmra.mxu0 %v6540
    %v6655 = vpop.f32.mrf.mxu0
    %v6656 = vadd.f32 %v6643, %v6655
    %v6657 = vpop.f32.mrf.mxu0
    %6658 = vdwg.mxu0
    %6659 = vmatpush.bf16.xpose.msra.mxu0 %v6592
    %6660 = vmatpush.bf16.xpose.msra.mxu0 %v6589
    %6661 = vmatpush.bf16.xpose.msra.mxu0 %v6586
    %6662 = vmatpush.bf16.xpose.msra.mxu0 %v6583
    %6663 = vmatpush.bf16.xpose.msra.mxu0 %v6580
    %6664 = vmatpush.bf16.xpose.msra.mxu0 %v6577
    %6665 = vmatpush.bf16.xpose.msra.mxu0 %v6574
    %6666 = vmatpush.bf16.xpose.msra.mxu0 %v6571
    %6667 = vmatmul.bf16.gmra.mxu0 %v6544
    %v6668 = vpop.f32.mrf.mxu0
    %v6669 = vadd.f32 %v6656, %v6668
    %v6670 = vpop.f32.mrf.mxu0
    %6671 = vdwg.mxu0
    %v6674 = vrot.slane %v6669, 7
    %vm6675 = vcmask 1040384
    %v6676 = vsel %vm6675, %v6630, %v6674
    %v6678 = vlaneseq
    %vm6679 = vcmp.ge.s32.totalorder %v6678, 0
    %vm6680 = vcmp.lt.s32.totalorder %v6678, 256
    %vm6681 = vmand %vm6679, %vm6680
    %6682 = vst.msk [vmem:[%s11] sm:$0x3] %vm6681, %v6676
    // Predicated region
    $region50: #{model_forward.1} parent=1 // pred_check
      _
    $region51: #{model_forward.1} parent=1 // pred_check_branch
      %6684 = sbr.rel (0) target = $region53
    $region52: #{model_forward.1} parent=1 // pred_region
      _
    $region53: #{model_forward.1} parent=1 // pred_fallthru
      _
    // Predicated region
    $region54: #{model_forward.1} parent=1 // pred_check
      _
    $region55: #{model_forward.1} parent=1 // pred_check_branch
      %6686 = sbr.rel (0) target = $region57
    $region56: #{model_forward.1} parent=1 // pred_region
      _
    $region57: #{model_forward.1} parent=1 // pred_fallthru
      _
    %6687 = vsyncpa [#allocation4], 1

</llo_original>
